<compile_context>
chip_gen: v6e
topology: v6e:2x2x1
jax: 0.10.0
libtpu: 0.0.40
codegen_flags: <defaults>
</compile_context>

<pallas_src>
import functools

import jax
import jax.numpy as jnp
import numpy as np
from jax.experimental import pallas as pl
from jax.experimental.pallas import tpu as pltpu


def _round_up(x, m):
    return ((x + m - 1) // m) * m


# ---------------------------------------------------------------------------
# The single fused kernel.
# ---------------------------------------------------------------------------
def fused_forward_kernel(x_ref, mask_ref, w1_ref, b1_ref, w2_ref, b2_ref,
                         l1w_ref, l1b_ref, l2w_ref, l2b_ref, l3w_ref, l3b_ref,
                         o_ref, scr_ref, *, W, kh, kw, base, softmax):
    f32 = jnp.float32
    B, c_in, HW = x_ref.shape
    c1 = b1_ref.shape[0]
    c2 = b2_ref.shape[0]
    BHW = B * HW
    scr_w = scr_ref.shape[1]

    taps = [i * W + j for i in range(kh) for j in range(kw)]   # flat tap offsets
    pad_off = (kh // 2) * W + (kw // 2)                         # conv2 padding=1 offset

    # ---------------- conv1 (valid) ----------------
    # Lay all batches side by side in the lane dim of the scratch; zero the tail
    # so shifted reads past the end are well defined.  All stores lane-aligned.
    for b in range(B):
        scr_ref[:c_in, b * HW:(b + 1) * HW] = x_ref[b]
    scr_ref[:c_in, BHW:scr_w] = jnp.zeros((c_in, scr_w - BHW), f32)

    acc1 = jnp.zeros((c1, BHW), f32)
    for t, d in enumerate(taps):
        tap = scr_ref[:c_in, d:d + BHW]                        # (c_in, B*HW) shifted read
        acc1 = acc1 + jnp.dot(w1_ref[t], tap, preferred_element_type=f32)
    fm1 = jnp.maximum(acc1 + b1_ref[...], 0.0)                 # (c1, B*HW)

    # ---------------- conv2 (padding=1, same spatial size) ----------------
    # Re-write the scratch: zero left border, masked fm1 (valid OHxOW region
    # only) at a 128-aligned base, zero right border.  conv2's zero padding is
    # then just more shifted full-width reads.
    m = mask_ref[...]                                          # (1, HW) 0/1 validity mask
    scr_ref[:c1, 0:base] = jnp.zeros((c1, base), f32)
    for b in range(B):
        scr_ref[:c1, base + b * HW:base + (b + 1) * HW] = \
            fm1[:, b * HW:(b + 1) * HW] * m
    scr_ref[:c1, base + BHW:scr_w] = jnp.zeros((c1, scr_w - base - BHW), f32)

    acc2 = jnp.zeros((c2, BHW), f32)
    for t, d in enumerate(taps):
        s = base - pad_off + d
        tap = scr_ref[:c1, s:s + BHW]                          # (c1, B*HW)
        acc2 = acc2 + jnp.dot(w2_ref[t], tap, preferred_element_type=f32)
    fm2 = jnp.maximum(acc2 + b2_ref[...], 0.0)                 # (c2, B*HW)
    # Positions outside the valid OHxOW grid are finite garbage; they hit zero
    # rows of the pre-padded layer-1 weights below, so no extra masking needed.

    # ---------------- layer1 (flatten absorbed into l1w layout) ----------------
    wdt = l1w_ref.dtype
    accs = [l1b_ref[...] for _ in range(B)]                    # (1, hidden) f32 each
    for c in range(c2):
        rhs = l1w_ref[c]                                       # (HW, hidden) bf16
        for b in range(B):
            lhs = fm2[c:c + 1, b * HW:(b + 1) * HW].astype(wdt)  # (1, HW)
            accs[b] = accs[b] + jnp.dot(lhs, rhs, preferred_element_type=f32)

    # ---------------- layer2 / layer3 / softmax, per batch row ----------------
    w2v, b2v = l2w_ref[...], l2b_ref[...]
    w3v, b3v = l3w_ref[...], l3b_ref[...]
    for b in range(B):
        a1 = jnp.maximum(accs[b], 0.0)
        a2 = jnp.maximum(
            jnp.dot(a1.astype(w2v.dtype), w2v, preferred_element_type=f32) + b2v,
            0.0)
        y = jnp.dot(a2.astype(w3v.dtype), w3v, preferred_element_type=f32) + b3v
        if softmax:
            y = y - jnp.max(y, axis=-1, keepdims=True)
            e = jnp.exp(y)
            y = e * pl.reciprocal(jnp.sum(e, axis=-1, keepdims=True), approx=True)
        o_ref[b:b + 1, :] = y.astype(o_ref.dtype)


def _fused_forward(x_flat, prep, *, H, W, kh, kw, softmax):
    B, c_in, HW = x_flat.shape
    assert HW == H * W
    c1 = prep["conv1_b"].shape[0]
    c2 = prep["conv2_b"].shape[0]
    out_dim = prep["l3_b"].shape[1]

    BHW = B * HW
    dmax = (kh - 1) * W + (kw - 1)
    pad_off = (kh // 2) * W + (kw // 2)
    base = _round_up(max(pad_off, 1), 128)
    scr_w = _round_up(max(BHW + dmax, base + BHW + (dmax - pad_off)), 128)
    scr_rows = max(c_in, c1)

    vmem = pl.BlockSpec(memory_space=pltpu.MemorySpace.VMEM)
    kernel = functools.partial(fused_forward_kernel, W=W, kh=kh, kw=kw,
                               base=base, softmax=softmax)
    return pl.pallas_call(
        kernel,
        out_shape=jax.ShapeDtypeStruct((B, out_dim), jnp.float32),
        in_specs=[vmem] * 12,
        out_specs=vmem,
        scratch_shapes=[pltpu.VMEM((scr_rows, scr_w), jnp.float32)],
    )(x_flat, prep["mask"], prep["conv1_w"], prep["conv1_b"],
      prep["conv2_w"], prep["conv2_b"], prep["l1_w"], prep["l1_b"],
      prep["l2_w"], prep["l2_b"], prep["l3_w"], prep["l3_b"])


# ---------------------------------------------------------------------------
# One-time parameter preparation (hoisted out of the per-call hot path).
# ---------------------------------------------------------------------------
def prepare_params(params, in_dim, kernel_size=(3, 3)):
    f32, bf16 = jnp.float32, jnp.bfloat16
    n_z, n_x, n_y = in_dim
    kh, kw = kernel_size
    H, W = n_x, n_y
    OH, OW = H - kh + 1, W - kw + 1

    c1 = params["conv1_w"].shape[0]
    c2 = params["conv2_w"].shape[0]
    hidden = params["l1_w"].shape[0]

    # Conv weights OIHW -> (kh*kw, C_out, C_in): one tiny MXU dot per tap.
    w1 = params["conv1_w"].astype(f32).transpose(2, 3, 0, 1).reshape(kh * kw, c1, n_z)
    w2 = params["conv2_w"].astype(f32).transpose(2, 3, 0, 1).reshape(kh * kw, c2, c1)

    # 0/1 mask of the valid OHxOW output region inside the HxW lane grid.
    mask = jnp.zeros((H, W), f32).at[:OH, :OW].set(1.0).reshape(1, H * W)

    # layer1: absorb torch.flatten's (C2, OH, OW) order and the OH*OW -> H*W
    # zero padding into the weight rows; bf16 halves the dominant DMA.
    l1 = params["l1_w"].astype(f32).reshape(hidden, c2, OH, OW)
    l1 = jnp.pad(l1, ((0, 0), (0, 0), (0, H - OH), (0, W - OW)))
    l1 = l1.reshape(hidden, c2, H * W).transpose(1, 2, 0)        # (C2, H*W, hidden)

    return {
        "conv1_w": w1,
        "conv1_b": params["conv1_b"].astype(f32).reshape(c1, 1),
        "conv2_w": w2,
        "conv2_b": params["conv2_b"].astype(f32).reshape(c2, 1),
        "mask": mask,
        "l1_w": l1.astype(bf16),
        "l1_b": params["l1_b"].astype(f32).reshape(1, hidden),
        "l2_w": params["l2_w"].astype(f32).T.astype(bf16),
        "l2_b": params["l2_b"].astype(f32).reshape(1, hidden),
        "l3_w": params["l3_w"].astype(f32).T.astype(bf16),
        "l3_b": params["l3_b"].astype(f32).reshape(1, -1),
    }


@functools.partial(jax.jit, static_argnames=("softmax", "kernel_size"))
def feed_forward_nn(obs_nchw, prep, softmax=False, kernel_size=(3, 3)):
    kh, kw = kernel_size
    B, c_in, H, W = obs_nchw.shape
    x = obs_nchw.astype(jnp.float32).reshape(B, c_in, H * W)     # free row-major reshape
    return _fused_forward(x, prep, H=H, W=W, kh=kh, kw=kw, softmax=softmax)


# ---------------------------------------------------------------------------
# Pure-JAX reference (mirrors the PyTorch forward exactly, NCHW + OIHW weights)
# ---------------------------------------------------------------------------
def reference_forward(obs_nchw, params, softmax=False):
    dn1 = jax.lax.conv_dimension_numbers(obs_nchw.shape, params["conv1_w"].shape,
                                         ("NCHW", "OIHW", "NCHW"))
    fm1 = jax.lax.conv_general_dilated(obs_nchw, params["conv1_w"], (1, 1), "VALID",
                                       dimension_numbers=dn1)
    fm1 = jax.nn.relu(fm1 + params["conv1_b"][None, :, None, None])
    dn2 = jax.lax.conv_dimension_numbers(fm1.shape, params["conv2_w"].shape,
                                         ("NCHW", "OIHW", "NCHW"))
    fm2 = jax.lax.conv_general_dilated(fm1, params["conv2_w"], (1, 1),
                                       ((1, 1), (1, 1)), dimension_numbers=dn2)
    fm2 = jax.nn.relu(fm2 + params["conv2_b"][None, :, None, None])
    flat = fm2.reshape(fm2.shape[0], -1)
    a1 = jax.nn.relu(flat @ params["l1_w"].T + params["l1_b"])
    a2 = jax.nn.relu(a1 @ params["l2_w"].T + params["l2_b"])
    out = a2 @ params["l3_w"].T + params["l3_b"]
    if softmax:
        out = jax.nn.softmax(out, axis=1)
    return out


if __name__ == "__main__":
    # Module config: in_dim = (n_z, n_x, n_y) = (4, 16, 16), n_conv = 4,
    # hidden_dim = 32, out_dim = 8, kernel_size = (3, 3).
    batch, n_z, n_x, n_y = 2, 4, 16, 16
    n_conv, hidden_dim, out_dim = 4, 32, 8
    kh, kw = 3, 3
    flat_dim = (n_x - kh + 1) * (n_y - kw + 1) * n_conv * 2   # 14*14*8 = 1568

    key = jax.random.PRNGKey(0)
    keys = jax.random.split(key, 11)

    def init(k, shape, scale):
        return scale * jax.random.normal(k, shape, jnp.float32)

    params = {
        "conv1_w": init(keys[0], (n_conv, n_z, kh, kw), 0.10),
        "conv1_b": init(keys[1], (n_conv,), 0.10),
        "conv2_w": init(keys[2], (2 * n_conv, n_conv, kh, kw), 0.10),
        "conv2_b": init(keys[3], (2 * n_conv,), 0.10),
        "l1_w": init(keys[4], (hidden_dim, flat_dim), 0.02),
        "l1_b": init(keys[5], (hidden_dim,), 0.02),
        "l2_w": init(keys[6], (hidden_dim, hidden_dim), 0.05),
        "l2_b": init(keys[7], (hidden_dim,), 0.05),
        "l3_w": init(keys[8], (out_dim, hidden_dim), 0.05),
        "l3_b": init(keys[9], (out_dim,), 0.05),
    }
    x = jax.random.normal(keys[10], (batch, n_z, n_x, n_y), jnp.float32)

    prep = prepare_params(params, (n_z, n_x, n_y), (kh, kw))

    for sm in (False, True):
        out = jax.block_until_ready(feed_forward_nn(x, prep, softmax=sm,
                                                    kernel_size=(kh, kw)))
        ref = jax.block_until_ready(reference_forward(x, params, softmax=sm))
        assert out.shape == (batch, out_dim)
        np.testing.assert_allclose(np.asarray(out), np.asarray(ref),
                                   rtol=1e-2, atol=1e-2)

    print("KERNEL_OK")
</pallas_src>

<mosaic_0001>
module attributes {stable_mosaic.version = 11 : i64} {
  func.func @fused_forward_kernel(%arg0: memref<2x4x256xf32, #tpu.memory_space<vmem>>, %arg1: memref<1x256xf32, #tpu.memory_space<vmem>>, %arg2: memref<9x4x4xf32, #tpu.memory_space<vmem>>, %arg3: memref<4x1xf32, #tpu.memory_space<vmem>>, %arg4: memref<9x8x4xf32, #tpu.memory_space<vmem>>, %arg5: memref<8x1xf32, #tpu.memory_space<vmem>>, %arg6: memref<8x256x32xbf16, #tpu.memory_space<vmem>>, %arg7: memref<1x32xf32, #tpu.memory_space<vmem>>, %arg8: memref<32x32xbf16, #tpu.memory_space<vmem>>, %arg9: memref<1x32xf32, #tpu.memory_space<vmem>>, %arg10: memref<32x8xbf16, #tpu.memory_space<vmem>>, %arg11: memref<1x8xf32, #tpu.memory_space<vmem>>, %arg12: memref<2x8xf32, #tpu.memory_space<vmem>>, %arg13: memref<4x768xf32, #tpu.memory_space<vmem>>) attributes {dimension_semantics = [], scalar_prefetch = 0 : i64, scratch_operands = 1 : i64, tpu.core_type = #tpu.core_type<tc>} {
    %c0 = arith.constant 0 : index
    %c0_0 = arith.constant 0 : index
    %c0_1 = arith.constant 0 : index
    %0 = vector.load %arg0[%c0, %c0_0, %c0_1] : memref<2x4x256xf32, #tpu.memory_space<vmem>>, vector<1x4x256xf32>
    %1 = vector.shape_cast %0 : vector<1x4x256xf32> to vector<4x256xf32>
    %c0_2 = arith.constant 0 : index
    %c0_3 = arith.constant 0 : index
    %2 = vector.load %arg13[%c0_2, %c0_3] : memref<4x768xf32, #tpu.memory_space<vmem>>, vector<4x256xf32>
    tpu.vector_store %arg13[%c0_2, %c0_3], %1 {strides = array<i32>} : memref<4x768xf32, #tpu.memory_space<vmem>>, vector<4x256xf32>,
    %c1 = arith.constant 1 : index
    %c0_4 = arith.constant 0 : index
    %c0_5 = arith.constant 0 : index
    %3 = vector.load %arg0[%c1, %c0_4, %c0_5] : memref<2x4x256xf32, #tpu.memory_space<vmem>>, vector<1x4x256xf32>
    %4 = vector.shape_cast %3 : vector<1x4x256xf32> to vector<4x256xf32>
    %c0_6 = arith.constant 0 : index
    %c256 = arith.constant 256 : index
    %5 = vector.load %arg13[%c0_6, %c256] : memref<4x768xf32, #tpu.memory_space<vmem>>, vector<4x256xf32>
    tpu.vector_store %arg13[%c0_6, %c256], %4 {strides = array<i32>} : memref<4x768xf32, #tpu.memory_space<vmem>>, vector<4x256xf32>,
    %cst = arith.constant 0.000000e+00 : f32
    %6 = vector.broadcast %cst : f32 to vector<4x256xf32>
    %c0_7 = arith.constant 0 : index
    %c512 = arith.constant 512 : index
    %7 = vector.load %arg13[%c0_7, %c512] : memref<4x768xf32, #tpu.memory_space<vmem>>, vector<4x256xf32>
    tpu.vector_store %arg13[%c0_7, %c512], %6 {strides = array<i32>} : memref<4x768xf32, #tpu.memory_space<vmem>>, vector<4x256xf32>,
    %cst_8 = arith.constant 0.000000e+00 : f32
    %8 = vector.broadcast %cst_8 : f32 to vector<4x512xf32>
    %c0_9 = arith.constant 0 : index
    %c0_10 = arith.constant 0 : index
    %9 = vector.load %arg13[%c0_9, %c0_10] : memref<4x768xf32, #tpu.memory_space<vmem>>, vector<4x512xf32>
    %c0_11 = arith.constant 0 : index
    %c0_12 = arith.constant 0 : index
    %c0_13 = arith.constant 0 : index
    %10 = vector.load %arg2[%c0_11, %c0_12, %c0_13] : memref<9x4x4xf32, #tpu.memory_space<vmem>>, vector<1x4x4xf32>
    %11 = vector.shape_cast %10 : vector<1x4x4xf32> to vector<4x4xf32>
    %cst_14 = arith.constant dense<0.000000e+00> : vector<4x512xf32>
    %12 = tpu.matmul %11, %9, %cst_14 {dimension_numbers = #tpu.dot_dimension_numbers<[1], [0], [0], [1], [0, 0, 1, 1], [], []>} : vector<4x4xf32>, vector<4x512xf32>, vector<4x512xf32> -> vector<4x512xf32>
    %13 = arith.addf %8, %12 : vector<4x512xf32>
    %c0_15 = arith.constant 0 : index
    %c1_16 = arith.constant 1 : index
    %14 = vector.load %arg13[%c0_15, %c1_16] : memref<4x768xf32, #tpu.memory_space<vmem>>, vector<4x512xf32>
    %c1_17 = arith.constant 1 : index
    %c0_18 = arith.constant 0 : index
    %c0_19 = arith.constant 0 : index
    %15 = vector.load %arg2[%c1_17, %c0_18, %c0_19] : memref<9x4x4xf32, #tpu.memory_space<vmem>>, vector<1x4x4xf32>
    %16 = vector.shape_cast %15 : vector<1x4x4xf32> to vector<4x4xf32>
    %cst_20 = arith.constant dense<0.000000e+00> : vector<4x512xf32>
    %17 = tpu.matmul %16, %14, %cst_20 {dimension_numbers = #tpu.dot_dimension_numbers<[1], [0], [0], [1], [0, 0, 1, 1], [], []>} : vector<4x4xf32>, vector<4x512xf32>, vector<4x512xf32> -> vector<4x512xf32>
    %18 = arith.addf %13, %17 : vector<4x512xf32>
    %c0_21 = arith.constant 0 : index
    %c2 = arith.constant 2 : index
    %19 = vector.load %arg13[%c0_21, %c2] : memref<4x768xf32, #tpu.memory_space<vmem>>, vector<4x512xf32>
    %c2_22 = arith.constant 2 : index
    %c0_23 = arith.constant 0 : index
    %c0_24 = arith.constant 0 : index
    %20 = vector.load %arg2[%c2_22, %c0_23, %c0_24] : memref<9x4x4xf32, #tpu.memory_space<vmem>>, vector<1x4x4xf32>
    %21 = vector.shape_cast %20 : vector<1x4x4xf32> to vector<4x4xf32>
    %cst_25 = arith.constant dense<0.000000e+00> : vector<4x512xf32>
    %22 = tpu.matmul %21, %19, %cst_25 {dimension_numbers = #tpu.dot_dimension_numbers<[1], [0], [0], [1], [0, 0, 1, 1], [], []>} : vector<4x4xf32>, vector<4x512xf32>, vector<4x512xf32> -> vector<4x512xf32>
    %23 = arith.addf %18, %22 : vector<4x512xf32>
    %c0_26 = arith.constant 0 : index
    %c16 = arith.constant 16 : index
    %24 = vector.load %arg13[%c0_26, %c16] : memref<4x768xf32, #tpu.memory_space<vmem>>, vector<4x512xf32>
    %c3 = arith.constant 3 : index
    %c0_27 = arith.constant 0 : index
    %c0_28 = arith.constant 0 : index
    %25 = vector.load %arg2[%c3, %c0_27, %c0_28] : memref<9x4x4xf32, #tpu.memory_space<vmem>>, vector<1x4x4xf32>
    %26 = vector.shape_cast %25 : vector<1x4x4xf32> to vector<4x4xf32>
    %cst_29 = arith.constant dense<0.000000e+00> : vector<4x512xf32>
    %27 = tpu.matmul %26, %24, %cst_29 {dimension_numbers = #tpu.dot_dimension_numbers<[1], [0], [0], [1], [0, 0, 1, 1], [], []>} : vector<4x4xf32>, vector<4x512xf32>, vector<4x512xf32> -> vector<4x512xf32>
    %28 = arith.addf %23, %27 : vector<4x512xf32>
    %c0_30 = arith.constant 0 : index
    %c17 = arith.constant 17 : index
    %29 = vector.load %arg13[%c0_30, %c17] : memref<4x768xf32, #tpu.memory_space<vmem>>, vector<4x512xf32>
    %c4 = arith.constant 4 : index
    %c0_31 = arith.constant 0 : index
    %c0_32 = arith.constant 0 : index
    %30 = vector.load %arg2[%c4, %c0_31, %c0_32] : memref<9x4x4xf32, #tpu.memory_space<vmem>>, vector<1x4x4xf32>
    %31 = vector.shape_cast %30 : vector<1x4x4xf32> to vector<4x4xf32>
    %cst_33 = arith.constant dense<0.000000e+00> : vector<4x512xf32>
    %32 = tpu.matmul %31, %29, %cst_33 {dimension_numbers = #tpu.dot_dimension_numbers<[1], [0], [0], [1], [0, 0, 1, 1], [], []>} : vector<4x4xf32>, vector<4x512xf32>, vector<4x512xf32> -> vector<4x512xf32>
    %33 = arith.addf %28, %32 : vector<4x512xf32>
    %c0_34 = arith.constant 0 : index
    %c18 = arith.constant 18 : index
    %34 = vector.load %arg13[%c0_34, %c18] : memref<4x768xf32, #tpu.memory_space<vmem>>, vector<4x512xf32>
    %c5 = arith.constant 5 : index
    %c0_35 = arith.constant 0 : index
    %c0_36 = arith.constant 0 : index
    %35 = vector.load %arg2[%c5, %c0_35, %c0_36] : memref<9x4x4xf32, #tpu.memory_space<vmem>>, vector<1x4x4xf32>
    %36 = vector.shape_cast %35 : vector<1x4x4xf32> to vector<4x4xf32>
    %cst_37 = arith.constant dense<0.000000e+00> : vector<4x512xf32>
    %37 = tpu.matmul %36, %34, %cst_37 {dimension_numbers = #tpu.dot_dimension_numbers<[1], [0], [0], [1], [0, 0, 1, 1], [], []>} : vector<4x4xf32>, vector<4x512xf32>, vector<4x512xf32> -> vector<4x512xf32>
    %38 = arith.addf %33, %37 : vector<4x512xf32>
    %c0_38 = arith.constant 0 : index
    %c32 = arith.constant 32 : index
    %39 = vector.load %arg13[%c0_38, %c32] : memref<4x768xf32, #tpu.memory_space<vmem>>, vector<4x512xf32>
    %c6 = arith.constant 6 : index
    %c0_39 = arith.constant 0 : index
    %c0_40 = arith.constant 0 : index
    %40 = vector.load %arg2[%c6, %c0_39, %c0_40] : memref<9x4x4xf32, #tpu.memory_space<vmem>>, vector<1x4x4xf32>
    %41 = vector.shape_cast %40 : vector<1x4x4xf32> to vector<4x4xf32>
    %cst_41 = arith.constant dense<0.000000e+00> : vector<4x512xf32>
    %42 = tpu.matmul %41, %39, %cst_41 {dimension_numbers = #tpu.dot_dimension_numbers<[1], [0], [0], [1], [0, 0, 1, 1], [], []>} : vector<4x4xf32>, vector<4x512xf32>, vector<4x512xf32> -> vector<4x512xf32>
    %43 = arith.addf %38, %42 : vector<4x512xf32>
    %c0_42 = arith.constant 0 : index
    %c33 = arith.constant 33 : index
    %44 = vector.load %arg13[%c0_42, %c33] : memref<4x768xf32, #tpu.memory_space<vmem>>, vector<4x512xf32>
    %c7 = arith.constant 7 : index
    %c0_43 = arith.constant 0 : index
    %c0_44 = arith.constant 0 : index
    %45 = vector.load %arg2[%c7, %c0_43, %c0_44] : memref<9x4x4xf32, #tpu.memory_space<vmem>>, vector<1x4x4xf32>
    %46 = vector.shape_cast %45 : vector<1x4x4xf32> to vector<4x4xf32>
    %cst_45 = arith.constant dense<0.000000e+00> : vector<4x512xf32>
    %47 = tpu.matmul %46, %44, %cst_45 {dimension_numbers = #tpu.dot_dimension_numbers<[1], [0], [0], [1], [0, 0, 1, 1], [], []>} : vector<4x4xf32>, vector<4x512xf32>, vector<4x512xf32> -> vector<4x512xf32>
    %48 = arith.addf %43, %47 : vector<4x512xf32>
    %c0_46 = arith.constant 0 : index
    %c34 = arith.constant 34 : index
    %49 = vector.load %arg13[%c0_46, %c34] : memref<4x768xf32, #tpu.memory_space<vmem>>, vector<4x512xf32>
    %c8 = arith.constant 8 : index
    %c0_47 = arith.constant 0 : index
    %c0_48 = arith.constant 0 : index
    %50 = vector.load %arg2[%c8, %c0_47, %c0_48] : memref<9x4x4xf32, #tpu.memory_space<vmem>>, vector<1x4x4xf32>
    %51 = vector.shape_cast %50 : vector<1x4x4xf32> to vector<4x4xf32>
    %cst_49 = arith.constant dense<0.000000e+00> : vector<4x512xf32>
    %52 = tpu.matmul %51, %49, %cst_49 {dimension_numbers = #tpu.dot_dimension_numbers<[1], [0], [0], [1], [0, 0, 1, 1], [], []>} : vector<4x4xf32>, vector<4x512xf32>, vector<4x512xf32> -> vector<4x512xf32>
    %53 = arith.addf %48, %52 : vector<4x512xf32>
    %c0_50 = arith.constant 0 : index
    %c0_51 = arith.constant 0 : index
    %54 = vector.load %arg3[%c0_50, %c0_51] : memref<4x1xf32, #tpu.memory_space<vmem>>, vector<4x1xf32>
    %55 = vector.broadcast %54 : vector<4x1xf32> to vector<4x512xf32>
    %56 = arith.addf %53, %55 : vector<4x512xf32>
    %cst_52 = arith.constant 0.000000e+00 : f32
    %57 = vector.broadcast %cst_52 : f32 to vector<4x512xf32>
    %58 = arith.maximumf %56, %57 : vector<4x512xf32>
    %c0_53 = arith.constant 0 : index
    %c0_54 = arith.constant 0 : index
    %59 = vector.load %arg1[%c0_53, %c0_54] : memref<1x256xf32, #tpu.memory_space<vmem>>, vector<1x256xf32>
    %cst_55 = arith.constant 0.000000e+00 : f32
    %60 = vector.broadcast %cst_55 : f32 to vector<4x128xf32>
    %c0_56 = arith.constant 0 : index
    %c0_57 = arith.constant 0 : index
    %61 = vector.load %arg13[%c0_56, %c0_57] : memref<4x768xf32, #tpu.memory_space<vmem>>, vector<4x128xf32>
    tpu.vector_store %arg13[%c0_56, %c0_57], %60 {strides = array<i32>} : memref<4x768xf32, #tpu.memory_space<vmem>>, vector<4x128xf32>,
    %62 = vector.extract_strided_slice %58 {offsets = [0, 0], sizes = [4, 256], strides = [1, 1]} : vector<4x512xf32> to vector<4x256xf32>
    %63 = vector.broadcast %59 : vector<1x256xf32> to vector<4x256xf32>
    %64 = arith.mulf %62, %63 : vector<4x256xf32>
    %c0_58 = arith.constant 0 : index
    %c128 = arith.constant 128 : index
    %65 = vector.load %arg13[%c0_58, %c128] : memref<4x768xf32, #tpu.memory_space<vmem>>, vector<4x256xf32>
    tpu.vector_store %arg13[%c0_58, %c128], %64 {strides = array<i32>} : memref<4x768xf32, #tpu.memory_space<vmem>>, vector<4x256xf32>,
    %66 = vector.extract_strided_slice %58 {offsets = [0, 256], sizes = [4, 256], strides = [1, 1]} : vector<4x512xf32> to vector<4x256xf32>
    %67 = vector.broadcast %59 : vector<1x256xf32> to vector<4x256xf32>
    %68 = arith.mulf %66, %67 : vector<4x256xf32>
    %c0_59 = arith.constant 0 : index
    %c384 = arith.constant 384 : index
    %69 = vector.load %arg13[%c0_59, %c384] : memref<4x768xf32, #tpu.memory_space<vmem>>, vector<4x256xf32>
    tpu.vector_store %arg13[%c0_59, %c384], %68 {strides = array<i32>} : memref<4x768xf32, #tpu.memory_space<vmem>>, vector<4x256xf32>,
    %cst_60 = arith.constant 0.000000e+00 : f32
    %70 = vector.broadcast %cst_60 : f32 to vector<4x128xf32>
    %c0_61 = arith.constant 0 : index
    %c640 = arith.constant 640 : index
    %71 = vector.load %arg13[%c0_61, %c640] : memref<4x768xf32, #tpu.memory_space<vmem>>, vector<4x128xf32>
    tpu.vector_store %arg13[%c0_61, %c640], %70 {strides = array<i32>} : memref<4x768xf32, #tpu.memory_space<vmem>>, vector<4x128xf32>,
    %cst_62 = arith.constant 0.000000e+00 : f32
    %72 = vector.broadcast %cst_62 : f32 to vector<8x512xf32>
    %c0_63 = arith.constant 0 : index
    %c111 = arith.constant 111 : index
    %73 = vector.load %arg13[%c0_63, %c111] : memref<4x768xf32, #tpu.memory_space<vmem>>, vector<4x512xf32>
    %c0_64 = arith.constant 0 : index
    %c0_65 = arith.constant 0 : index
    %c0_66 = arith.constant 0 : index
    %74 = vector.load %arg4[%c0_64, %c0_65, %c0_66] : memref<9x8x4xf32, #tpu.memory_space<vmem>>, vector<1x8x4xf32>
    %75 = vector.shape_cast %74 : vector<1x8x4xf32> to vector<8x4xf32>
    %cst_67 = arith.constant dense<0.000000e+00> : vector<8x512xf32>
    %76 = tpu.matmul %75, %73, %cst_67 {dimension_numbers = #tpu.dot_dimension_numbers<[1], [0], [0], [1], [0, 0, 1, 1], [], []>} : vector<8x4xf32>, vector<4x512xf32>, vector<8x512xf32> -> vector<8x512xf32>
    %77 = arith.addf %72, %76 : vector<8x512xf32>
    %c0_68 = arith.constant 0 : index
    %c112 = arith.constant 112 : index
    %78 = vector.load %arg13[%c0_68, %c112] : memref<4x768xf32, #tpu.memory_space<vmem>>, vector<4x512xf32>
    %c1_69 = arith.constant 1 : index
    %c0_70 = arith.constant 0 : index
    %c0_71 = arith.constant 0 : index
    %79 = vector.load %arg4[%c1_69, %c0_70, %c0_71] : memref<9x8x4xf32, #tpu.memory_space<vmem>>, vector<1x8x4xf32>
    %80 = vector.shape_cast %79 : vector<1x8x4xf32> to vector<8x4xf32>
    %cst_72 = arith.constant dense<0.000000e+00> : vector<8x512xf32>
    %81 = tpu.matmul %80, %78, %cst_72 {dimension_numbers = #tpu.dot_dimension_numbers<[1], [0], [0], [1], [0, 0, 1, 1], [], []>} : vector<8x4xf32>, vector<4x512xf32>, vector<8x512xf32> -> vector<8x512xf32>
    %82 = arith.addf %77, %81 : vector<8x512xf32>
    %c0_73 = arith.constant 0 : index
    %c113 = arith.constant 113 : index
    %83 = vector.load %arg13[%c0_73, %c113] : memref<4x768xf32, #tpu.memory_space<vmem>>, vector<4x512xf32>
    %c2_74 = arith.constant 2 : index
    %c0_75 = arith.constant 0 : index
    %c0_76 = arith.constant 0 : index
    %84 = vector.load %arg4[%c2_74, %c0_75, %c0_76] : memref<9x8x4xf32, #tpu.memory_space<vmem>>, vector<1x8x4xf32>
    %85 = vector.shape_cast %84 : vector<1x8x4xf32> to vector<8x4xf32>
    %cst_77 = arith.constant dense<0.000000e+00> : vector<8x512xf32>
    %86 = tpu.matmul %85, %83, %cst_77 {dimension_numbers = #tpu.dot_dimension_numbers<[1], [0], [0], [1], [0, 0, 1, 1], [], []>} : vector<8x4xf32>, vector<4x512xf32>, vector<8x512xf32> -> vector<8x512xf32>
    %87 = arith.addf %82, %86 : vector<8x512xf32>
    %c0_78 = arith.constant 0 : index
    %c127 = arith.constant 127 : index
    %88 = vector.load %arg13[%c0_78, %c127] : memref<4x768xf32, #tpu.memory_space<vmem>>, vector<4x512xf32>
    %c3_79 = arith.constant 3 : index
    %c0_80 = arith.constant 0 : index
    %c0_81 = arith.constant 0 : index
    %89 = vector.load %arg4[%c3_79, %c0_80, %c0_81] : memref<9x8x4xf32, #tpu.memory_space<vmem>>, vector<1x8x4xf32>
    %90 = vector.shape_cast %89 : vector<1x8x4xf32> to vector<8x4xf32>
    %cst_82 = arith.constant dense<0.000000e+00> : vector<8x512xf32>
    %91 = tpu.matmul %90, %88, %cst_82 {dimension_numbers = #tpu.dot_dimension_numbers<[1], [0], [0], [1], [0, 0, 1, 1], [], []>} : vector<8x4xf32>, vector<4x512xf32>, vector<8x512xf32> -> vector<8x512xf32>
    %92 = arith.addf %87, %91 : vector<8x512xf32>
    %c0_83 = arith.constant 0 : index
    %c128_84 = arith.constant 128 : index
    %93 = vector.load %arg13[%c0_83, %c128_84] : memref<4x768xf32, #tpu.memory_space<vmem>>, vector<4x512xf32>
    %c4_85 = arith.constant 4 : index
    %c0_86 = arith.constant 0 : index
    %c0_87 = arith.constant 0 : index
    %94 = vector.load %arg4[%c4_85, %c0_86, %c0_87] : memref<9x8x4xf32, #tpu.memory_space<vmem>>, vector<1x8x4xf32>
    %95 = vector.shape_cast %94 : vector<1x8x4xf32> to vector<8x4xf32>
    %cst_88 = arith.constant dense<0.000000e+00> : vector<8x512xf32>
    %96 = tpu.matmul %95, %93, %cst_88 {dimension_numbers = #tpu.dot_dimension_numbers<[1], [0], [0], [1], [0, 0, 1, 1], [], []>} : vector<8x4xf32>, vector<4x512xf32>, vector<8x512xf32> -> vector<8x512xf32>
    %97 = arith.addf %92, %96 : vector<8x512xf32>
    %c0_89 = arith.constant 0 : index
    %c129 = arith.constant 129 : index
    %98 = vector.load %arg13[%c0_89, %c129] : memref<4x768xf32, #tpu.memory_space<vmem>>, vector<4x512xf32>
    %c5_90 = arith.constant 5 : index
    %c0_91 = arith.constant 0 : index
    %c0_92 = arith.constant 0 : index
    %99 = vector.load %arg4[%c5_90, %c0_91, %c0_92] : memref<9x8x4xf32, #tpu.memory_space<vmem>>, vector<1x8x4xf32>
    %100 = vector.shape_cast %99 : vector<1x8x4xf32> to vector<8x4xf32>
    %cst_93 = arith.constant dense<0.000000e+00> : vector<8x512xf32>
    %101 = tpu.matmul %100, %98, %cst_93 {dimension_numbers = #tpu.dot_dimension_numbers<[1], [0], [0], [1], [0, 0, 1, 1], [], []>} : vector<8x4xf32>, vector<4x512xf32>, vector<8x512xf32> -> vector<8x512xf32>
    %102 = arith.addf %97, %101 : vector<8x512xf32>
    %c0_94 = arith.constant 0 : index
    %c143 = arith.constant 143 : index
    %103 = vector.load %arg13[%c0_94, %c143] : memref<4x768xf32, #tpu.memory_space<vmem>>, vector<4x512xf32>
    %c6_95 = arith.constant 6 : index
    %c0_96 = arith.constant 0 : index
    %c0_97 = arith.constant 0 : index
    %104 = vector.load %arg4[%c6_95, %c0_96, %c0_97] : memref<9x8x4xf32, #tpu.memory_space<vmem>>, vector<1x8x4xf32>
    %105 = vector.shape_cast %104 : vector<1x8x4xf32> to vector<8x4xf32>
    %cst_98 = arith.constant dense<0.000000e+00> : vector<8x512xf32>
    %106 = tpu.matmul %105, %103, %cst_98 {dimension_numbers = #tpu.dot_dimension_numbers<[1], [0], [0], [1], [0, 0, 1, 1], [], []>} : vector<8x4xf32>, vector<4x512xf32>, vector<8x512xf32> -> vector<8x512xf32>
    %107 = arith.addf %102, %106 : vector<8x512xf32>
    %c0_99 = arith.constant 0 : index
    %c144 = arith.constant 144 : index
    %108 = vector.load %arg13[%c0_99, %c144] : memref<4x768xf32, #tpu.memory_space<vmem>>, vector<4x512xf32>
    %c7_100 = arith.constant 7 : index
    %c0_101 = arith.constant 0 : index
    %c0_102 = arith.constant 0 : index
    %109 = vector.load %arg4[%c7_100, %c0_101, %c0_102] : memref<9x8x4xf32, #tpu.memory_space<vmem>>, vector<1x8x4xf32>
    %110 = vector.shape_cast %109 : vector<1x8x4xf32> to vector<8x4xf32>
    %cst_103 = arith.constant dense<0.000000e+00> : vector<8x512xf32>
    %111 = tpu.matmul %110, %108, %cst_103 {dimension_numbers = #tpu.dot_dimension_numbers<[1], [0], [0], [1], [0, 0, 1, 1], [], []>} : vector<8x4xf32>, vector<4x512xf32>, vector<8x512xf32> -> vector<8x512xf32>
    %112 = arith.addf %107, %111 : vector<8x512xf32>
    %c0_104 = arith.constant 0 : index
    %c145 = arith.constant 145 : index
    %113 = vector.load %arg13[%c0_104, %c145] : memref<4x768xf32, #tpu.memory_space<vmem>>, vector<4x512xf32>
    %c8_105 = arith.constant 8 : index
    %c0_106 = arith.constant 0 : index
    %c0_107 = arith.constant 0 : index
    %114 = vector.load %arg4[%c8_105, %c0_106, %c0_107] : memref<9x8x4xf32, #tpu.memory_space<vmem>>, vector<1x8x4xf32>
    %115 = vector.shape_cast %114 : vector<1x8x4xf32> to vector<8x4xf32>
    %cst_108 = arith.constant dense<0.000000e+00> : vector<8x512xf32>
    %116 = tpu.matmul %115, %113, %cst_108 {dimension_numbers = #tpu.dot_dimension_numbers<[1], [0], [0], [1], [0, 0, 1, 1], [], []>} : vector<8x4xf32>, vector<4x512xf32>, vector<8x512xf32> -> vector<8x512xf32>
    %117 = arith.addf %112, %116 : vector<8x512xf32>
    %c0_109 = arith.constant 0 : index
    %c0_110 = arith.constant 0 : index
    %118 = vector.load %arg5[%c0_109, %c0_110] : memref<8x1xf32, #tpu.memory_space<vmem>>, vector<8x1xf32>
    %119 = vector.broadcast %118 : vector<8x1xf32> to vector<8x512xf32>
    %120 = arith.addf %117, %119 : vector<8x512xf32>
    %cst_111 = arith.constant 0.000000e+00 : f32
    %121 = vector.broadcast %cst_111 : f32 to vector<8x512xf32>
    %122 = arith.maximumf %120, %121 : vector<8x512xf32>
    %c0_112 = arith.constant 0 : index
    %c0_113 = arith.constant 0 : index
    %123 = vector.load %arg7[%c0_112, %c0_113] : memref<1x32xf32, #tpu.memory_space<vmem>>, vector<1x32xf32>
    %c0_114 = arith.constant 0 : index
    %c0_115 = arith.constant 0 : index
    %124 = vector.load %arg7[%c0_114, %c0_115] : memref<1x32xf32, #tpu.memory_space<vmem>>, vector<1x32xf32>
    %c0_116 = arith.constant 0 : index
    %c0_117 = arith.constant 0 : index
    %c0_118 = arith.constant 0 : index
    %125 = vector.load %arg6[%c0_116, %c0_117, %c0_118] : memref<8x256x32xbf16, #tpu.memory_space<vmem>>, vector<1x256x32xbf16>
    %126 = vector.shape_cast %125 : vector<1x256x32xbf16> to vector<256x32xbf16>
    %127 = vector.extract_strided_slice %122 {offsets = [0, 0], sizes = [1, 256], strides = [1, 1]} : vector<8x512xf32> to vector<1x256xf32>
    %128 = arith.truncf %127 : vector<1x256xf32> to vector<1x256xbf16>
    %cst_119 = arith.constant dense<0.000000e+00> : vector<1x32xf32>
    %129 = tpu.matmul %128, %126, %cst_119 {dimension_numbers = #tpu.dot_dimension_numbers<[1], [0], [0], [1], [0, 0, 1, 1], [], []>} : vector<1x256xbf16>, vector<256x32xbf16>, vector<1x32xf32> -> vector<1x32xf32>
    %130 = arith.addf %123, %129 : vector<1x32xf32>
    %131 = vector.extract_strided_slice %122 {offsets = [0, 256], sizes = [1, 256], strides = [1, 1]} : vector<8x512xf32> to vector<1x256xf32>
    %132 = arith.truncf %131 : vector<1x256xf32> to vector<1x256xbf16>
    %cst_120 = arith.constant dense<0.000000e+00> : vector<1x32xf32>
    %133 = tpu.matmul %132, %126, %cst_120 {dimension_numbers = #tpu.dot_dimension_numbers<[1], [0], [0], [1], [0, 0, 1, 1], [], []>} : vector<1x256xbf16>, vector<256x32xbf16>, vector<1x32xf32> -> vector<1x32xf32>
    %134 = arith.addf %124, %133 : vector<1x32xf32>
    %c1_121 = arith.constant 1 : index
    %c0_122 = arith.constant 0 : index
    %c0_123 = arith.constant 0 : index
    %135 = vector.load %arg6[%c1_121, %c0_122, %c0_123] : memref<8x256x32xbf16, #tpu.memory_space<vmem>>, vector<1x256x32xbf16>
    %136 = vector.shape_cast %135 : vector<1x256x32xbf16> to vector<256x32xbf16>
    %137 = vector.extract_strided_slice %122 {offsets = [1, 0], sizes = [1, 256], strides = [1, 1]} : vector<8x512xf32> to vector<1x256xf32>
    %138 = arith.truncf %137 : vector<1x256xf32> to vector<1x256xbf16>
    %cst_124 = arith.constant dense<0.000000e+00> : vector<1x32xf32>
    %139 = tpu.matmul %138, %136, %cst_124 {dimension_numbers = #tpu.dot_dimension_numbers<[1], [0], [0], [1], [0, 0, 1, 1], [], []>} : vector<1x256xbf16>, vector<256x32xbf16>, vector<1x32xf32> -> vector<1x32xf32>
    %140 = arith.addf %130, %139 : vector<1x32xf32>
    %141 = vector.extract_strided_slice %122 {offsets = [1, 256], sizes = [1, 256], strides = [1, 1]} : vector<8x512xf32> to vector<1x256xf32>
    %142 = arith.truncf %141 : vector<1x256xf32> to vector<1x256xbf16>
    %cst_125 = arith.constant dense<0.000000e+00> : vector<1x32xf32>
    %143 = tpu.matmul %142, %136, %cst_125 {dimension_numbers = #tpu.dot_dimension_numbers<[1], [0], [0], [1], [0, 0, 1, 1], [], []>} : vector<1x256xbf16>, vector<256x32xbf16>, vector<1x32xf32> -> vector<1x32xf32>
    %144 = arith.addf %134, %143 : vector<1x32xf32>
    %c2_126 = arith.constant 2 : index
    %c0_127 = arith.constant 0 : index
    %c0_128 = arith.constant 0 : index
    %145 = vector.load %arg6[%c2_126, %c0_127, %c0_128] : memref<8x256x32xbf16, #tpu.memory_space<vmem>>, vector<1x256x32xbf16>
    %146 = vector.shape_cast %145 : vector<1x256x32xbf16> to vector<256x32xbf16>
    %147 = vector.extract_strided_slice %122 {offsets = [2, 0], sizes = [1, 256], strides = [1, 1]} : vector<8x512xf32> to vector<1x256xf32>
    %148 = arith.truncf %147 : vector<1x256xf32> to vector<1x256xbf16>
    %cst_129 = arith.constant dense<0.000000e+00> : vector<1x32xf32>
    %149 = tpu.matmul %148, %146, %cst_129 {dimension_numbers = #tpu.dot_dimension_numbers<[1], [0], [0], [1], [0, 0, 1, 1], [], []>} : vector<1x256xbf16>, vector<256x32xbf16>, vector<1x32xf32> -> vector<1x32xf32>
    %150 = arith.addf %140, %149 : vector<1x32xf32>
    %151 = vector.extract_strided_slice %122 {offsets = [2, 256], sizes = [1, 256], strides = [1, 1]} : vector<8x512xf32> to vector<1x256xf32>
    %152 = arith.truncf %151 : vector<1x256xf32> to vector<1x256xbf16>
    %cst_130 = arith.constant dense<0.000000e+00> : vector<1x32xf32>
    %153 = tpu.matmul %152, %146, %cst_130 {dimension_numbers = #tpu.dot_dimension_numbers<[1], [0], [0], [1], [0, 0, 1, 1], [], []>} : vector<1x256xbf16>, vector<256x32xbf16>, vector<1x32xf32> -> vector<1x32xf32>
    %154 = arith.addf %144, %153 : vector<1x32xf32>
    %c3_131 = arith.constant 3 : index
    %c0_132 = arith.constant 0 : index
    %c0_133 = arith.constant 0 : index
    %155 = vector.load %arg6[%c3_131, %c0_132, %c0_133] : memref<8x256x32xbf16, #tpu.memory_space<vmem>>, vector<1x256x32xbf16>
    %156 = vector.shape_cast %155 : vector<1x256x32xbf16> to vector<256x32xbf16>
    %157 = vector.extract_strided_slice %122 {offsets = [3, 0], sizes = [1, 256], strides = [1, 1]} : vector<8x512xf32> to vector<1x256xf32>
    %158 = arith.truncf %157 : vector<1x256xf32> to vector<1x256xbf16>
    %cst_134 = arith.constant dense<0.000000e+00> : vector<1x32xf32>
    %159 = tpu.matmul %158, %156, %cst_134 {dimension_numbers = #tpu.dot_dimension_numbers<[1], [0], [0], [1], [0, 0, 1, 1], [], []>} : vector<1x256xbf16>, vector<256x32xbf16>, vector<1x32xf32> -> vector<1x32xf32>
    %160 = arith.addf %150, %159 : vector<1x32xf32>
    %161 = vector.extract_strided_slice %122 {offsets = [3, 256], sizes = [1, 256], strides = [1, 1]} : vector<8x512xf32> to vector<1x256xf32>
    %162 = arith.truncf %161 : vector<1x256xf32> to vector<1x256xbf16>
    %cst_135 = arith.constant dense<0.000000e+00> : vector<1x32xf32>
    %163 = tpu.matmul %162, %156, %cst_135 {dimension_numbers = #tpu.dot_dimension_numbers<[1], [0], [0], [1], [0, 0, 1, 1], [], []>} : vector<1x256xbf16>, vector<256x32xbf16>, vector<1x32xf32> -> vector<1x32xf32>
    %164 = arith.addf %154, %163 : vector<1x32xf32>
    %c4_136 = arith.constant 4 : index
    %c0_137 = arith.constant 0 : index
    %c0_138 = arith.constant 0 : index
    %165 = vector.load %arg6[%c4_136, %c0_137, %c0_138] : memref<8x256x32xbf16, #tpu.memory_space<vmem>>, vector<1x256x32xbf16>
    %166 = vector.shape_cast %165 : vector<1x256x32xbf16> to vector<256x32xbf16>
    %167 = vector.extract_strided_slice %122 {offsets = [4, 0], sizes = [1, 256], strides = [1, 1]} : vector<8x512xf32> to vector<1x256xf32>
    %168 = arith.truncf %167 : vector<1x256xf32> to vector<1x256xbf16>
    %cst_139 = arith.constant dense<0.000000e+00> : vector<1x32xf32>
    %169 = tpu.matmul %168, %166, %cst_139 {dimension_numbers = #tpu.dot_dimension_numbers<[1], [0], [0], [1], [0, 0, 1, 1], [], []>} : vector<1x256xbf16>, vector<256x32xbf16>, vector<1x32xf32> -> vector<1x32xf32>
    %170 = arith.addf %160, %169 : vector<1x32xf32>
    %171 = vector.extract_strided_slice %122 {offsets = [4, 256], sizes = [1, 256], strides = [1, 1]} : vector<8x512xf32> to vector<1x256xf32>
    %172 = arith.truncf %171 : vector<1x256xf32> to vector<1x256xbf16>
    %cst_140 = arith.constant dense<0.000000e+00> : vector<1x32xf32>
    %173 = tpu.matmul %172, %166, %cst_140 {dimension_numbers = #tpu.dot_dimension_numbers<[1], [0], [0], [1], [0, 0, 1, 1], [], []>} : vector<1x256xbf16>, vector<256x32xbf16>, vector<1x32xf32> -> vector<1x32xf32>
    %174 = arith.addf %164, %173 : vector<1x32xf32>
    %c5_141 = arith.constant 5 : index
    %c0_142 = arith.constant 0 : index
    %c0_143 = arith.constant 0 : index
    %175 = vector.load %arg6[%c5_141, %c0_142, %c0_143] : memref<8x256x32xbf16, #tpu.memory_space<vmem>>, vector<1x256x32xbf16>
    %176 = vector.shape_cast %175 : vector<1x256x32xbf16> to vector<256x32xbf16>
    %177 = vector.extract_strided_slice %122 {offsets = [5, 0], sizes = [1, 256], strides = [1, 1]} : vector<8x512xf32> to vector<1x256xf32>
    %178 = arith.truncf %177 : vector<1x256xf32> to vector<1x256xbf16>
    %cst_144 = arith.constant dense<0.000000e+00> : vector<1x32xf32>
    %179 = tpu.matmul %178, %176, %cst_144 {dimension_numbers = #tpu.dot_dimension_numbers<[1], [0], [0], [1], [0, 0, 1, 1], [], []>} : vector<1x256xbf16>, vector<256x32xbf16>, vector<1x32xf32> -> vector<1x32xf32>
    %180 = arith.addf %170, %179 : vector<1x32xf32>
    %181 = vector.extract_strided_slice %122 {offsets = [5, 256], sizes = [1, 256], strides = [1, 1]} : vector<8x512xf32> to vector<1x256xf32>
    %182 = arith.truncf %181 : vector<1x256xf32> to vector<1x256xbf16>
    %cst_145 = arith.constant dense<0.000000e+00> : vector<1x32xf32>
    %183 = tpu.matmul %182, %176, %cst_145 {dimension_numbers = #tpu.dot_dimension_numbers<[1], [0], [0], [1], [0, 0, 1, 1], [], []>} : vector<1x256xbf16>, vector<256x32xbf16>, vector<1x32xf32> -> vector<1x32xf32>
    %184 = arith.addf %174, %183 : vector<1x32xf32>
    %c6_146 = arith.constant 6 : index
    %c0_147 = arith.constant 0 : index
    %c0_148 = arith.constant 0 : index
    %185 = vector.load %arg6[%c6_146, %c0_147, %c0_148] : memref<8x256x32xbf16, #tpu.memory_space<vmem>>, vector<1x256x32xbf16>
    %186 = vector.shape_cast %185 : vector<1x256x32xbf16> to vector<256x32xbf16>
    %187 = vector.extract_strided_slice %122 {offsets = [6, 0], sizes = [1, 256], strides = [1, 1]} : vector<8x512xf32> to vector<1x256xf32>
    %188 = arith.truncf %187 : vector<1x256xf32> to vector<1x256xbf16>
    %cst_149 = arith.constant dense<0.000000e+00> : vector<1x32xf32>
    %189 = tpu.matmul %188, %186, %cst_149 {dimension_numbers = #tpu.dot_dimension_numbers<[1], [0], [0], [1], [0, 0, 1, 1], [], []>} : vector<1x256xbf16>, vector<256x32xbf16>, vector<1x32xf32> -> vector<1x32xf32>
    %190 = arith.addf %180, %189 : vector<1x32xf32>
    %191 = vector.extract_strided_slice %122 {offsets = [6, 256], sizes = [1, 256], strides = [1, 1]} : vector<8x512xf32> to vector<1x256xf32>
    %192 = arith.truncf %191 : vector<1x256xf32> to vector<1x256xbf16>
    %cst_150 = arith.constant dense<0.000000e+00> : vector<1x32xf32>
    %193 = tpu.matmul %192, %186, %cst_150 {dimension_numbers = #tpu.dot_dimension_numbers<[1], [0], [0], [1], [0, 0, 1, 1], [], []>} : vector<1x256xbf16>, vector<256x32xbf16>, vector<1x32xf32> -> vector<1x32xf32>
    %194 = arith.addf %184, %193 : vector<1x32xf32>
    %c7_151 = arith.constant 7 : index
    %c0_152 = arith.constant 0 : index
    %c0_153 = arith.constant 0 : index
    %195 = vector.load %arg6[%c7_151, %c0_152, %c0_153] : memref<8x256x32xbf16, #tpu.memory_space<vmem>>, vector<1x256x32xbf16>
    %196 = vector.shape_cast %195 : vector<1x256x32xbf16> to vector<256x32xbf16>
    %197 = vector.extract_strided_slice %122 {offsets = [7, 0], sizes = [1, 256], strides = [1, 1]} : vector<8x512xf32> to vector<1x256xf32>
    %198 = arith.truncf %197 : vector<1x256xf32> to vector<1x256xbf16>
    %cst_154 = arith.constant dense<0.000000e+00> : vector<1x32xf32>
    %199 = tpu.matmul %198, %196, %cst_154 {dimension_numbers = #tpu.dot_dimension_numbers<[1], [0], [0], [1], [0, 0, 1, 1], [], []>} : vector<1x256xbf16>, vector<256x32xbf16>, vector<1x32xf32> -> vector<1x32xf32>
    %200 = arith.addf %190, %199 : vector<1x32xf32>
    %201 = vector.extract_strided_slice %122 {offsets = [7, 256], sizes = [1, 256], strides = [1, 1]} : vector<8x512xf32> to vector<1x256xf32>
    %202 = arith.truncf %201 : vector<1x256xf32> to vector<1x256xbf16>
    %cst_155 = arith.constant dense<0.000000e+00> : vector<1x32xf32>
    %203 = tpu.matmul %202, %196, %cst_155 {dimension_numbers = #tpu.dot_dimension_numbers<[1], [0], [0], [1], [0, 0, 1, 1], [], []>} : vector<1x256xbf16>, vector<256x32xbf16>, vector<1x32xf32> -> vector<1x32xf32>
    %204 = arith.addf %194, %203 : vector<1x32xf32>
    %c0_156 = arith.constant 0 : index
    %c0_157 = arith.constant 0 : index
    %205 = vector.load %arg8[%c0_156, %c0_157] : memref<32x32xbf16, #tpu.memory_space<vmem>>, vector<32x32xbf16>
    %c0_158 = arith.constant 0 : index
    %c0_159 = arith.constant 0 : index
    %206 = vector.load %arg9[%c0_158, %c0_159] : memref<1x32xf32, #tpu.memory_space<vmem>>, vector<1x32xf32>
    %c0_160 = arith.constant 0 : index
    %c0_161 = arith.constant 0 : index
    %207 = vector.load %arg10[%c0_160, %c0_161] : memref<32x8xbf16, #tpu.memory_space<vmem>>, vector<32x8xbf16>
    %c0_162 = arith.constant 0 : index
    %c0_163 = arith.constant 0 : index
    %208 = vector.load %arg11[%c0_162, %c0_163] : memref<1x8xf32, #tpu.memory_space<vmem>>, vector<1x8xf32>
    %cst_164 = arith.constant 0.000000e+00 : f32
    %209 = vector.broadcast %cst_164 : f32 to vector<1x32xf32>
    %210 = arith.maximumf %200, %209 : vector<1x32xf32>
    %211 = arith.truncf %210 : vector<1x32xf32> to vector<1x32xbf16>
    %cst_165 = arith.constant dense<0.000000e+00> : vector<1x32xf32>
    %212 = tpu.matmul %211, %205, %cst_165 {dimension_numbers = #tpu.dot_dimension_numbers<[1], [0], [0], [1], [0, 0, 1, 1], [], []>} : vector<1x32xbf16>, vector<32x32xbf16>, vector<1x32xf32> -> vector<1x32xf32>
    %213 = arith.addf %212, %206 : vector<1x32xf32>
    %cst_166 = arith.constant 0.000000e+00 : f32
    %214 = vector.broadcast %cst_166 : f32 to vector<1x32xf32>
    %215 = arith.maximumf %213, %214 : vector<1x32xf32>
    %216 = arith.truncf %215 : vector<1x32xf32> to vector<1x32xbf16>
    %cst_167 = arith.constant dense<0.000000e+00> : vector<1x8xf32>
    %217 = tpu.matmul %216, %207, %cst_167 {dimension_numbers = #tpu.dot_dimension_numbers<[1], [0], [0], [1], [0, 0, 1, 1], [], []>} : vector<1x32xbf16>, vector<32x8xbf16>, vector<1x8xf32> -> vector<1x8xf32>
    %218 = arith.addf %217, %208 : vector<1x8xf32>
    %c0_168 = arith.constant 0 : index
    %c0_169 = arith.constant 0 : index
    %219 = vector.load %arg12[%c0_168, %c0_169] : memref<2x8xf32, #tpu.memory_space<vmem>>, vector<1x8xf32>
    tpu.vector_store %arg12[%c0_168, %c0_169], %218 {strides = array<i32>} : memref<2x8xf32, #tpu.memory_space<vmem>>, vector<1x8xf32>,
    %cst_170 = arith.constant 0.000000e+00 : f32
    %220 = vector.broadcast %cst_170 : f32 to vector<1x32xf32>
    %221 = arith.maximumf %204, %220 : vector<1x32xf32>
    %222 = arith.truncf %221 : vector<1x32xf32> to vector<1x32xbf16>
    %cst_171 = arith.constant dense<0.000000e+00> : vector<1x32xf32>
    %223 = tpu.matmul %222, %205, %cst_171 {dimension_numbers = #tpu.dot_dimension_numbers<[1], [0], [0], [1], [0, 0, 1, 1], [], []>} : vector<1x32xbf16>, vector<32x32xbf16>, vector<1x32xf32> -> vector<1x32xf32>
    %224 = arith.addf %223, %206 : vector<1x32xf32>
    %cst_172 = arith.constant 0.000000e+00 : f32
    %225 = vector.broadcast %cst_172 : f32 to vector<1x32xf32>
    %226 = arith.maximumf %224, %225 : vector<1x32xf32>
    %227 = arith.truncf %226 : vector<1x32xf32> to vector<1x32xbf16>
    %cst_173 = arith.constant dense<0.000000e+00> : vector<1x8xf32>
    %228 = tpu.matmul %227, %207, %cst_173 {dimension_numbers = #tpu.dot_dimension_numbers<[1], [0], [0], [1], [0, 0, 1, 1], [], []>} : vector<1x32xbf16>, vector<32x8xbf16>, vector<1x8xf32> -> vector<1x8xf32>
    %229 = arith.addf %228, %208 : vector<1x8xf32>
    %c1_174 = arith.constant 1 : index
    %c0_175 = arith.constant 0 : index
    %230 = vector.load %arg12[%c1_174, %c0_175] : memref<2x8xf32, #tpu.memory_space<vmem>>, vector<1x8xf32>
    tpu.vector_store %arg12[%c1_174, %c0_175], %229 {strides = array<i32>} : memref<2x8xf32, #tpu.memory_space<vmem>>, vector<1x8xf32>,
    return
  }
}

</mosaic_0001>

<llo_original>
// kernel: feed_forward_nn.1
$region0: #{feed_forward_nn.1}
  #allocation0 [shape = 'u32[]', space=smem, size = 0x4, offset = 0x4, fixed_abs, tag = 'smem constant byte address 0x4 - core index']
  #allocation1 [shape = 'u32[144,128]{1,0:T(1,128)}', space=vmem, size = 0x12000, scoped, tag = 'internal scratch']
  #allocation2 [shape = 'f32[4,768]{1,0:T(4,128)}', space=vmem, size = 0x3000, scoped, tag = 'scratch operand']
  %s0 = inlined_call_operand.vmem [shape: f32[2,4,256], index: 0, kind: input, shape index: {}]
  %s1 = inlined_call_operand.vmem [shape: f32[1,256], index: 1, kind: input, shape index: {}]
  %s2 = inlined_call_operand.vmem [shape: f32[9,4,4], index: 2, kind: input, shape index: {}]
  %s3 = inlined_call_operand.vmem [shape: f32[4,1], index: 3, kind: input, shape index: {}]
  %s4 = inlined_call_operand.vmem [shape: f32[9,8,4], index: 4, kind: input, shape index: {}]
  %s5 = inlined_call_operand.vmem [shape: f32[8,1], index: 5, kind: input, shape index: {}]
  %s6 = inlined_call_operand.vmem [shape: bf16[8,256,32], index: 6, kind: input, shape index: {}]
  %s7 = inlined_call_operand.vmem [shape: f32[1,32], index: 7, kind: input, shape index: {}]
  %s8 = inlined_call_operand.vmem [shape: bf16[32,32], index: 8, kind: input, shape index: {}]
  %s9 = inlined_call_operand.vmem [shape: f32[1,32], index: 9, kind: input, shape index: {}]
  %s10 = inlined_call_operand.vmem [shape: bf16[32,8], index: 10, kind: input, shape index: {}]
  %s11 = inlined_call_operand.vmem [shape: f32[1,8], index: 11, kind: input, shape index: {}]
  %s12 = inlined_call_operand.hbm [shape: f32[2,8], index: 12, kind: output, shape index: {}]
  %s13 = sld [smem:[#allocation0]]
  $region58: #{feed_forward_nn.1} parent=0
    _
  %s15 = ssub.s32 1, %s13
  %s16 = scalar_select 0, %s15, %s13
  $region1: #{feed_forward_nn.1} parent=0
    #allocation3 [shape = 'u8[1024]{0}', space=vmem, size = 0x400, scoped, tag = 'output window, operand 0, single buffered']
    #allocation4 [shape = 's32[1]{0}', space=sflag, size = 0x4, scoped, tag = 'scoped memory for feed_forward_nn.1']
    %17 = vsyncpa [#allocation4], 0
    // Predicated region
    $region2: #{feed_forward_nn.1} parent=1 // pred_check
      _
    $region3: #{feed_forward_nn.1} parent=1 // pred_check_branch
      %19 = sbr.rel (0) target = $region5
    $region4: #{feed_forward_nn.1} parent=1 // pred_region
      _
    $region5: #{feed_forward_nn.1} parent=1 // pred_fallthru
      _
    // Predicated region
    $region6: #{feed_forward_nn.1} parent=1 // pred_check
      _
    $region7: #{feed_forward_nn.1} parent=1 // pred_check_branch
      %21 = sbr.rel (0) target = $region9
    $region8: #{feed_forward_nn.1} parent=1 // pred_region
      _
    $region9: #{feed_forward_nn.1} parent=1 // pred_fallthru
      _
    // Predicated region
    $region10: #{feed_forward_nn.1} parent=1 // pred_check
      _
    $region11: #{feed_forward_nn.1} parent=1 // pred_check_branch
      %23 = sbr.rel (0) target = $region13
    $region12: #{feed_forward_nn.1} parent=1 // pred_region
      _
    $region13: #{feed_forward_nn.1} parent=1 // pred_fallthru
      _
    // Predicated region
    $region14: #{feed_forward_nn.1} parent=1 // pred_check
      _
    $region15: #{feed_forward_nn.1} parent=1 // pred_check_branch
      %25 = sbr.rel (0) target = $region17
    $region16: #{feed_forward_nn.1} parent=1 // pred_region
      _
    $region17: #{feed_forward_nn.1} parent=1 // pred_fallthru
      _
    // Predicated region
    $region18: #{feed_forward_nn.1} parent=1 // pred_check
      _
    $region19: #{feed_forward_nn.1} parent=1 // pred_check_branch
      %27 = sbr.rel (0) target = $region21
    $region20: #{feed_forward_nn.1} parent=1 // pred_region
      _
    $region21: #{feed_forward_nn.1} parent=1 // pred_fallthru
      _
    // Predicated region
    $region22: #{feed_forward_nn.1} parent=1 // pred_check
      _
    $region23: #{feed_forward_nn.1} parent=1 // pred_check_branch
      %29 = sbr.rel (0) target = $region25
    $region24: #{feed_forward_nn.1} parent=1 // pred_region
      _
    $region25: #{feed_forward_nn.1} parent=1 // pred_fallthru
      _
    // Predicated region
    $region26: #{feed_forward_nn.1} parent=1 // pred_check
      _
    $region27: #{feed_forward_nn.1} parent=1 // pred_check_branch
      %31 = sbr.rel (0) target = $region29
    $region28: #{feed_forward_nn.1} parent=1 // pred_region
      _
    $region29: #{feed_forward_nn.1} parent=1 // pred_fallthru
      _
    // Predicated region
    $region30: #{feed_forward_nn.1} parent=1 // pred_check
      _
    $region31: #{feed_forward_nn.1} parent=1 // pred_check_branch
      %33 = sbr.rel (0) target = $region33
    $region32: #{feed_forward_nn.1} parent=1 // pred_region
      _
    $region33: #{feed_forward_nn.1} parent=1 // pred_fallthru
      _
    // Predicated region
    $region34: #{feed_forward_nn.1} parent=1 // pred_check
      _
    $region35: #{feed_forward_nn.1} parent=1 // pred_check_branch
      %35 = sbr.rel (0) target = $region37
    $region36: #{feed_forward_nn.1} parent=1 // pred_region
      _
    $region37: #{feed_forward_nn.1} parent=1 // pred_fallthru
      _
    // Predicated region
    $region38: #{feed_forward_nn.1} parent=1 // pred_check
      _
    $region39: #{feed_forward_nn.1} parent=1 // pred_check_branch
      %37 = sbr.rel (0) target = $region41
    $region40: #{feed_forward_nn.1} parent=1 // pred_region
      _
    $region41: #{feed_forward_nn.1} parent=1 // pred_fallthru
      _
    // Predicated region
    $region42: #{feed_forward_nn.1} parent=1 // pred_check
      _
    $region43: #{feed_forward_nn.1} parent=1 // pred_check_branch
      %39 = sbr.rel (0) target = $region45
    $region44: #{feed_forward_nn.1} parent=1 // pred_region
      _
    $region45: #{feed_forward_nn.1} parent=1 // pred_fallthru
      _
    // Predicated region
    $region46: #{feed_forward_nn.1} parent=1 // pred_check
      _
    $region47: #{feed_forward_nn.1} parent=1 // pred_check_branch
      %41 = sbr.rel (0) target = $region49
    $region48: #{feed_forward_nn.1} parent=1 // pred_region
      _
    $region49: #{feed_forward_nn.1} parent=1 // pred_fallthru
      _
    %v43 = vld [vmem:[%s0] sm:$0xff]
    %44 = vst [vmem:[#allocation2] sm:$0xff] %v43
    %s45 = scalar_lea.vmem %s0, 8
    %v46 = vld [vmem:[%s45] sm:$0xff]
    %47 = vst [vmem:[#allocation2 + $0x8] sm:$0xff] %v46
    %48 = vst [vmem:[#allocation2 + $0x10] sm:$0xff] 0.0
    %v49 = vld [vmem:[#allocation2] sm:$0xff]
    %v50 = vld [vmem:[#allocation2 + $0x8] sm:$0xff]
    %v51 = vld [vmem:[%s2] sm:$0xf]
    %v52 = vld [vmem:[#allocation2 + $0x10] sm:$0xf]
    %s53 = scalar_lea.vmem %s2, 4
    %v54 = vld [vmem:[%s53] sm:$0xf]
    %v58 = vcombine.high %v49, %v49
    %v59 = vcombine.high %v50, %v50
    %60 = vrot.lane.b32.xlu0 %v49, 127
    %v61 = vpop.permute.xlu0 %60
    %62 = vrot.lane.b32.xlu0 %v58, 127
    %v63 = vpop.permute.xlu0 %62
    %64 = vrot.lane.b32.xlu0 %v50, 127
    %v65 = vpop.permute.xlu0 %64
    %66 = vrot.lane.b32.xlu0 %v59, 127
    %v67 = vpop.permute.xlu0 %66
    %68 = vrot.lane.b32.xlu0 %v52, 127
    %v69 = vpop.permute.xlu0 %68
    %vm70 = vcmask 1039360
    %v71 = vsel %vm70, %v61, %v63
    %v72 = vsel %vm70, %v63, %v65
    %v73 = vsel %vm70, %v65, %v67
    %v74 = vsel %vm70, %v67, %v69
    %vm75 = vcmask 31744
    %v77 = vsel %vm75, %v54, 0
    %vm79 = vcmask 1043456
    %v80 = vsel %vm79, %v71, 0
    %v82 = vsel %vm79, %v72, 0
    %v84 = vsel %vm79, %v73, 0
    %v86 = vsel %vm79, %v74, 0
    %88 = vmatprep.subr.mxu0 0.0
    %89 = vmatpush1.msra.mxu0 0.0
    %90 = vmatprep.subr.mxu0 0.0
    %91 = vmatpush1.msra.mxu0 0.0
    %92 = vmatprep.subr.mxu0 0.0
    %93 = vmatpush1.msra.mxu0 0.0
    %94 = vmatprep.subr.mxu0 0.0
    %95 = vmatpush1.msra.mxu0 0.0
    %96 = vmatprep.subr.mxu0 0.0
    %97 = vmatpush1.msra.mxu0 0.0
    %98 = vmatprep.subr.mxu0 0.0
    %99 = vmatpush1.msra.mxu0 0.0
    %100 = vmatprep.subr.mxu0 0.0
    %101 = vmatpush1.msra.mxu0 0.0
    %102 = vmatprep.subr.mxu0 0.0
    %103 = vmatpush1.msra.mxu0 0.0
    %104 = vmatprep.subr.mxu0 0.0
    %105 = vmatpush1.msra.mxu0 0.0
    %106 = vmatprep.subr.mxu0 0.0
    %107 = vmatpush1.msra.mxu0 0.0
    %108 = vmatprep.subr.mxu0 0.0
    %109 = vmatpush1.msra.mxu0 0.0
    %110 = vmatprep.subr.mxu0 0.0
    %111 = vmatpush1.msra.mxu0 0.0
    %112 = vmatprep.subr.mxu0 0.0
    %113 = vmatpush1.msra.mxu0 0.0
    %114 = vmatprep.subr.mxu0 0.0
    %115 = vmatpush1.msra.mxu0 0.0
    %116 = vmatprep.subr.mxu0 0.0
    %117 = vmatpush1.msra.mxu0 0.0
    %118 = vmatprep.subr.mxu0 %v82
    %119 = vmatpush1.msra.mxu0 %v80
    %120 = vmatprep.subr.mxu0 0.0
    %121 = vmatpush2.msra.mxu0 0.0
    %122 = vmatprep.subr.mxu0 0.0
    %123 = vmatpush2.msra.mxu0 0.0
    %124 = vmatprep.subr.mxu0 0.0
    %125 = vmatpush2.msra.mxu0 0.0
    %126 = vmatprep.subr.mxu0 0.0
    %127 = vmatpush2.msra.mxu0 0.0
    %128 = vmatprep.subr.mxu0 0.0
    %129 = vmatpush2.msra.mxu0 0.0
    %130 = vmatprep.subr.mxu0 0.0
    %131 = vmatpush2.msra.mxu0 0.0
    %132 = vmatprep.subr.mxu0 0.0
    %133 = vmatpush2.msra.mxu0 0.0
    %134 = vmatprep.subr.mxu0 0.0
    %135 = vmatpush2.msra.mxu0 0.0
    %136 = vmatprep.subr.mxu0 0.0
    %137 = vmatpush2.msra.mxu0 0.0
    %138 = vmatprep.subr.mxu0 0.0
    %139 = vmatpush2.msra.mxu0 0.0
    %140 = vmatprep.subr.mxu0 0.0
    %141 = vmatpush2.msra.mxu0 0.0
    %142 = vmatprep.subr.mxu0 0.0
    %143 = vmatpush2.msra.mxu0 0.0
    %144 = vmatprep.subr.mxu0 0.0
    %145 = vmatpush2.msra.mxu0 0.0
    %146 = vmatprep.subr.mxu0 0.0
    %147 = vmatpush2.msra.mxu0 0.0
    %148 = vmatprep.subr.mxu0 0.0
    %149 = vmatpush2.msra.mxu0 0.0
    %150 = vmatprep.subr.mxu0 0.0
    %151 = vmatpush2.msra.mxu0 0.0
    %152 = vmatprep.mubr.f32.mxu0 0.0
    %153 = vmatmul.mubr.f32.gmra.mxu0 %v77
    %v154 = vpop.f32.mrf.mxu0
    %v155 = vadd.f32 0.0, %v154
    %v156 = vpop.f32.mrf.mxu0
    %v157 = vadd.f32 0.0, %v156
    %158 = vdwg.mxu0
    %159 = vmatprep.subr.mxu0 0.0
    %160 = vmatpush1.msra.mxu0 0.0
    %161 = vmatprep.subr.mxu0 0.0
    %162 = vmatpush1.msra.mxu0 0.0
    %163 = vmatprep.subr.mxu0 0.0
    %164 = vmatpush1.msra.mxu0 0.0
    %165 = vmatprep.subr.mxu0 0.0
    %166 = vmatpush1.msra.mxu0 0.0
    %167 = vmatprep.subr.mxu0 0.0
    %168 = vmatpush1.msra.mxu0 0.0
    %169 = vmatprep.subr.mxu0 0.0
    %170 = vmatpush1.msra.mxu0 0.0
    %171 = vmatprep.subr.mxu0 0.0
    %172 = vmatpush1.msra.mxu0 0.0
    %173 = vmatprep.subr.mxu0 0.0
    %174 = vmatpush1.msra.mxu0 0.0
    %175 = vmatprep.subr.mxu0 0.0
    %176 = vmatpush1.msra.mxu0 0.0
    %177 = vmatprep.subr.mxu0 0.0
    %178 = vmatpush1.msra.mxu0 0.0
    %179 = vmatprep.subr.mxu0 0.0
    %180 = vmatpush1.msra.mxu0 0.0
    %181 = vmatprep.subr.mxu0 0.0
    %182 = vmatpush1.msra.mxu0 0.0
    %183 = vmatprep.subr.mxu0 0.0
    %184 = vmatpush1.msra.mxu0 0.0
    %185 = vmatprep.subr.mxu0 0.0
    %186 = vmatpush1.msra.mxu0 0.0
    %187 = vmatprep.subr.mxu0 0.0
    %188 = vmatpush1.msra.mxu0 0.0
    %189 = vmatprep.subr.mxu0 %v86
    %190 = vmatpush1.msra.mxu0 %v84
    %191 = vmatprep.subr.mxu0 0.0
    %192 = vmatpush2.msra.mxu0 0.0
    %193 = vmatprep.subr.mxu0 0.0
    %194 = vmatpush2.msra.mxu0 0.0
    %195 = vmatprep.subr.mxu0 0.0
    %196 = vmatpush2.msra.mxu0 0.0
    %197 = vmatprep.subr.mxu0 0.0
    %198 = vmatpush2.msra.mxu0 0.0
    %199 = vmatprep.subr.mxu0 0.0
    %200 = vmatpush2.msra.mxu0 0.0
    %201 = vmatprep.subr.mxu0 0.0
    %202 = vmatpush2.msra.mxu0 0.0
    %203 = vmatprep.subr.mxu0 0.0
    %204 = vmatpush2.msra.mxu0 0.0
    %205 = vmatprep.subr.mxu0 0.0
    %206 = vmatpush2.msra.mxu0 0.0
    %207 = vmatprep.subr.mxu0 0.0
    %208 = vmatpush2.msra.mxu0 0.0
    %209 = vmatprep.subr.mxu0 0.0
    %210 = vmatpush2.msra.mxu0 0.0
    %211 = vmatprep.subr.mxu0 0.0
    %212 = vmatpush2.msra.mxu0 0.0
    %213 = vmatprep.subr.mxu0 0.0
    %214 = vmatpush2.msra.mxu0 0.0
    %215 = vmatprep.subr.mxu0 0.0
    %216 = vmatpush2.msra.mxu0 0.0
    %217 = vmatprep.subr.mxu0 0.0
    %218 = vmatpush2.msra.mxu0 0.0
    %219 = vmatprep.subr.mxu0 0.0
    %220 = vmatpush2.msra.mxu0 0.0
    %221 = vmatprep.subr.mxu0 0.0
    %222 = vmatpush2.msra.mxu0 0.0
    %223 = vmatprep.mubr.f32.mxu0 0.0
    %224 = vmatmul.mubr.f32.gmra.mxu0 %v77
    %v225 = vpop.f32.mrf.mxu0
    %v226 = vadd.f32 0.0, %v225
    %v227 = vpop.f32.mrf.mxu0
    %v228 = vadd.f32 0.0, %v227
    %229 = vdwg.mxu0
    %v231 = vsel %vm75, %v51, 0
    %v233 = vsel %vm79, %v49, 0
    %v235 = vsel %vm79, %v58, 0
    %v237 = vsel %vm79, %v50, 0
    %v239 = vsel %vm79, %v59, 0
    %241 = vmatprep.subr.mxu0 0.0
    %242 = vmatpush1.msra.mxu0 0.0
    %243 = vmatprep.subr.mxu0 0.0
    %244 = vmatpush1.msra.mxu0 0.0
    %245 = vmatprep.subr.mxu0 0.0
    %246 = vmatpush1.msra.mxu0 0.0
    %247 = vmatprep.subr.mxu0 0.0
    %248 = vmatpush1.msra.mxu0 0.0
    %249 = vmatprep.subr.mxu0 0.0
    %250 = vmatpush1.msra.mxu0 0.0
    %251 = vmatprep.subr.mxu0 0.0
    %252 = vmatpush1.msra.mxu0 0.0
    %253 = vmatprep.subr.mxu0 0.0
    %254 = vmatpush1.msra.mxu0 0.0
    %255 = vmatprep.subr.mxu0 0.0
    %256 = vmatpush1.msra.mxu0 0.0
    %257 = vmatprep.subr.mxu0 0.0
    %258 = vmatpush1.msra.mxu0 0.0
    %259 = vmatprep.subr.mxu0 0.0
    %260 = vmatpush1.msra.mxu0 0.0
    %261 = vmatprep.subr.mxu0 0.0
    %262 = vmatpush1.msra.mxu0 0.0
    %263 = vmatprep.subr.mxu0 0.0
    %264 = vmatpush1.msra.mxu0 0.0
    %265 = vmatprep.subr.mxu0 0.0
    %266 = vmatpush1.msra.mxu0 0.0
    %267 = vmatprep.subr.mxu0 0.0
    %268 = vmatpush1.msra.mxu0 0.0
    %269 = vmatprep.subr.mxu0 0.0
    %270 = vmatpush1.msra.mxu0 0.0
    %271 = vmatprep.subr.mxu0 %v235
    %272 = vmatpush1.msra.mxu0 %v233
    %273 = vmatprep.subr.mxu0 0.0
    %274 = vmatpush2.msra.mxu0 0.0
    %275 = vmatprep.subr.mxu0 0.0
    %276 = vmatpush2.msra.mxu0 0.0
    %277 = vmatprep.subr.mxu0 0.0
    %278 = vmatpush2.msra.mxu0 0.0
    %279 = vmatprep.subr.mxu0 0.0
    %280 = vmatpush2.msra.mxu0 0.0
    %281 = vmatprep.subr.mxu0 0.0
    %282 = vmatpush2.msra.mxu0 0.0
    %283 = vmatprep.subr.mxu0 0.0
    %284 = vmatpush2.msra.mxu0 0.0
    %285 = vmatprep.subr.mxu0 0.0
    %286 = vmatpush2.msra.mxu0 0.0
    %287 = vmatprep.subr.mxu0 0.0
    %288 = vmatpush2.msra.mxu0 0.0
    %289 = vmatprep.subr.mxu0 0.0
    %290 = vmatpush2.msra.mxu0 0.0
    %291 = vmatprep.subr.mxu0 0.0
    %292 = vmatpush2.msra.mxu0 0.0
    %293 = vmatprep.subr.mxu0 0.0
    %294 = vmatpush2.msra.mxu0 0.0
    %295 = vmatprep.subr.mxu0 0.0
    %296 = vmatpush2.msra.mxu0 0.0
    %297 = vmatprep.subr.mxu0 0.0
    %298 = vmatpush2.msra.mxu0 0.0
    %299 = vmatprep.subr.mxu0 0.0
    %300 = vmatpush2.msra.mxu0 0.0
    %301 = vmatprep.subr.mxu0 0.0
    %302 = vmatpush2.msra.mxu0 0.0
    %303 = vmatprep.subr.mxu0 0.0
    %304 = vmatpush2.msra.mxu0 0.0
    %305 = vmatprep.mubr.f32.mxu0 0.0
    %306 = vmatmul.mubr.f32.gmra.mxu0 %v231
    %v307 = vpop.f32.mrf.mxu0
    %v308 = vadd.f32 %v155, %v307
    %v309 = vpop.f32.mrf.mxu0
    %v310 = vadd.f32 %v157, %v309
    %311 = vdwg.mxu0
    %312 = vmatprep.subr.mxu0 0.0
    %313 = vmatpush1.msra.mxu0 0.0
    %314 = vmatprep.subr.mxu0 0.0
    %315 = vmatpush1.msra.mxu0 0.0
    %316 = vmatprep.subr.mxu0 0.0
    %317 = vmatpush1.msra.mxu0 0.0
    %318 = vmatprep.subr.mxu0 0.0
    %319 = vmatpush1.msra.mxu0 0.0
    %320 = vmatprep.subr.mxu0 0.0
    %321 = vmatpush1.msra.mxu0 0.0
    %322 = vmatprep.subr.mxu0 0.0
    %323 = vmatpush1.msra.mxu0 0.0
    %324 = vmatprep.subr.mxu0 0.0
    %325 = vmatpush1.msra.mxu0 0.0
    %326 = vmatprep.subr.mxu0 0.0
    %327 = vmatpush1.msra.mxu0 0.0
    %328 = vmatprep.subr.mxu0 0.0
    %329 = vmatpush1.msra.mxu0 0.0
    %330 = vmatprep.subr.mxu0 0.0
    %331 = vmatpush1.msra.mxu0 0.0
    %332 = vmatprep.subr.mxu0 0.0
    %333 = vmatpush1.msra.mxu0 0.0
    %334 = vmatprep.subr.mxu0 0.0
    %335 = vmatpush1.msra.mxu0 0.0
    %336 = vmatprep.subr.mxu0 0.0
    %337 = vmatpush1.msra.mxu0 0.0
    %338 = vmatprep.subr.mxu0 0.0
    %339 = vmatpush1.msra.mxu0 0.0
    %340 = vmatprep.subr.mxu0 0.0
    %341 = vmatpush1.msra.mxu0 0.0
    %342 = vmatprep.subr.mxu0 %v239
    %343 = vmatpush1.msra.mxu0 %v237
    %344 = vmatprep.subr.mxu0 0.0
    %345 = vmatpush2.msra.mxu0 0.0
    %346 = vmatprep.subr.mxu0 0.0
    %347 = vmatpush2.msra.mxu0 0.0
    %348 = vmatprep.subr.mxu0 0.0
    %349 = vmatpush2.msra.mxu0 0.0
    %350 = vmatprep.subr.mxu0 0.0
    %351 = vmatpush2.msra.mxu0 0.0
    %352 = vmatprep.subr.mxu0 0.0
    %353 = vmatpush2.msra.mxu0 0.0
    %354 = vmatprep.subr.mxu0 0.0
    %355 = vmatpush2.msra.mxu0 0.0
    %356 = vmatprep.subr.mxu0 0.0
    %357 = vmatpush2.msra.mxu0 0.0
    %358 = vmatprep.subr.mxu0 0.0
    %359 = vmatpush2.msra.mxu0 0.0
    %360 = vmatprep.subr.mxu0 0.0
    %361 = vmatpush2.msra.mxu0 0.0
    %362 = vmatprep.subr.mxu0 0.0
    %363 = vmatpush2.msra.mxu0 0.0
    %364 = vmatprep.subr.mxu0 0.0
    %365 = vmatpush2.msra.mxu0 0.0
    %366 = vmatprep.subr.mxu0 0.0
    %367 = vmatpush2.msra.mxu0 0.0
    %368 = vmatprep.subr.mxu0 0.0
    %369 = vmatpush2.msra.mxu0 0.0
    %370 = vmatprep.subr.mxu0 0.0
    %371 = vmatpush2.msra.mxu0 0.0
    %372 = vmatprep.subr.mxu0 0.0
    %373 = vmatpush2.msra.mxu0 0.0
    %374 = vmatprep.subr.mxu0 0.0
    %375 = vmatpush2.msra.mxu0 0.0
    %376 = vmatprep.mubr.f32.mxu0 0.0
    %377 = vmatmul.mubr.f32.gmra.mxu0 %v231
    %v378 = vpop.f32.mrf.mxu0
    %v379 = vadd.f32 %v226, %v378
    %v380 = vpop.f32.mrf.mxu0
    %v381 = vadd.f32 %v228, %v380
    %382 = vdwg.mxu0
    %v383 = vld [vmem:[#allocation2] sm:$0xff]
    %v384 = vld [vmem:[#allocation2 + $0x8] sm:$0xff]
    %v385 = vld [vmem:[#allocation2 + $0x10] sm:$0xf]
    %s386 = scalar_lea.vmem %s2, 8
    %v387 = vld [vmem:[%s386] sm:$0xf]
    %v391 = vcombine.high %v383, %v383
    %v392 = vcombine.high %v384, %v384
    %393 = vrot.lane.b32.xlu0 %v383, 126
    %v394 = vpop.permute.xlu0 %393
    %395 = vrot.lane.b32.xlu0 %v391, 126
    %v396 = vpop.permute.xlu0 %395
    %397 = vrot.lane.b32.xlu0 %v384, 126
    %v398 = vpop.permute.xlu0 %397
    %399 = vrot.lane.b32.xlu0 %v392, 126
    %v400 = vpop.permute.xlu0 %399
    %401 = vrot.lane.b32.xlu0 %v385, 126
    %v402 = vpop.permute.xlu0 %401
    %vm403 = vcmask 1031168
    %v404 = vsel %vm403, %v394, %v396
    %v405 = vsel %vm403, %v396, %v398
    %v406 = vsel %vm403, %v398, %v400
    %v407 = vsel %vm403, %v400, %v402
    %v409 = vsel %vm75, %v387, 0
    %v411 = vsel %vm79, %v404, 0
    %v413 = vsel %vm79, %v405, 0
    %v415 = vsel %vm79, %v406, 0
    %v417 = vsel %vm79, %v407, 0
    %419 = vmatprep.subr.mxu0 0.0
    %420 = vmatpush1.msra.mxu0 0.0
    %421 = vmatprep.subr.mxu0 0.0
    %422 = vmatpush1.msra.mxu0 0.0
    %423 = vmatprep.subr.mxu0 0.0
    %424 = vmatpush1.msra.mxu0 0.0
    %425 = vmatprep.subr.mxu0 0.0
    %426 = vmatpush1.msra.mxu0 0.0
    %427 = vmatprep.subr.mxu0 0.0
    %428 = vmatpush1.msra.mxu0 0.0
    %429 = vmatprep.subr.mxu0 0.0
    %430 = vmatpush1.msra.mxu0 0.0
    %431 = vmatprep.subr.mxu0 0.0
    %432 = vmatpush1.msra.mxu0 0.0
    %433 = vmatprep.subr.mxu0 0.0
    %434 = vmatpush1.msra.mxu0 0.0
    %435 = vmatprep.subr.mxu0 0.0
    %436 = vmatpush1.msra.mxu0 0.0
    %437 = vmatprep.subr.mxu0 0.0
    %438 = vmatpush1.msra.mxu0 0.0
    %439 = vmatprep.subr.mxu0 0.0
    %440 = vmatpush1.msra.mxu0 0.0
    %441 = vmatprep.subr.mxu0 0.0
    %442 = vmatpush1.msra.mxu0 0.0
    %443 = vmatprep.subr.mxu0 0.0
    %444 = vmatpush1.msra.mxu0 0.0
    %445 = vmatprep.subr.mxu0 0.0
    %446 = vmatpush1.msra.mxu0 0.0
    %447 = vmatprep.subr.mxu0 0.0
    %448 = vmatpush1.msra.mxu0 0.0
    %449 = vmatprep.subr.mxu0 %v413
    %450 = vmatpush1.msra.mxu0 %v411
    %451 = vmatprep.subr.mxu0 0.0
    %452 = vmatpush2.msra.mxu0 0.0
    %453 = vmatprep.subr.mxu0 0.0
    %454 = vmatpush2.msra.mxu0 0.0
    %455 = vmatprep.subr.mxu0 0.0
    %456 = vmatpush2.msra.mxu0 0.0
    %457 = vmatprep.subr.mxu0 0.0
    %458 = vmatpush2.msra.mxu0 0.0
    %459 = vmatprep.subr.mxu0 0.0
    %460 = vmatpush2.msra.mxu0 0.0
    %461 = vmatprep.subr.mxu0 0.0
    %462 = vmatpush2.msra.mxu0 0.0
    %463 = vmatprep.subr.mxu0 0.0
    %464 = vmatpush2.msra.mxu0 0.0
    %465 = vmatprep.subr.mxu0 0.0
    %466 = vmatpush2.msra.mxu0 0.0
    %467 = vmatprep.subr.mxu0 0.0
    %468 = vmatpush2.msra.mxu0 0.0
    %469 = vmatprep.subr.mxu0 0.0
    %470 = vmatpush2.msra.mxu0 0.0
    %471 = vmatprep.subr.mxu0 0.0
    %472 = vmatpush2.msra.mxu0 0.0
    %473 = vmatprep.subr.mxu0 0.0
    %474 = vmatpush2.msra.mxu0 0.0
    %475 = vmatprep.subr.mxu0 0.0
    %476 = vmatpush2.msra.mxu0 0.0
    %477 = vmatprep.subr.mxu0 0.0
    %478 = vmatpush2.msra.mxu0 0.0
    %479 = vmatprep.subr.mxu0 0.0
    %480 = vmatpush2.msra.mxu0 0.0
    %481 = vmatprep.subr.mxu0 0.0
    %482 = vmatpush2.msra.mxu0 0.0
    %483 = vmatprep.mubr.f32.mxu0 0.0
    %484 = vmatmul.mubr.f32.gmra.mxu0 %v409
    %v485 = vpop.f32.mrf.mxu0
    %v486 = vadd.f32 0.0, %v485
    %v487 = vpop.f32.mrf.mxu0
    %v488 = vadd.f32 0.0, %v487
    %489 = vdwg.mxu0
    %490 = vmatprep.subr.mxu0 0.0
    %491 = vmatpush1.msra.mxu0 0.0
    %492 = vmatprep.subr.mxu0 0.0
    %493 = vmatpush1.msra.mxu0 0.0
    %494 = vmatprep.subr.mxu0 0.0
    %495 = vmatpush1.msra.mxu0 0.0
    %496 = vmatprep.subr.mxu0 0.0
    %497 = vmatpush1.msra.mxu0 0.0
    %498 = vmatprep.subr.mxu0 0.0
    %499 = vmatpush1.msra.mxu0 0.0
    %500 = vmatprep.subr.mxu0 0.0
    %501 = vmatpush1.msra.mxu0 0.0
    %502 = vmatprep.subr.mxu0 0.0
    %503 = vmatpush1.msra.mxu0 0.0
    %504 = vmatprep.subr.mxu0 0.0
    %505 = vmatpush1.msra.mxu0 0.0
    %506 = vmatprep.subr.mxu0 0.0
    %507 = vmatpush1.msra.mxu0 0.0
    %508 = vmatprep.subr.mxu0 0.0
    %509 = vmatpush1.msra.mxu0 0.0
    %510 = vmatprep.subr.mxu0 0.0
    %511 = vmatpush1.msra.mxu0 0.0
    %512 = vmatprep.subr.mxu0 0.0
    %513 = vmatpush1.msra.mxu0 0.0
    %514 = vmatprep.subr.mxu0 0.0
    %515 = vmatpush1.msra.mxu0 0.0
    %516 = vmatprep.subr.mxu0 0.0
    %517 = vmatpush1.msra.mxu0 0.0
    %518 = vmatprep.subr.mxu0 0.0
    %519 = vmatpush1.msra.mxu0 0.0
    %520 = vmatprep.subr.mxu0 %v417
    %521 = vmatpush1.msra.mxu0 %v415
    %522 = vmatprep.subr.mxu0 0.0
    %523 = vmatpush2.msra.mxu0 0.0
    %524 = vmatprep.subr.mxu0 0.0
    %525 = vmatpush2.msra.mxu0 0.0
    %526 = vmatprep.subr.mxu0 0.0
    %527 = vmatpush2.msra.mxu0 0.0
    %528 = vmatprep.subr.mxu0 0.0
    %529 = vmatpush2.msra.mxu0 0.0
    %530 = vmatprep.subr.mxu0 0.0
    %531 = vmatpush2.msra.mxu0 0.0
    %532 = vmatprep.subr.mxu0 0.0
    %533 = vmatpush2.msra.mxu0 0.0
    %534 = vmatprep.subr.mxu0 0.0
    %535 = vmatpush2.msra.mxu0 0.0
    %536 = vmatprep.subr.mxu0 0.0
    %537 = vmatpush2.msra.mxu0 0.0
    %538 = vmatprep.subr.mxu0 0.0
    %539 = vmatpush2.msra.mxu0 0.0
    %540 = vmatprep.subr.mxu0 0.0
    %541 = vmatpush2.msra.mxu0 0.0
    %542 = vmatprep.subr.mxu0 0.0
    %543 = vmatpush2.msra.mxu0 0.0
    %544 = vmatprep.subr.mxu0 0.0
    %545 = vmatpush2.msra.mxu0 0.0
    %546 = vmatprep.subr.mxu0 0.0
    %547 = vmatpush2.msra.mxu0 0.0
    %548 = vmatprep.subr.mxu0 0.0
    %549 = vmatpush2.msra.mxu0 0.0
    %550 = vmatprep.subr.mxu0 0.0
    %551 = vmatpush2.msra.mxu0 0.0
    %552 = vmatprep.subr.mxu0 0.0
    %553 = vmatpush2.msra.mxu0 0.0
    %554 = vmatprep.mubr.f32.mxu0 0.0
    %555 = vmatmul.mubr.f32.gmra.mxu0 %v409
    %v556 = vpop.f32.mrf.mxu0
    %v557 = vadd.f32 0.0, %v556
    %v558 = vpop.f32.mrf.mxu0
    %v559 = vadd.f32 0.0, %v558
    %560 = vdwg.mxu0
    %v561 = vadd.f32 %v308, %v486
    %v562 = vadd.f32 %v310, %v488
    %v563 = vadd.f32 %v379, %v557
    %v564 = vadd.f32 %v381, %v559
    %v565 = vld [vmem:[#allocation2] sm:$0xff]
    %v566 = vld [vmem:[#allocation2 + $0x8] sm:$0xff]
    %v567 = vld [vmem:[#allocation2 + $0x10] sm:$0xf]
    %s568 = scalar_lea.vmem %s2, 12
    %v569 = vld [vmem:[%s568] sm:$0xf]
    %v573 = vcombine.high %v565, %v565
    %v574 = vcombine.high %v566, %v566
    %575 = vrot.lane.b32.xlu0 %v565, 112
    %v576 = vpop.permute.xlu0 %575
    %577 = vrot.lane.b32.xlu0 %v573, 112
    %v578 = vpop.permute.xlu0 %577
    %579 = vrot.lane.b32.xlu0 %v566, 112
    %v580 = vpop.permute.xlu0 %579
    %581 = vrot.lane.b32.xlu0 %v574, 112
    %v582 = vpop.permute.xlu0 %581
    %583 = vrot.lane.b32.xlu0 %v567, 112
    %v584 = vpop.permute.xlu0 %583
    %vm585 = vcmask 916480
    %v586 = vsel %vm585, %v576, %v578
    %v587 = vsel %vm585, %v578, %v580
    %v588 = vsel %vm585, %v580, %v582
    %v589 = vsel %vm585, %v582, %v584
    %v591 = vsel %vm75, %v569, 0
    %v593 = vsel %vm79, %v586, 0
    %v595 = vsel %vm79, %v587, 0
    %v597 = vsel %vm79, %v588, 0
    %v599 = vsel %vm79, %v589, 0
    %601 = vmatprep.subr.mxu0 0.0
    %602 = vmatpush1.msra.mxu0 0.0
    %603 = vmatprep.subr.mxu0 0.0
    %604 = vmatpush1.msra.mxu0 0.0
    %605 = vmatprep.subr.mxu0 0.0
    %606 = vmatpush1.msra.mxu0 0.0
    %607 = vmatprep.subr.mxu0 0.0
    %608 = vmatpush1.msra.mxu0 0.0
    %609 = vmatprep.subr.mxu0 0.0
    %610 = vmatpush1.msra.mxu0 0.0
    %611 = vmatprep.subr.mxu0 0.0
    %612 = vmatpush1.msra.mxu0 0.0
    %613 = vmatprep.subr.mxu0 0.0
    %614 = vmatpush1.msra.mxu0 0.0
    %615 = vmatprep.subr.mxu0 0.0
    %616 = vmatpush1.msra.mxu0 0.0
    %617 = vmatprep.subr.mxu0 0.0
    %618 = vmatpush1.msra.mxu0 0.0
    %619 = vmatprep.subr.mxu0 0.0
    %620 = vmatpush1.msra.mxu0 0.0
    %621 = vmatprep.subr.mxu0 0.0
    %622 = vmatpush1.msra.mxu0 0.0
    %623 = vmatprep.subr.mxu0 0.0
    %624 = vmatpush1.msra.mxu0 0.0
    %625 = vmatprep.subr.mxu0 0.0
    %626 = vmatpush1.msra.mxu0 0.0
    %627 = vmatprep.subr.mxu0 0.0
    %628 = vmatpush1.msra.mxu0 0.0
    %629 = vmatprep.subr.mxu0 0.0
    %630 = vmatpush1.msra.mxu0 0.0
    %631 = vmatprep.subr.mxu0 %v595
    %632 = vmatpush1.msra.mxu0 %v593
    %633 = vmatprep.subr.mxu0 0.0
    %634 = vmatpush2.msra.mxu0 0.0
    %635 = vmatprep.subr.mxu0 0.0
    %636 = vmatpush2.msra.mxu0 0.0
    %637 = vmatprep.subr.mxu0 0.0
    %638 = vmatpush2.msra.mxu0 0.0
    %639 = vmatprep.subr.mxu0 0.0
    %640 = vmatpush2.msra.mxu0 0.0
    %641 = vmatprep.subr.mxu0 0.0
    %642 = vmatpush2.msra.mxu0 0.0
    %643 = vmatprep.subr.mxu0 0.0
    %644 = vmatpush2.msra.mxu0 0.0
    %645 = vmatprep.subr.mxu0 0.0
    %646 = vmatpush2.msra.mxu0 0.0
    %647 = vmatprep.subr.mxu0 0.0
    %648 = vmatpush2.msra.mxu0 0.0
    %649 = vmatprep.subr.mxu0 0.0
    %650 = vmatpush2.msra.mxu0 0.0
    %651 = vmatprep.subr.mxu0 0.0
    %652 = vmatpush2.msra.mxu0 0.0
    %653 = vmatprep.subr.mxu0 0.0
    %654 = vmatpush2.msra.mxu0 0.0
    %655 = vmatprep.subr.mxu0 0.0
    %656 = vmatpush2.msra.mxu0 0.0
    %657 = vmatprep.subr.mxu0 0.0
    %658 = vmatpush2.msra.mxu0 0.0
    %659 = vmatprep.subr.mxu0 0.0
    %660 = vmatpush2.msra.mxu0 0.0
    %661 = vmatprep.subr.mxu0 0.0
    %662 = vmatpush2.msra.mxu0 0.0
    %663 = vmatprep.subr.mxu0 0.0
    %664 = vmatpush2.msra.mxu0 0.0
    %665 = vmatprep.mubr.f32.mxu0 0.0
    %666 = vmatmul.mubr.f32.gmra.mxu0 %v591
    %v667 = vpop.f32.mrf.mxu0
    %v668 = vadd.f32 0.0, %v667
    %v669 = vpop.f32.mrf.mxu0
    %v670 = vadd.f32 0.0, %v669
    %671 = vdwg.mxu0
    %672 = vmatprep.subr.mxu0 0.0
    %673 = vmatpush1.msra.mxu0 0.0
    %674 = vmatprep.subr.mxu0 0.0
    %675 = vmatpush1.msra.mxu0 0.0
    %676 = vmatprep.subr.mxu0 0.0
    %677 = vmatpush1.msra.mxu0 0.0
    %678 = vmatprep.subr.mxu0 0.0
    %679 = vmatpush1.msra.mxu0 0.0
    %680 = vmatprep.subr.mxu0 0.0
    %681 = vmatpush1.msra.mxu0 0.0
    %682 = vmatprep.subr.mxu0 0.0
    %683 = vmatpush1.msra.mxu0 0.0
    %684 = vmatprep.subr.mxu0 0.0
    %685 = vmatpush1.msra.mxu0 0.0
    %686 = vmatprep.subr.mxu0 0.0
    %687 = vmatpush1.msra.mxu0 0.0
    %688 = vmatprep.subr.mxu0 0.0
    %689 = vmatpush1.msra.mxu0 0.0
    %690 = vmatprep.subr.mxu0 0.0
    %691 = vmatpush1.msra.mxu0 0.0
    %692 = vmatprep.subr.mxu0 0.0
    %693 = vmatpush1.msra.mxu0 0.0
    %694 = vmatprep.subr.mxu0 0.0
    %695 = vmatpush1.msra.mxu0 0.0
    %696 = vmatprep.subr.mxu0 0.0
    %697 = vmatpush1.msra.mxu0 0.0
    %698 = vmatprep.subr.mxu0 0.0
    %699 = vmatpush1.msra.mxu0 0.0
    %700 = vmatprep.subr.mxu0 0.0
    %701 = vmatpush1.msra.mxu0 0.0
    %702 = vmatprep.subr.mxu0 %v599
    %703 = vmatpush1.msra.mxu0 %v597
    %704 = vmatprep.subr.mxu0 0.0
    %705 = vmatpush2.msra.mxu0 0.0
    %706 = vmatprep.subr.mxu0 0.0
    %707 = vmatpush2.msra.mxu0 0.0
    %708 = vmatprep.subr.mxu0 0.0
    %709 = vmatpush2.msra.mxu0 0.0
    %710 = vmatprep.subr.mxu0 0.0
    %711 = vmatpush2.msra.mxu0 0.0
    %712 = vmatprep.subr.mxu0 0.0
    %713 = vmatpush2.msra.mxu0 0.0
    %714 = vmatprep.subr.mxu0 0.0
    %715 = vmatpush2.msra.mxu0 0.0
    %716 = vmatprep.subr.mxu0 0.0
    %717 = vmatpush2.msra.mxu0 0.0
    %718 = vmatprep.subr.mxu0 0.0
    %719 = vmatpush2.msra.mxu0 0.0
    %720 = vmatprep.subr.mxu0 0.0
    %721 = vmatpush2.msra.mxu0 0.0
    %722 = vmatprep.subr.mxu0 0.0
    %723 = vmatpush2.msra.mxu0 0.0
    %724 = vmatprep.subr.mxu0 0.0
    %725 = vmatpush2.msra.mxu0 0.0
    %726 = vmatprep.subr.mxu0 0.0
    %727 = vmatpush2.msra.mxu0 0.0
    %728 = vmatprep.subr.mxu0 0.0
    %729 = vmatpush2.msra.mxu0 0.0
    %730 = vmatprep.subr.mxu0 0.0
    %731 = vmatpush2.msra.mxu0 0.0
    %732 = vmatprep.subr.mxu0 0.0
    %733 = vmatpush2.msra.mxu0 0.0
    %734 = vmatprep.subr.mxu0 0.0
    %735 = vmatpush2.msra.mxu0 0.0
    %736 = vmatprep.mubr.f32.mxu0 0.0
    %737 = vmatmul.mubr.f32.gmra.mxu0 %v591
    %v738 = vpop.f32.mrf.mxu0
    %v739 = vadd.f32 0.0, %v738
    %v740 = vpop.f32.mrf.mxu0
    %v741 = vadd.f32 0.0, %v740
    %742 = vdwg.mxu0
    %v743 = vadd.f32 %v561, %v668
    %v744 = vadd.f32 %v562, %v670
    %v745 = vadd.f32 %v563, %v739
    %v746 = vadd.f32 %v564, %v741
    %v747 = vld [vmem:[#allocation2] sm:$0xff]
    %v748 = vld [vmem:[#allocation2 + $0x8] sm:$0xff]
    %v749 = vld [vmem:[#allocation2 + $0x10] sm:$0xf]
    %s750 = scalar_lea.vmem %s2, 16
    %v751 = vld [vmem:[%s750] sm:$0xf]
    %v755 = vcombine.high %v747, %v747
    %v756 = vcombine.high %v748, %v748
    %757 = vrot.lane.b32.xlu0 %v747, 111
    %v758 = vpop.permute.xlu0 %757
    %759 = vrot.lane.b32.xlu0 %v755, 111
    %v760 = vpop.permute.xlu0 %759
    %761 = vrot.lane.b32.xlu0 %v748, 111
    %v762 = vpop.permute.xlu0 %761
    %763 = vrot.lane.b32.xlu0 %v756, 111
    %v764 = vpop.permute.xlu0 %763
    %765 = vrot.lane.b32.xlu0 %v749, 111
    %v766 = vpop.permute.xlu0 %765
    %vm767 = vcmask 908288
    %v768 = vsel %vm767, %v758, %v760
    %v769 = vsel %vm767, %v760, %v762
    %v770 = vsel %vm767, %v762, %v764
    %v771 = vsel %vm767, %v764, %v766
    %v773 = vsel %vm75, %v751, 0
    %v775 = vsel %vm79, %v768, 0
    %v777 = vsel %vm79, %v769, 0
    %v779 = vsel %vm79, %v770, 0
    %v781 = vsel %vm79, %v771, 0
    %783 = vmatprep.subr.mxu0 0.0
    %784 = vmatpush1.msra.mxu0 0.0
    %785 = vmatprep.subr.mxu0 0.0
    %786 = vmatpush1.msra.mxu0 0.0
    %787 = vmatprep.subr.mxu0 0.0
    %788 = vmatpush1.msra.mxu0 0.0
    %789 = vmatprep.subr.mxu0 0.0
    %790 = vmatpush1.msra.mxu0 0.0
    %791 = vmatprep.subr.mxu0 0.0
    %792 = vmatpush1.msra.mxu0 0.0
    %793 = vmatprep.subr.mxu0 0.0
    %794 = vmatpush1.msra.mxu0 0.0
    %795 = vmatprep.subr.mxu0 0.0
    %796 = vmatpush1.msra.mxu0 0.0
    %797 = vmatprep.subr.mxu0 0.0
    %798 = vmatpush1.msra.mxu0 0.0
    %799 = vmatprep.subr.mxu0 0.0
    %800 = vmatpush1.msra.mxu0 0.0
    %801 = vmatprep.subr.mxu0 0.0
    %802 = vmatpush1.msra.mxu0 0.0
    %803 = vmatprep.subr.mxu0 0.0
    %804 = vmatpush1.msra.mxu0 0.0
    %805 = vmatprep.subr.mxu0 0.0
    %806 = vmatpush1.msra.mxu0 0.0
    %807 = vmatprep.subr.mxu0 0.0
    %808 = vmatpush1.msra.mxu0 0.0
    %809 = vmatprep.subr.mxu0 0.0
    %810 = vmatpush1.msra.mxu0 0.0
    %811 = vmatprep.subr.mxu0 0.0
    %812 = vmatpush1.msra.mxu0 0.0
    %813 = vmatprep.subr.mxu0 %v777
    %814 = vmatpush1.msra.mxu0 %v775
    %815 = vmatprep.subr.mxu0 0.0
    %816 = vmatpush2.msra.mxu0 0.0
    %817 = vmatprep.subr.mxu0 0.0
    %818 = vmatpush2.msra.mxu0 0.0
    %819 = vmatprep.subr.mxu0 0.0
    %820 = vmatpush2.msra.mxu0 0.0
    %821 = vmatprep.subr.mxu0 0.0
    %822 = vmatpush2.msra.mxu0 0.0
    %823 = vmatprep.subr.mxu0 0.0
    %824 = vmatpush2.msra.mxu0 0.0
    %825 = vmatprep.subr.mxu0 0.0
    %826 = vmatpush2.msra.mxu0 0.0
    %827 = vmatprep.subr.mxu0 0.0
    %828 = vmatpush2.msra.mxu0 0.0
    %829 = vmatprep.subr.mxu0 0.0
    %830 = vmatpush2.msra.mxu0 0.0
    %831 = vmatprep.subr.mxu0 0.0
    %832 = vmatpush2.msra.mxu0 0.0
    %833 = vmatprep.subr.mxu0 0.0
    %834 = vmatpush2.msra.mxu0 0.0
    %835 = vmatprep.subr.mxu0 0.0
    %836 = vmatpush2.msra.mxu0 0.0
    %837 = vmatprep.subr.mxu0 0.0
    %838 = vmatpush2.msra.mxu0 0.0
    %839 = vmatprep.subr.mxu0 0.0
    %840 = vmatpush2.msra.mxu0 0.0
    %841 = vmatprep.subr.mxu0 0.0
    %842 = vmatpush2.msra.mxu0 0.0
    %843 = vmatprep.subr.mxu0 0.0
    %844 = vmatpush2.msra.mxu0 0.0
    %845 = vmatprep.subr.mxu0 0.0
    %846 = vmatpush2.msra.mxu0 0.0
    %847 = vmatprep.mubr.f32.mxu0 0.0
    %848 = vmatmul.mubr.f32.gmra.mxu0 %v773
    %v849 = vpop.f32.mrf.mxu0
    %v850 = vadd.f32 0.0, %v849
    %v851 = vpop.f32.mrf.mxu0
    %v852 = vadd.f32 0.0, %v851
    %853 = vdwg.mxu0
    %854 = vmatprep.subr.mxu0 0.0
    %855 = vmatpush1.msra.mxu0 0.0
    %856 = vmatprep.subr.mxu0 0.0
    %857 = vmatpush1.msra.mxu0 0.0
    %858 = vmatprep.subr.mxu0 0.0
    %859 = vmatpush1.msra.mxu0 0.0
    %860 = vmatprep.subr.mxu0 0.0
    %861 = vmatpush1.msra.mxu0 0.0
    %862 = vmatprep.subr.mxu0 0.0
    %863 = vmatpush1.msra.mxu0 0.0
    %864 = vmatprep.subr.mxu0 0.0
    %865 = vmatpush1.msra.mxu0 0.0
    %866 = vmatprep.subr.mxu0 0.0
    %867 = vmatpush1.msra.mxu0 0.0
    %868 = vmatprep.subr.mxu0 0.0
    %869 = vmatpush1.msra.mxu0 0.0
    %870 = vmatprep.subr.mxu0 0.0
    %871 = vmatpush1.msra.mxu0 0.0
    %872 = vmatprep.subr.mxu0 0.0
    %873 = vmatpush1.msra.mxu0 0.0
    %874 = vmatprep.subr.mxu0 0.0
    %875 = vmatpush1.msra.mxu0 0.0
    %876 = vmatprep.subr.mxu0 0.0
    %877 = vmatpush1.msra.mxu0 0.0
    %878 = vmatprep.subr.mxu0 0.0
    %879 = vmatpush1.msra.mxu0 0.0
    %880 = vmatprep.subr.mxu0 0.0
    %881 = vmatpush1.msra.mxu0 0.0
    %882 = vmatprep.subr.mxu0 0.0
    %883 = vmatpush1.msra.mxu0 0.0
    %884 = vmatprep.subr.mxu0 %v781
    %885 = vmatpush1.msra.mxu0 %v779
    %886 = vmatprep.subr.mxu0 0.0
    %887 = vmatpush2.msra.mxu0 0.0
    %888 = vmatprep.subr.mxu0 0.0
    %889 = vmatpush2.msra.mxu0 0.0
    %890 = vmatprep.subr.mxu0 0.0
    %891 = vmatpush2.msra.mxu0 0.0
    %892 = vmatprep.subr.mxu0 0.0
    %893 = vmatpush2.msra.mxu0 0.0
    %894 = vmatprep.subr.mxu0 0.0
    %895 = vmatpush2.msra.mxu0 0.0
    %896 = vmatprep.subr.mxu0 0.0
    %897 = vmatpush2.msra.mxu0 0.0
    %898 = vmatprep.subr.mxu0 0.0
    %899 = vmatpush2.msra.mxu0 0.0
    %900 = vmatprep.subr.mxu0 0.0
    %901 = vmatpush2.msra.mxu0 0.0
    %902 = vmatprep.subr.mxu0 0.0
    %903 = vmatpush2.msra.mxu0 0.0
    %904 = vmatprep.subr.mxu0 0.0
    %905 = vmatpush2.msra.mxu0 0.0
    %906 = vmatprep.subr.mxu0 0.0
    %907 = vmatpush2.msra.mxu0 0.0
    %908 = vmatprep.subr.mxu0 0.0
    %909 = vmatpush2.msra.mxu0 0.0
    %910 = vmatprep.subr.mxu0 0.0
    %911 = vmatpush2.msra.mxu0 0.0
    %912 = vmatprep.subr.mxu0 0.0
    %913 = vmatpush2.msra.mxu0 0.0
    %914 = vmatprep.subr.mxu0 0.0
    %915 = vmatpush2.msra.mxu0 0.0
    %916 = vmatprep.subr.mxu0 0.0
    %917 = vmatpush2.msra.mxu0 0.0
    %918 = vmatprep.mubr.f32.mxu0 0.0
    %919 = vmatmul.mubr.f32.gmra.mxu0 %v773
    %v920 = vpop.f32.mrf.mxu0
    %v921 = vadd.f32 0.0, %v920
    %v922 = vpop.f32.mrf.mxu0
    %v923 = vadd.f32 0.0, %v922
    %924 = vdwg.mxu0
    %v925 = vadd.f32 %v743, %v850
    %v926 = vadd.f32 %v744, %v852
    %v927 = vadd.f32 %v745, %v921
    %v928 = vadd.f32 %v746, %v923
    %v929 = vld [vmem:[#allocation2] sm:$0xff]
    %v930 = vld [vmem:[#allocation2 + $0x8] sm:$0xff]
    %v931 = vld [vmem:[#allocation2 + $0x10] sm:$0xf]
    %s932 = scalar_lea.vmem %s2, 20
    %v933 = vld [vmem:[%s932] sm:$0xf]
    %v937 = vcombine.high %v929, %v929
    %v938 = vcombine.high %v930, %v930
    %939 = vrot.lane.b32.xlu0 %v929, 110
    %v940 = vpop.permute.xlu0 %939
    %941 = vrot.lane.b32.xlu0 %v937, 110
    %v942 = vpop.permute.xlu0 %941
    %943 = vrot.lane.b32.xlu0 %v930, 110
    %v944 = vpop.permute.xlu0 %943
    %945 = vrot.lane.b32.xlu0 %v938, 110
    %v946 = vpop.permute.xlu0 %945
    %947 = vrot.lane.b32.xlu0 %v931, 110
    %v948 = vpop.permute.xlu0 %947
    %vm949 = vcmask 900096
    %v950 = vsel %vm949, %v940, %v942
    %v951 = vsel %vm949, %v942, %v944
    %v952 = vsel %vm949, %v944, %v946
    %v953 = vsel %vm949, %v946, %v948
    %v955 = vsel %vm75, %v933, 0
    %v957 = vsel %vm79, %v950, 0
    %v959 = vsel %vm79, %v951, 0
    %v961 = vsel %vm79, %v952, 0
    %v963 = vsel %vm79, %v953, 0
    %965 = vmatprep.subr.mxu0 0.0
    %966 = vmatpush1.msra.mxu0 0.0
    %967 = vmatprep.subr.mxu0 0.0
    %968 = vmatpush1.msra.mxu0 0.0
    %969 = vmatprep.subr.mxu0 0.0
    %970 = vmatpush1.msra.mxu0 0.0
    %971 = vmatprep.subr.mxu0 0.0
    %972 = vmatpush1.msra.mxu0 0.0
    %973 = vmatprep.subr.mxu0 0.0
    %974 = vmatpush1.msra.mxu0 0.0
    %975 = vmatprep.subr.mxu0 0.0
    %976 = vmatpush1.msra.mxu0 0.0
    %977 = vmatprep.subr.mxu0 0.0
    %978 = vmatpush1.msra.mxu0 0.0
    %979 = vmatprep.subr.mxu0 0.0
    %980 = vmatpush1.msra.mxu0 0.0
    %981 = vmatprep.subr.mxu0 0.0
    %982 = vmatpush1.msra.mxu0 0.0
    %983 = vmatprep.subr.mxu0 0.0
    %984 = vmatpush1.msra.mxu0 0.0
    %985 = vmatprep.subr.mxu0 0.0
    %986 = vmatpush1.msra.mxu0 0.0
    %987 = vmatprep.subr.mxu0 0.0
    %988 = vmatpush1.msra.mxu0 0.0
    %989 = vmatprep.subr.mxu0 0.0
    %990 = vmatpush1.msra.mxu0 0.0
    %991 = vmatprep.subr.mxu0 0.0
    %992 = vmatpush1.msra.mxu0 0.0
    %993 = vmatprep.subr.mxu0 0.0
    %994 = vmatpush1.msra.mxu0 0.0
    %995 = vmatprep.subr.mxu0 %v959
    %996 = vmatpush1.msra.mxu0 %v957
    %997 = vmatprep.subr.mxu0 0.0
    %998 = vmatpush2.msra.mxu0 0.0
    %999 = vmatprep.subr.mxu0 0.0
    %1000 = vmatpush2.msra.mxu0 0.0
    %1001 = vmatprep.subr.mxu0 0.0
    %1002 = vmatpush2.msra.mxu0 0.0
    %1003 = vmatprep.subr.mxu0 0.0
    %1004 = vmatpush2.msra.mxu0 0.0
    %1005 = vmatprep.subr.mxu0 0.0
    %1006 = vmatpush2.msra.mxu0 0.0
    %1007 = vmatprep.subr.mxu0 0.0
    %1008 = vmatpush2.msra.mxu0 0.0
    %1009 = vmatprep.subr.mxu0 0.0
    %1010 = vmatpush2.msra.mxu0 0.0
    %1011 = vmatprep.subr.mxu0 0.0
    %1012 = vmatpush2.msra.mxu0 0.0
    %1013 = vmatprep.subr.mxu0 0.0
    %1014 = vmatpush2.msra.mxu0 0.0
    %1015 = vmatprep.subr.mxu0 0.0
    %1016 = vmatpush2.msra.mxu0 0.0
    %1017 = vmatprep.subr.mxu0 0.0
    %1018 = vmatpush2.msra.mxu0 0.0
    %1019 = vmatprep.subr.mxu0 0.0
    %1020 = vmatpush2.msra.mxu0 0.0
    %1021 = vmatprep.subr.mxu0 0.0
    %1022 = vmatpush2.msra.mxu0 0.0
    %1023 = vmatprep.subr.mxu0 0.0
    %1024 = vmatpush2.msra.mxu0 0.0
    %1025 = vmatprep.subr.mxu0 0.0
    %1026 = vmatpush2.msra.mxu0 0.0
    %1027 = vmatprep.subr.mxu0 0.0
    %1028 = vmatpush2.msra.mxu0 0.0
    %1029 = vmatprep.mubr.f32.mxu0 0.0
    %1030 = vmatmul.mubr.f32.gmra.mxu0 %v955
    %v1031 = vpop.f32.mrf.mxu0
    %v1032 = vadd.f32 0.0, %v1031
    %v1033 = vpop.f32.mrf.mxu0
    %v1034 = vadd.f32 0.0, %v1033
    %1035 = vdwg.mxu0
    %1036 = vmatprep.subr.mxu0 0.0
    %1037 = vmatpush1.msra.mxu0 0.0
    %1038 = vmatprep.subr.mxu0 0.0
    %1039 = vmatpush1.msra.mxu0 0.0
    %1040 = vmatprep.subr.mxu0 0.0
    %1041 = vmatpush1.msra.mxu0 0.0
    %1042 = vmatprep.subr.mxu0 0.0
    %1043 = vmatpush1.msra.mxu0 0.0
    %1044 = vmatprep.subr.mxu0 0.0
    %1045 = vmatpush1.msra.mxu0 0.0
    %1046 = vmatprep.subr.mxu0 0.0
    %1047 = vmatpush1.msra.mxu0 0.0
    %1048 = vmatprep.subr.mxu0 0.0
    %1049 = vmatpush1.msra.mxu0 0.0
    %1050 = vmatprep.subr.mxu0 0.0
    %1051 = vmatpush1.msra.mxu0 0.0
    %1052 = vmatprep.subr.mxu0 0.0
    %1053 = vmatpush1.msra.mxu0 0.0
    %1054 = vmatprep.subr.mxu0 0.0
    %1055 = vmatpush1.msra.mxu0 0.0
    %1056 = vmatprep.subr.mxu0 0.0
    %1057 = vmatpush1.msra.mxu0 0.0
    %1058 = vmatprep.subr.mxu0 0.0
    %1059 = vmatpush1.msra.mxu0 0.0
    %1060 = vmatprep.subr.mxu0 0.0
    %1061 = vmatpush1.msra.mxu0 0.0
    %1062 = vmatprep.subr.mxu0 0.0
    %1063 = vmatpush1.msra.mxu0 0.0
    %1064 = vmatprep.subr.mxu0 0.0
    %1065 = vmatpush1.msra.mxu0 0.0
    %1066 = vmatprep.subr.mxu0 %v963
    %1067 = vmatpush1.msra.mxu0 %v961
    %1068 = vmatprep.subr.mxu0 0.0
    %1069 = vmatpush2.msra.mxu0 0.0
    %1070 = vmatprep.subr.mxu0 0.0
    %1071 = vmatpush2.msra.mxu0 0.0
    %1072 = vmatprep.subr.mxu0 0.0
    %1073 = vmatpush2.msra.mxu0 0.0
    %1074 = vmatprep.subr.mxu0 0.0
    %1075 = vmatpush2.msra.mxu0 0.0
    %1076 = vmatprep.subr.mxu0 0.0
    %1077 = vmatpush2.msra.mxu0 0.0
    %1078 = vmatprep.subr.mxu0 0.0
    %1079 = vmatpush2.msra.mxu0 0.0
    %1080 = vmatprep.subr.mxu0 0.0
    %1081 = vmatpush2.msra.mxu0 0.0
    %1082 = vmatprep.subr.mxu0 0.0
    %1083 = vmatpush2.msra.mxu0 0.0
    %1084 = vmatprep.subr.mxu0 0.0
    %1085 = vmatpush2.msra.mxu0 0.0
    %1086 = vmatprep.subr.mxu0 0.0
    %1087 = vmatpush2.msra.mxu0 0.0
    %1088 = vmatprep.subr.mxu0 0.0
    %1089 = vmatpush2.msra.mxu0 0.0
    %1090 = vmatprep.subr.mxu0 0.0
    %1091 = vmatpush2.msra.mxu0 0.0
    %1092 = vmatprep.subr.mxu0 0.0
    %1093 = vmatpush2.msra.mxu0 0.0
    %1094 = vmatprep.subr.mxu0 0.0
    %1095 = vmatpush2.msra.mxu0 0.0
    %1096 = vmatprep.subr.mxu0 0.0
    %1097 = vmatpush2.msra.mxu0 0.0
    %1098 = vmatprep.subr.mxu0 0.0
    %1099 = vmatpush2.msra.mxu0 0.0
    %1100 = vmatprep.mubr.f32.mxu0 0.0
    %1101 = vmatmul.mubr.f32.gmra.mxu0 %v955
    %v1102 = vpop.f32.mrf.mxu0
    %v1103 = vadd.f32 0.0, %v1102
    %v1104 = vpop.f32.mrf.mxu0
    %v1105 = vadd.f32 0.0, %v1104
    %1106 = vdwg.mxu0
    %v1107 = vadd.f32 %v925, %v1032
    %v1108 = vadd.f32 %v926, %v1034
    %v1109 = vadd.f32 %v927, %v1103
    %v1110 = vadd.f32 %v928, %v1105
    %v1111 = vld [vmem:[#allocation2] sm:$0xff]
    %v1112 = vld [vmem:[#allocation2 + $0x8] sm:$0xff]
    %v1113 = vld [vmem:[#allocation2 + $0x10] sm:$0xf]
    %s1114 = scalar_lea.vmem %s2, 24
    %v1115 = vld [vmem:[%s1114] sm:$0xf]
    %v1119 = vcombine.high %v1111, %v1111
    %v1120 = vcombine.high %v1112, %v1112
    %1121 = vrot.lane.b32.xlu0 %v1111, 96
    %v1122 = vpop.permute.xlu0 %1121
    %1123 = vrot.lane.b32.xlu0 %v1119, 96
    %v1124 = vpop.permute.xlu0 %1123
    %1125 = vrot.lane.b32.xlu0 %v1112, 96
    %v1126 = vpop.permute.xlu0 %1125
    %1127 = vrot.lane.b32.xlu0 %v1120, 96
    %v1128 = vpop.permute.xlu0 %1127
    %1129 = vrot.lane.b32.xlu0 %v1113, 96
    %v1130 = vpop.permute.xlu0 %1129
    %vm1131 = vcmask 785408
    %v1132 = vsel %vm1131, %v1122, %v1124
    %v1133 = vsel %vm1131, %v1124, %v1126
    %v1134 = vsel %vm1131, %v1126, %v1128
    %v1135 = vsel %vm1131, %v1128, %v1130
    %v1137 = vsel %vm75, %v1115, 0
    %v1139 = vsel %vm79, %v1132, 0
    %v1141 = vsel %vm79, %v1133, 0
    %v1143 = vsel %vm79, %v1134, 0
    %v1145 = vsel %vm79, %v1135, 0
    %1147 = vmatprep.subr.mxu0 0.0
    %1148 = vmatpush1.msra.mxu0 0.0
    %1149 = vmatprep.subr.mxu0 0.0
    %1150 = vmatpush1.msra.mxu0 0.0
    %1151 = vmatprep.subr.mxu0 0.0
    %1152 = vmatpush1.msra.mxu0 0.0
    %1153 = vmatprep.subr.mxu0 0.0
    %1154 = vmatpush1.msra.mxu0 0.0
    %1155 = vmatprep.subr.mxu0 0.0
    %1156 = vmatpush1.msra.mxu0 0.0
    %1157 = vmatprep.subr.mxu0 0.0
    %1158 = vmatpush1.msra.mxu0 0.0
    %1159 = vmatprep.subr.mxu0 0.0
    %1160 = vmatpush1.msra.mxu0 0.0
    %1161 = vmatprep.subr.mxu0 0.0
    %1162 = vmatpush1.msra.mxu0 0.0
    %1163 = vmatprep.subr.mxu0 0.0
    %1164 = vmatpush1.msra.mxu0 0.0
    %1165 = vmatprep.subr.mxu0 0.0
    %1166 = vmatpush1.msra.mxu0 0.0
    %1167 = vmatprep.subr.mxu0 0.0
    %1168 = vmatpush1.msra.mxu0 0.0
    %1169 = vmatprep.subr.mxu0 0.0
    %1170 = vmatpush1.msra.mxu0 0.0
    %1171 = vmatprep.subr.mxu0 0.0
    %1172 = vmatpush1.msra.mxu0 0.0
    %1173 = vmatprep.subr.mxu0 0.0
    %1174 = vmatpush1.msra.mxu0 0.0
    %1175 = vmatprep.subr.mxu0 0.0
    %1176 = vmatpush1.msra.mxu0 0.0
    %1177 = vmatprep.subr.mxu0 %v1141
    %1178 = vmatpush1.msra.mxu0 %v1139
    %1179 = vmatprep.subr.mxu0 0.0
    %1180 = vmatpush2.msra.mxu0 0.0
    %1181 = vmatprep.subr.mxu0 0.0
    %1182 = vmatpush2.msra.mxu0 0.0
    %1183 = vmatprep.subr.mxu0 0.0
    %1184 = vmatpush2.msra.mxu0 0.0
    %1185 = vmatprep.subr.mxu0 0.0
    %1186 = vmatpush2.msra.mxu0 0.0
    %1187 = vmatprep.subr.mxu0 0.0
    %1188 = vmatpush2.msra.mxu0 0.0
    %1189 = vmatprep.subr.mxu0 0.0
    %1190 = vmatpush2.msra.mxu0 0.0
    %1191 = vmatprep.subr.mxu0 0.0
    %1192 = vmatpush2.msra.mxu0 0.0
    %1193 = vmatprep.subr.mxu0 0.0
    %1194 = vmatpush2.msra.mxu0 0.0
    %1195 = vmatprep.subr.mxu0 0.0
    %1196 = vmatpush2.msra.mxu0 0.0
    %1197 = vmatprep.subr.mxu0 0.0
    %1198 = vmatpush2.msra.mxu0 0.0
    %1199 = vmatprep.subr.mxu0 0.0
    %1200 = vmatpush2.msra.mxu0 0.0
    %1201 = vmatprep.subr.mxu0 0.0
    %1202 = vmatpush2.msra.mxu0 0.0
    %1203 = vmatprep.subr.mxu0 0.0
    %1204 = vmatpush2.msra.mxu0 0.0
    %1205 = vmatprep.subr.mxu0 0.0
    %1206 = vmatpush2.msra.mxu0 0.0
    %1207 = vmatprep.subr.mxu0 0.0
    %1208 = vmatpush2.msra.mxu0 0.0
    %1209 = vmatprep.subr.mxu0 0.0
    %1210 = vmatpush2.msra.mxu0 0.0
    %1211 = vmatprep.mubr.f32.mxu0 0.0
    %1212 = vmatmul.mubr.f32.gmra.mxu0 %v1137
    %v1213 = vpop.f32.mrf.mxu0
    %v1214 = vadd.f32 0.0, %v1213
    %v1215 = vpop.f32.mrf.mxu0
    %v1216 = vadd.f32 0.0, %v1215
    %1217 = vdwg.mxu0
    %1218 = vmatprep.subr.mxu0 0.0
    %1219 = vmatpush1.msra.mxu0 0.0
    %1220 = vmatprep.subr.mxu0 0.0
    %1221 = vmatpush1.msra.mxu0 0.0
    %1222 = vmatprep.subr.mxu0 0.0
    %1223 = vmatpush1.msra.mxu0 0.0
    %1224 = vmatprep.subr.mxu0 0.0
    %1225 = vmatpush1.msra.mxu0 0.0
    %1226 = vmatprep.subr.mxu0 0.0
    %1227 = vmatpush1.msra.mxu0 0.0
    %1228 = vmatprep.subr.mxu0 0.0
    %1229 = vmatpush1.msra.mxu0 0.0
    %1230 = vmatprep.subr.mxu0 0.0
    %1231 = vmatpush1.msra.mxu0 0.0
    %1232 = vmatprep.subr.mxu0 0.0
    %1233 = vmatpush1.msra.mxu0 0.0
    %1234 = vmatprep.subr.mxu0 0.0
    %1235 = vmatpush1.msra.mxu0 0.0
    %1236 = vmatprep.subr.mxu0 0.0
    %1237 = vmatpush1.msra.mxu0 0.0
    %1238 = vmatprep.subr.mxu0 0.0
    %1239 = vmatpush1.msra.mxu0 0.0
    %1240 = vmatprep.subr.mxu0 0.0
    %1241 = vmatpush1.msra.mxu0 0.0
    %1242 = vmatprep.subr.mxu0 0.0
    %1243 = vmatpush1.msra.mxu0 0.0
    %1244 = vmatprep.subr.mxu0 0.0
    %1245 = vmatpush1.msra.mxu0 0.0
    %1246 = vmatprep.subr.mxu0 0.0
    %1247 = vmatpush1.msra.mxu0 0.0
    %1248 = vmatprep.subr.mxu0 %v1145
    %1249 = vmatpush1.msra.mxu0 %v1143
    %1250 = vmatprep.subr.mxu0 0.0
    %1251 = vmatpush2.msra.mxu0 0.0
    %1252 = vmatprep.subr.mxu0 0.0
    %1253 = vmatpush2.msra.mxu0 0.0
    %1254 = vmatprep.subr.mxu0 0.0
    %1255 = vmatpush2.msra.mxu0 0.0
    %1256 = vmatprep.subr.mxu0 0.0
    %1257 = vmatpush2.msra.mxu0 0.0
    %1258 = vmatprep.subr.mxu0 0.0
    %1259 = vmatpush2.msra.mxu0 0.0
    %1260 = vmatprep.subr.mxu0 0.0
    %1261 = vmatpush2.msra.mxu0 0.0
    %1262 = vmatprep.subr.mxu0 0.0
    %1263 = vmatpush2.msra.mxu0 0.0
    %1264 = vmatprep.subr.mxu0 0.0
    %1265 = vmatpush2.msra.mxu0 0.0
    %1266 = vmatprep.subr.mxu0 0.0
    %1267 = vmatpush2.msra.mxu0 0.0
    %1268 = vmatprep.subr.mxu0 0.0
    %1269 = vmatpush2.msra.mxu0 0.0
    %1270 = vmatprep.subr.mxu0 0.0
    %1271 = vmatpush2.msra.mxu0 0.0
    %1272 = vmatprep.subr.mxu0 0.0
    %1273 = vmatpush2.msra.mxu0 0.0
    %1274 = vmatprep.subr.mxu0 0.0
    %1275 = vmatpush2.msra.mxu0 0.0
    %1276 = vmatprep.subr.mxu0 0.0
    %1277 = vmatpush2.msra.mxu0 0.0
    %1278 = vmatprep.subr.mxu0 0.0
    %1279 = vmatpush2.msra.mxu0 0.0
    %1280 = vmatprep.subr.mxu0 0.0
    %1281 = vmatpush2.msra.mxu0 0.0
    %1282 = vmatprep.mubr.f32.mxu0 0.0
    %1283 = vmatmul.mubr.f32.gmra.mxu0 %v1137
    %v1284 = vpop.f32.mrf.mxu0
    %v1285 = vadd.f32 0.0, %v1284
    %v1286 = vpop.f32.mrf.mxu0
    %v1287 = vadd.f32 0.0, %v1286
    %1288 = vdwg.mxu0
    %v1289 = vadd.f32 %v1107, %v1214
    %v1290 = vadd.f32 %v1108, %v1216
    %v1291 = vadd.f32 %v1109, %v1285
    %v1292 = vadd.f32 %v1110, %v1287
    %v1293 = vld [vmem:[#allocation2] sm:$0xff]
    %v1294 = vld [vmem:[#allocation2 + $0x8] sm:$0xff]
    %v1295 = vld [vmem:[#allocation2 + $0x10] sm:$0xf]
    %s1296 = scalar_lea.vmem %s2, 28
    %v1297 = vld [vmem:[%s1296] sm:$0xf]
    %v1301 = vcombine.high %v1293, %v1293
    %v1302 = vcombine.high %v1294, %v1294
    %1303 = vrot.lane.b32.xlu0 %v1293, 95
    %v1304 = vpop.permute.xlu0 %1303
    %1305 = vrot.lane.b32.xlu0 %v1301, 95
    %v1306 = vpop.permute.xlu0 %1305
    %1307 = vrot.lane.b32.xlu0 %v1294, 95
    %v1308 = vpop.permute.xlu0 %1307
    %1309 = vrot.lane.b32.xlu0 %v1302, 95
    %v1310 = vpop.permute.xlu0 %1309
    %1311 = vrot.lane.b32.xlu0 %v1295, 95
    %v1312 = vpop.permute.xlu0 %1311
    %vm1313 = vcmask 777216
    %v1314 = vsel %vm1313, %v1304, %v1306
    %v1315 = vsel %vm1313, %v1306, %v1308
    %v1316 = vsel %vm1313, %v1308, %v1310
    %v1317 = vsel %vm1313, %v1310, %v1312
    %v1319 = vsel %vm75, %v1297, 0
    %v1321 = vsel %vm79, %v1314, 0
    %v1323 = vsel %vm79, %v1315, 0
    %v1325 = vsel %vm79, %v1316, 0
    %v1327 = vsel %vm79, %v1317, 0
    %1329 = vmatprep.subr.mxu0 0.0
    %1330 = vmatpush1.msra.mxu0 0.0
    %1331 = vmatprep.subr.mxu0 0.0
    %1332 = vmatpush1.msra.mxu0 0.0
    %1333 = vmatprep.subr.mxu0 0.0
    %1334 = vmatpush1.msra.mxu0 0.0
    %1335 = vmatprep.subr.mxu0 0.0
    %1336 = vmatpush1.msra.mxu0 0.0
    %1337 = vmatprep.subr.mxu0 0.0
    %1338 = vmatpush1.msra.mxu0 0.0
    %1339 = vmatprep.subr.mxu0 0.0
    %1340 = vmatpush1.msra.mxu0 0.0
    %1341 = vmatprep.subr.mxu0 0.0
    %1342 = vmatpush1.msra.mxu0 0.0
    %1343 = vmatprep.subr.mxu0 0.0
    %1344 = vmatpush1.msra.mxu0 0.0
    %1345 = vmatprep.subr.mxu0 0.0
    %1346 = vmatpush1.msra.mxu0 0.0
    %1347 = vmatprep.subr.mxu0 0.0
    %1348 = vmatpush1.msra.mxu0 0.0
    %1349 = vmatprep.subr.mxu0 0.0
    %1350 = vmatpush1.msra.mxu0 0.0
    %1351 = vmatprep.subr.mxu0 0.0
    %1352 = vmatpush1.msra.mxu0 0.0
    %1353 = vmatprep.subr.mxu0 0.0
    %1354 = vmatpush1.msra.mxu0 0.0
    %1355 = vmatprep.subr.mxu0 0.0
    %1356 = vmatpush1.msra.mxu0 0.0
    %1357 = vmatprep.subr.mxu0 0.0
    %1358 = vmatpush1.msra.mxu0 0.0
    %1359 = vmatprep.subr.mxu0 %v1323
    %1360 = vmatpush1.msra.mxu0 %v1321
    %1361 = vmatprep.subr.mxu0 0.0
    %1362 = vmatpush2.msra.mxu0 0.0
    %1363 = vmatprep.subr.mxu0 0.0
    %1364 = vmatpush2.msra.mxu0 0.0
    %1365 = vmatprep.subr.mxu0 0.0
    %1366 = vmatpush2.msra.mxu0 0.0
    %1367 = vmatprep.subr.mxu0 0.0
    %1368 = vmatpush2.msra.mxu0 0.0
    %1369 = vmatprep.subr.mxu0 0.0
    %1370 = vmatpush2.msra.mxu0 0.0
    %1371 = vmatprep.subr.mxu0 0.0
    %1372 = vmatpush2.msra.mxu0 0.0
    %1373 = vmatprep.subr.mxu0 0.0
    %1374 = vmatpush2.msra.mxu0 0.0
    %1375 = vmatprep.subr.mxu0 0.0
    %1376 = vmatpush2.msra.mxu0 0.0
    %1377 = vmatprep.subr.mxu0 0.0
    %1378 = vmatpush2.msra.mxu0 0.0
    %1379 = vmatprep.subr.mxu0 0.0
    %1380 = vmatpush2.msra.mxu0 0.0
    %1381 = vmatprep.subr.mxu0 0.0
    %1382 = vmatpush2.msra.mxu0 0.0
    %1383 = vmatprep.subr.mxu0 0.0
    %1384 = vmatpush2.msra.mxu0 0.0
    %1385 = vmatprep.subr.mxu0 0.0
    %1386 = vmatpush2.msra.mxu0 0.0
    %1387 = vmatprep.subr.mxu0 0.0
    %1388 = vmatpush2.msra.mxu0 0.0
    %1389 = vmatprep.subr.mxu0 0.0
    %1390 = vmatpush2.msra.mxu0 0.0
    %1391 = vmatprep.subr.mxu0 0.0
    %1392 = vmatpush2.msra.mxu0 0.0
    %1393 = vmatprep.mubr.f32.mxu0 0.0
    %1394 = vmatmul.mubr.f32.gmra.mxu0 %v1319
    %v1395 = vpop.f32.mrf.mxu0
    %v1396 = vadd.f32 0.0, %v1395
    %v1397 = vpop.f32.mrf.mxu0
    %v1398 = vadd.f32 0.0, %v1397
    %1399 = vdwg.mxu0
    %1400 = vmatprep.subr.mxu0 0.0
    %1401 = vmatpush1.msra.mxu0 0.0
    %1402 = vmatprep.subr.mxu0 0.0
    %1403 = vmatpush1.msra.mxu0 0.0
    %1404 = vmatprep.subr.mxu0 0.0
    %1405 = vmatpush1.msra.mxu0 0.0
    %1406 = vmatprep.subr.mxu0 0.0
    %1407 = vmatpush1.msra.mxu0 0.0
    %1408 = vmatprep.subr.mxu0 0.0
    %1409 = vmatpush1.msra.mxu0 0.0
    %1410 = vmatprep.subr.mxu0 0.0
    %1411 = vmatpush1.msra.mxu0 0.0
    %1412 = vmatprep.subr.mxu0 0.0
    %1413 = vmatpush1.msra.mxu0 0.0
    %1414 = vmatprep.subr.mxu0 0.0
    %1415 = vmatpush1.msra.mxu0 0.0
    %1416 = vmatprep.subr.mxu0 0.0
    %1417 = vmatpush1.msra.mxu0 0.0
    %1418 = vmatprep.subr.mxu0 0.0
    %1419 = vmatpush1.msra.mxu0 0.0
    %1420 = vmatprep.subr.mxu0 0.0
    %1421 = vmatpush1.msra.mxu0 0.0
    %1422 = vmatprep.subr.mxu0 0.0
    %1423 = vmatpush1.msra.mxu0 0.0
    %1424 = vmatprep.subr.mxu0 0.0
    %1425 = vmatpush1.msra.mxu0 0.0
    %1426 = vmatprep.subr.mxu0 0.0
    %1427 = vmatpush1.msra.mxu0 0.0
    %1428 = vmatprep.subr.mxu0 0.0
    %1429 = vmatpush1.msra.mxu0 0.0
    %1430 = vmatprep.subr.mxu0 %v1327
    %1431 = vmatpush1.msra.mxu0 %v1325
    %1432 = vmatprep.subr.mxu0 0.0
    %1433 = vmatpush2.msra.mxu0 0.0
    %1434 = vmatprep.subr.mxu0 0.0
    %1435 = vmatpush2.msra.mxu0 0.0
    %1436 = vmatprep.subr.mxu0 0.0
    %1437 = vmatpush2.msra.mxu0 0.0
    %1438 = vmatprep.subr.mxu0 0.0
    %1439 = vmatpush2.msra.mxu0 0.0
    %1440 = vmatprep.subr.mxu0 0.0
    %1441 = vmatpush2.msra.mxu0 0.0
    %1442 = vmatprep.subr.mxu0 0.0
    %1443 = vmatpush2.msra.mxu0 0.0
    %1444 = vmatprep.subr.mxu0 0.0
    %1445 = vmatpush2.msra.mxu0 0.0
    %1446 = vmatprep.subr.mxu0 0.0
    %1447 = vmatpush2.msra.mxu0 0.0
    %1448 = vmatprep.subr.mxu0 0.0
    %1449 = vmatpush2.msra.mxu0 0.0
    %1450 = vmatprep.subr.mxu0 0.0
    %1451 = vmatpush2.msra.mxu0 0.0
    %1452 = vmatprep.subr.mxu0 0.0
    %1453 = vmatpush2.msra.mxu0 0.0
    %1454 = vmatprep.subr.mxu0 0.0
    %1455 = vmatpush2.msra.mxu0 0.0
    %1456 = vmatprep.subr.mxu0 0.0
    %1457 = vmatpush2.msra.mxu0 0.0
    %1458 = vmatprep.subr.mxu0 0.0
    %1459 = vmatpush2.msra.mxu0 0.0
    %1460 = vmatprep.subr.mxu0 0.0
    %1461 = vmatpush2.msra.mxu0 0.0
    %1462 = vmatprep.subr.mxu0 0.0
    %1463 = vmatpush2.msra.mxu0 0.0
    %1464 = vmatprep.mubr.f32.mxu0 0.0
    %1465 = vmatmul.mubr.f32.gmra.mxu0 %v1319
    %v1466 = vpop.f32.mrf.mxu0
    %v1467 = vadd.f32 0.0, %v1466
    %v1468 = vpop.f32.mrf.mxu0
    %v1469 = vadd.f32 0.0, %v1468
    %1470 = vdwg.mxu0
    %v1471 = vadd.f32 %v1289, %v1396
    %v1472 = vadd.f32 %v1290, %v1398
    %v1473 = vadd.f32 %v1291, %v1467
    %v1474 = vadd.f32 %v1292, %v1469
    %v1475 = vld [vmem:[#allocation2] sm:$0xff]
    %v1476 = vld [vmem:[#allocation2 + $0x8] sm:$0xff]
    %v1477 = vld [vmem:[#allocation2 + $0x10] sm:$0xf]
    %s1478 = scalar_lea.vmem %s2, 32
    %v1479 = vld [vmem:[%s1478] sm:$0xf]
    %v1483 = vcombine.high %v1475, %v1475
    %v1484 = vcombine.high %v1476, %v1476
    %1485 = vrot.lane.b32.xlu0 %v1475, 94
    %v1486 = vpop.permute.xlu0 %1485
    %1487 = vrot.lane.b32.xlu0 %v1483, 94
    %v1488 = vpop.permute.xlu0 %1487
    %1489 = vrot.lane.b32.xlu0 %v1476, 94
    %v1490 = vpop.permute.xlu0 %1489
    %1491 = vrot.lane.b32.xlu0 %v1484, 94
    %v1492 = vpop.permute.xlu0 %1491
    %1493 = vrot.lane.b32.xlu0 %v1477, 94
    %v1494 = vpop.permute.xlu0 %1493
    %vm1495 = vcmask 769024
    %v1496 = vsel %vm1495, %v1486, %v1488
    %v1497 = vsel %vm1495, %v1488, %v1490
    %v1498 = vsel %vm1495, %v1490, %v1492
    %v1499 = vsel %vm1495, %v1492, %v1494
    %v1501 = vsel %vm75, %v1479, 0
    %v1503 = vsel %vm79, %v1496, 0
    %v1505 = vsel %vm79, %v1497, 0
    %v1507 = vsel %vm79, %v1498, 0
    %v1509 = vsel %vm79, %v1499, 0
    %1511 = vmatprep.subr.mxu0 0.0
    %1512 = vmatpush1.msra.mxu0 0.0
    %1513 = vmatprep.subr.mxu0 0.0
    %1514 = vmatpush1.msra.mxu0 0.0
    %1515 = vmatprep.subr.mxu0 0.0
    %1516 = vmatpush1.msra.mxu0 0.0
    %1517 = vmatprep.subr.mxu0 0.0
    %1518 = vmatpush1.msra.mxu0 0.0
    %1519 = vmatprep.subr.mxu0 0.0
    %1520 = vmatpush1.msra.mxu0 0.0
    %1521 = vmatprep.subr.mxu0 0.0
    %1522 = vmatpush1.msra.mxu0 0.0
    %1523 = vmatprep.subr.mxu0 0.0
    %1524 = vmatpush1.msra.mxu0 0.0
    %1525 = vmatprep.subr.mxu0 0.0
    %1526 = vmatpush1.msra.mxu0 0.0
    %1527 = vmatprep.subr.mxu0 0.0
    %1528 = vmatpush1.msra.mxu0 0.0
    %1529 = vmatprep.subr.mxu0 0.0
    %1530 = vmatpush1.msra.mxu0 0.0
    %1531 = vmatprep.subr.mxu0 0.0
    %1532 = vmatpush1.msra.mxu0 0.0
    %1533 = vmatprep.subr.mxu0 0.0
    %1534 = vmatpush1.msra.mxu0 0.0
    %1535 = vmatprep.subr.mxu0 0.0
    %1536 = vmatpush1.msra.mxu0 0.0
    %1537 = vmatprep.subr.mxu0 0.0
    %1538 = vmatpush1.msra.mxu0 0.0
    %1539 = vmatprep.subr.mxu0 0.0
    %1540 = vmatpush1.msra.mxu0 0.0
    %1541 = vmatprep.subr.mxu0 %v1505
    %1542 = vmatpush1.msra.mxu0 %v1503
    %1543 = vmatprep.subr.mxu0 0.0
    %1544 = vmatpush2.msra.mxu0 0.0
    %1545 = vmatprep.subr.mxu0 0.0
    %1546 = vmatpush2.msra.mxu0 0.0
    %1547 = vmatprep.subr.mxu0 0.0
    %1548 = vmatpush2.msra.mxu0 0.0
    %1549 = vmatprep.subr.mxu0 0.0
    %1550 = vmatpush2.msra.mxu0 0.0
    %1551 = vmatprep.subr.mxu0 0.0
    %1552 = vmatpush2.msra.mxu0 0.0
    %1553 = vmatprep.subr.mxu0 0.0
    %1554 = vmatpush2.msra.mxu0 0.0
    %1555 = vmatprep.subr.mxu0 0.0
    %1556 = vmatpush2.msra.mxu0 0.0
    %1557 = vmatprep.subr.mxu0 0.0
    %1558 = vmatpush2.msra.mxu0 0.0
    %1559 = vmatprep.subr.mxu0 0.0
    %1560 = vmatpush2.msra.mxu0 0.0
    %1561 = vmatprep.subr.mxu0 0.0
    %1562 = vmatpush2.msra.mxu0 0.0
    %1563 = vmatprep.subr.mxu0 0.0
    %1564 = vmatpush2.msra.mxu0 0.0
    %1565 = vmatprep.subr.mxu0 0.0
    %1566 = vmatpush2.msra.mxu0 0.0
    %1567 = vmatprep.subr.mxu0 0.0
    %1568 = vmatpush2.msra.mxu0 0.0
    %1569 = vmatprep.subr.mxu0 0.0
    %1570 = vmatpush2.msra.mxu0 0.0
    %1571 = vmatprep.subr.mxu0 0.0
    %1572 = vmatpush2.msra.mxu0 0.0
    %1573 = vmatprep.subr.mxu0 0.0
    %1574 = vmatpush2.msra.mxu0 0.0
    %1575 = vmatprep.mubr.f32.mxu0 0.0
    %1576 = vmatmul.mubr.f32.gmra.mxu0 %v1501
    %v1577 = vpop.f32.mrf.mxu0
    %v1578 = vadd.f32 0.0, %v1577
    %v1579 = vpop.f32.mrf.mxu0
    %v1580 = vadd.f32 0.0, %v1579
    %1581 = vdwg.mxu0
    %1582 = vmatprep.subr.mxu0 0.0
    %1583 = vmatpush1.msra.mxu0 0.0
    %1584 = vmatprep.subr.mxu0 0.0
    %1585 = vmatpush1.msra.mxu0 0.0
    %1586 = vmatprep.subr.mxu0 0.0
    %1587 = vmatpush1.msra.mxu0 0.0
    %1588 = vmatprep.subr.mxu0 0.0
    %1589 = vmatpush1.msra.mxu0 0.0
    %1590 = vmatprep.subr.mxu0 0.0
    %1591 = vmatpush1.msra.mxu0 0.0
    %1592 = vmatprep.subr.mxu0 0.0
    %1593 = vmatpush1.msra.mxu0 0.0
    %1594 = vmatprep.subr.mxu0 0.0
    %1595 = vmatpush1.msra.mxu0 0.0
    %1596 = vmatprep.subr.mxu0 0.0
    %1597 = vmatpush1.msra.mxu0 0.0
    %1598 = vmatprep.subr.mxu0 0.0
    %1599 = vmatpush1.msra.mxu0 0.0
    %1600 = vmatprep.subr.mxu0 0.0
    %1601 = vmatpush1.msra.mxu0 0.0
    %1602 = vmatprep.subr.mxu0 0.0
    %1603 = vmatpush1.msra.mxu0 0.0
    %1604 = vmatprep.subr.mxu0 0.0
    %1605 = vmatpush1.msra.mxu0 0.0
    %1606 = vmatprep.subr.mxu0 0.0
    %1607 = vmatpush1.msra.mxu0 0.0
    %1608 = vmatprep.subr.mxu0 0.0
    %1609 = vmatpush1.msra.mxu0 0.0
    %1610 = vmatprep.subr.mxu0 0.0
    %1611 = vmatpush1.msra.mxu0 0.0
    %1612 = vmatprep.subr.mxu0 %v1509
    %1613 = vmatpush1.msra.mxu0 %v1507
    %1614 = vmatprep.subr.mxu0 0.0
    %1615 = vmatpush2.msra.mxu0 0.0
    %1616 = vmatprep.subr.mxu0 0.0
    %1617 = vmatpush2.msra.mxu0 0.0
    %1618 = vmatprep.subr.mxu0 0.0
    %1619 = vmatpush2.msra.mxu0 0.0
    %1620 = vmatprep.subr.mxu0 0.0
    %1621 = vmatpush2.msra.mxu0 0.0
    %1622 = vmatprep.subr.mxu0 0.0
    %1623 = vmatpush2.msra.mxu0 0.0
    %1624 = vmatprep.subr.mxu0 0.0
    %1625 = vmatpush2.msra.mxu0 0.0
    %1626 = vmatprep.subr.mxu0 0.0
    %1627 = vmatpush2.msra.mxu0 0.0
    %1628 = vmatprep.subr.mxu0 0.0
    %1629 = vmatpush2.msra.mxu0 0.0
    %1630 = vmatprep.subr.mxu0 0.0
    %1631 = vmatpush2.msra.mxu0 0.0
    %1632 = vmatprep.subr.mxu0 0.0
    %1633 = vmatpush2.msra.mxu0 0.0
    %1634 = vmatprep.subr.mxu0 0.0
    %1635 = vmatpush2.msra.mxu0 0.0
    %1636 = vmatprep.subr.mxu0 0.0
    %1637 = vmatpush2.msra.mxu0 0.0
    %1638 = vmatprep.subr.mxu0 0.0
    %1639 = vmatpush2.msra.mxu0 0.0
    %1640 = vmatprep.subr.mxu0 0.0
    %1641 = vmatpush2.msra.mxu0 0.0
    %1642 = vmatprep.subr.mxu0 0.0
    %1643 = vmatpush2.msra.mxu0 0.0
    %1644 = vmatprep.subr.mxu0 0.0
    %1645 = vmatpush2.msra.mxu0 0.0
    %1646 = vmatprep.mubr.f32.mxu0 0.0
    %1647 = vmatmul.mubr.f32.gmra.mxu0 %v1501
    %v1648 = vpop.f32.mrf.mxu0
    %v1649 = vadd.f32 0.0, %v1648
    %v1650 = vpop.f32.mrf.mxu0
    %v1651 = vadd.f32 0.0, %v1650
    %1652 = vdwg.mxu0
    %v1653 = vadd.f32 %v1471, %v1578
    %v1654 = vadd.f32 %v1472, %v1580
    %v1655 = vadd.f32 %v1473, %v1649
    %v1656 = vadd.f32 %v1474, %v1651
    %v1657 = vld [vmem:[%s3] sm:$0xf]
    %1659 = vset.pattern.permute.xlu0 0
    %1660 = vperm.xlu0 %1659, %v1657
    %v1661 = vpop.permute.xlu0 %1660
    %v1663 = vadd.f32 %v1653, %v1661
    %v1664 = vadd.f32 %v1654, %v1661
    %v1665 = vadd.f32 %v1655, %v1661
    %v1666 = vadd.f32 %v1656, %v1661
    %v1667 = vmax.f32 %v1663, 0.0
    %v1668 = vmax.f32 %v1664, 0.0
    %v1669 = vmax.f32 %v1665, 0.0
    %v1670 = vmax.f32 %v1666, 0.0
    %v1671 = vld [vmem:[%s1] sm:$0x3]
    %1672 = vst [vmem:[#allocation2] sm:$0xf] 0.0
    %v1674 = vlaneseq
    %v1675 = vshrl.u32 %v1674, 7
    %v1676 = vsub.s32 0, %v1675
    %v1677 = vrot.slane %v1671, %v1676
    %v1678 = vlaneseq
    %v1679 = vshrl.u32 %v1678, 7
    %v1680 = vsub.s32 1, %v1679
    %v1681 = vrot.slane %v1671, %v1680
    %v1684 = vmul.f32 %v1667, %v1677
    %v1685 = vmul.f32 %v1668, %v1681
    %v1688 = vcombine.low %v1684, %v1685
    %1690 = vst [vmem:[#allocation2 + $0x4] sm:$0xff] %v1688
    %v1691 = vmul.f32 %v1669, %v1677
    %v1692 = vmul.f32 %v1670, %v1681
    %v1695 = vcombine.low %v1691, %v1692
    %1697 = vst [vmem:[#allocation2 + $0xc] sm:$0xff] %v1695
    %1698 = vst [vmem:[#allocation2 + $0x14] sm:$0xf] 0.0
    %v1699 = vld [vmem:[#allocation2] sm:$0xff]
    %v1700 = vld [vmem:[#allocation2 + $0x8] sm:$0xff]
    %v1701 = vld [vmem:[#allocation2 + $0x10] sm:$0xf]
    %v1702 = vld [vmem:[%s4] sm:$0xff]
    %s1703 = scalar_lea.vmem %s4, 8
    %v1704 = vld [vmem:[%s1703] sm:$0xff]
    %v1708 = vcombine.high %v1699, %v1699
    %v1709 = vcombine.high %v1700, %v1700
    %1710 = vrot.lane.b32.xlu0 %v1699, 16
    %v1711 = vpop.permute.xlu0 %1710
    %1712 = vrot.lane.b32.xlu0 %v1708, 16
    %v1713 = vpop.permute.xlu0 %1712
    %1714 = vrot.lane.b32.xlu0 %v1700, 16
    %v1715 = vpop.permute.xlu0 %1714
    %1716 = vrot.lane.b32.xlu0 %v1709, 16
    %v1717 = vpop.permute.xlu0 %1716
    %1718 = vrot.lane.b32.xlu0 %v1701, 16
    %v1719 = vpop.permute.xlu0 %1718
    %vm1720 = vcmask 130048
    %v1721 = vsel %vm1720, %v1711, %v1713
    %v1722 = vsel %vm1720, %v1713, %v1715
    %v1723 = vsel %vm1720, %v1715, %v1717
    %v1724 = vsel %vm1720, %v1717, %v1719
    %v1726 = vsel %vm75, %v1704, 0
    %v1728 = vsel %vm79, %v1721, 0
    %v1730 = vsel %vm79, %v1722, 0
    %v1732 = vsel %vm79, %v1723, 0
    %v1734 = vsel %vm79, %v1724, 0
    %1736 = vmatprep.subr.mxu0 0.0
    %1737 = vmatpush1.msra.mxu0 0.0
    %1738 = vmatprep.subr.mxu0 0.0
    %1739 = vmatpush1.msra.mxu0 0.0
    %1740 = vmatprep.subr.mxu0 0.0
    %1741 = vmatpush1.msra.mxu0 0.0
    %1742 = vmatprep.subr.mxu0 0.0
    %1743 = vmatpush1.msra.mxu0 0.0
    %1744 = vmatprep.subr.mxu0 0.0
    %1745 = vmatpush1.msra.mxu0 0.0
    %1746 = vmatprep.subr.mxu0 0.0
    %1747 = vmatpush1.msra.mxu0 0.0
    %1748 = vmatprep.subr.mxu0 0.0
    %1749 = vmatpush1.msra.mxu0 0.0
    %1750 = vmatprep.subr.mxu0 0.0
    %1751 = vmatpush1.msra.mxu0 0.0
    %1752 = vmatprep.subr.mxu0 0.0
    %1753 = vmatpush1.msra.mxu0 0.0
    %1754 = vmatprep.subr.mxu0 0.0
    %1755 = vmatpush1.msra.mxu0 0.0
    %1756 = vmatprep.subr.mxu0 0.0
    %1757 = vmatpush1.msra.mxu0 0.0
    %1758 = vmatprep.subr.mxu0 0.0
    %1759 = vmatpush1.msra.mxu0 0.0
    %1760 = vmatprep.subr.mxu0 0.0
    %1761 = vmatpush1.msra.mxu0 0.0
    %1762 = vmatprep.subr.mxu0 0.0
    %1763 = vmatpush1.msra.mxu0 0.0
    %1764 = vmatprep.subr.mxu0 0.0
    %1765 = vmatpush1.msra.mxu0 0.0
    %1766 = vmatprep.subr.mxu0 %v1730
    %1767 = vmatpush1.msra.mxu0 %v1728
    %1768 = vmatprep.subr.mxu0 0.0
    %1769 = vmatpush2.msra.mxu0 0.0
    %1770 = vmatprep.subr.mxu0 0.0
    %1771 = vmatpush2.msra.mxu0 0.0
    %1772 = vmatprep.subr.mxu0 0.0
    %1773 = vmatpush2.msra.mxu0 0.0
    %1774 = vmatprep.subr.mxu0 0.0
    %1775 = vmatpush2.msra.mxu0 0.0
    %1776 = vmatprep.subr.mxu0 0.0
    %1777 = vmatpush2.msra.mxu0 0.0
    %1778 = vmatprep.subr.mxu0 0.0
    %1779 = vmatpush2.msra.mxu0 0.0
    %1780 = vmatprep.subr.mxu0 0.0
    %1781 = vmatpush2.msra.mxu0 0.0
    %1782 = vmatprep.subr.mxu0 0.0
    %1783 = vmatpush2.msra.mxu0 0.0
    %1784 = vmatprep.subr.mxu0 0.0
    %1785 = vmatpush2.msra.mxu0 0.0
    %1786 = vmatprep.subr.mxu0 0.0
    %1787 = vmatpush2.msra.mxu0 0.0
    %1788 = vmatprep.subr.mxu0 0.0
    %1789 = vmatpush2.msra.mxu0 0.0
    %1790 = vmatprep.subr.mxu0 0.0
    %1791 = vmatpush2.msra.mxu0 0.0
    %1792 = vmatprep.subr.mxu0 0.0
    %1793 = vmatpush2.msra.mxu0 0.0
    %1794 = vmatprep.subr.mxu0 0.0
    %1795 = vmatpush2.msra.mxu0 0.0
    %1796 = vmatprep.subr.mxu0 0.0
    %1797 = vmatpush2.msra.mxu0 0.0
    %1798 = vmatprep.subr.mxu0 0.0
    %1799 = vmatpush2.msra.mxu0 0.0
    %1800 = vmatprep.mubr.f32.mxu0 0.0
    %1801 = vmatmul.mubr.f32.gmra.mxu0 %v1726
    %v1802 = vpop.f32.mrf.mxu0
    %v1803 = vadd.f32 0.0, %v1802
    %v1804 = vpop.f32.mrf.mxu0
    %v1805 = vadd.f32 0.0, %v1804
    %1806 = vdwg.mxu0
    %1807 = vmatprep.subr.mxu0 0.0
    %1808 = vmatpush1.msra.mxu0 0.0
    %1809 = vmatprep.subr.mxu0 0.0
    %1810 = vmatpush1.msra.mxu0 0.0
    %1811 = vmatprep.subr.mxu0 0.0
    %1812 = vmatpush1.msra.mxu0 0.0
    %1813 = vmatprep.subr.mxu0 0.0
    %1814 = vmatpush1.msra.mxu0 0.0
    %1815 = vmatprep.subr.mxu0 0.0
    %1816 = vmatpush1.msra.mxu0 0.0
    %1817 = vmatprep.subr.mxu0 0.0
    %1818 = vmatpush1.msra.mxu0 0.0
    %1819 = vmatprep.subr.mxu0 0.0
    %1820 = vmatpush1.msra.mxu0 0.0
    %1821 = vmatprep.subr.mxu0 0.0
    %1822 = vmatpush1.msra.mxu0 0.0
    %1823 = vmatprep.subr.mxu0 0.0
    %1824 = vmatpush1.msra.mxu0 0.0
    %1825 = vmatprep.subr.mxu0 0.0
    %1826 = vmatpush1.msra.mxu0 0.0
    %1827 = vmatprep.subr.mxu0 0.0
    %1828 = vmatpush1.msra.mxu0 0.0
    %1829 = vmatprep.subr.mxu0 0.0
    %1830 = vmatpush1.msra.mxu0 0.0
    %1831 = vmatprep.subr.mxu0 0.0
    %1832 = vmatpush1.msra.mxu0 0.0
    %1833 = vmatprep.subr.mxu0 0.0
    %1834 = vmatpush1.msra.mxu0 0.0
    %1835 = vmatprep.subr.mxu0 0.0
    %1836 = vmatpush1.msra.mxu0 0.0
    %1837 = vmatprep.subr.mxu0 %v1734
    %1838 = vmatpush1.msra.mxu0 %v1732
    %1839 = vmatprep.subr.mxu0 0.0
    %1840 = vmatpush2.msra.mxu0 0.0
    %1841 = vmatprep.subr.mxu0 0.0
    %1842 = vmatpush2.msra.mxu0 0.0
    %1843 = vmatprep.subr.mxu0 0.0
    %1844 = vmatpush2.msra.mxu0 0.0
    %1845 = vmatprep.subr.mxu0 0.0
    %1846 = vmatpush2.msra.mxu0 0.0
    %1847 = vmatprep.subr.mxu0 0.0
    %1848 = vmatpush2.msra.mxu0 0.0
    %1849 = vmatprep.subr.mxu0 0.0
    %1850 = vmatpush2.msra.mxu0 0.0
    %1851 = vmatprep.subr.mxu0 0.0
    %1852 = vmatpush2.msra.mxu0 0.0
    %1853 = vmatprep.subr.mxu0 0.0
    %1854 = vmatpush2.msra.mxu0 0.0
    %1855 = vmatprep.subr.mxu0 0.0
    %1856 = vmatpush2.msra.mxu0 0.0
    %1857 = vmatprep.subr.mxu0 0.0
    %1858 = vmatpush2.msra.mxu0 0.0
    %1859 = vmatprep.subr.mxu0 0.0
    %1860 = vmatpush2.msra.mxu0 0.0
    %1861 = vmatprep.subr.mxu0 0.0
    %1862 = vmatpush2.msra.mxu0 0.0
    %1863 = vmatprep.subr.mxu0 0.0
    %1864 = vmatpush2.msra.mxu0 0.0
    %1865 = vmatprep.subr.mxu0 0.0
    %1866 = vmatpush2.msra.mxu0 0.0
    %1867 = vmatprep.subr.mxu0 0.0
    %1868 = vmatpush2.msra.mxu0 0.0
    %1869 = vmatprep.subr.mxu0 0.0
    %1870 = vmatpush2.msra.mxu0 0.0
    %1871 = vmatprep.mubr.f32.mxu0 0.0
    %1872 = vmatmul.mubr.f32.gmra.mxu0 %v1726
    %v1873 = vpop.f32.mrf.mxu0
    %v1874 = vadd.f32 0.0, %v1873
    %v1875 = vpop.f32.mrf.mxu0
    %v1876 = vadd.f32 0.0, %v1875
    %1877 = vdwg.mxu0
    %1878 = vrot.lane.b32.xlu0 %v1699, 17
    %v1879 = vpop.permute.xlu0 %1878
    %1880 = vrot.lane.b32.xlu0 %v1708, 17
    %v1881 = vpop.permute.xlu0 %1880
    %1882 = vrot.lane.b32.xlu0 %v1700, 17
    %v1883 = vpop.permute.xlu0 %1882
    %1884 = vrot.lane.b32.xlu0 %v1709, 17
    %v1885 = vpop.permute.xlu0 %1884
    %1886 = vrot.lane.b32.xlu0 %v1701, 17
    %v1887 = vpop.permute.xlu0 %1886
    %vm1888 = vcmask 138240
    %v1889 = vsel %vm1888, %v1879, %v1881
    %v1890 = vsel %vm1888, %v1881, %v1883
    %v1891 = vsel %vm1888, %v1883, %v1885
    %v1892 = vsel %vm1888, %v1885, %v1887
    %v1894 = vsel %vm75, %v1702, 0
    %v1896 = vsel %vm79, %v1889, 0
    %v1898 = vsel %vm79, %v1890, 0
    %v1900 = vsel %vm79, %v1891, 0
    %v1902 = vsel %vm79, %v1892, 0
    %1904 = vmatprep.subr.mxu0 0.0
    %1905 = vmatpush1.msra.mxu0 0.0
    %1906 = vmatprep.subr.mxu0 0.0
    %1907 = vmatpush1.msra.mxu0 0.0
    %1908 = vmatprep.subr.mxu0 0.0
    %1909 = vmatpush1.msra.mxu0 0.0
    %1910 = vmatprep.subr.mxu0 0.0
    %1911 = vmatpush1.msra.mxu0 0.0
    %1912 = vmatprep.subr.mxu0 0.0
    %1913 = vmatpush1.msra.mxu0 0.0
    %1914 = vmatprep.subr.mxu0 0.0
    %1915 = vmatpush1.msra.mxu0 0.0
    %1916 = vmatprep.subr.mxu0 0.0
    %1917 = vmatpush1.msra.mxu0 0.0
    %1918 = vmatprep.subr.mxu0 0.0
    %1919 = vmatpush1.msra.mxu0 0.0
    %1920 = vmatprep.subr.mxu0 0.0
    %1921 = vmatpush1.msra.mxu0 0.0
    %1922 = vmatprep.subr.mxu0 0.0
    %1923 = vmatpush1.msra.mxu0 0.0
    %1924 = vmatprep.subr.mxu0 0.0
    %1925 = vmatpush1.msra.mxu0 0.0
    %1926 = vmatprep.subr.mxu0 0.0
    %1927 = vmatpush1.msra.mxu0 0.0
    %1928 = vmatprep.subr.mxu0 0.0
    %1929 = vmatpush1.msra.mxu0 0.0
    %1930 = vmatprep.subr.mxu0 0.0
    %1931 = vmatpush1.msra.mxu0 0.0
    %1932 = vmatprep.subr.mxu0 0.0
    %1933 = vmatpush1.msra.mxu0 0.0
    %1934 = vmatprep.subr.mxu0 %v1898
    %1935 = vmatpush1.msra.mxu0 %v1896
    %1936 = vmatprep.subr.mxu0 0.0
    %1937 = vmatpush2.msra.mxu0 0.0
    %1938 = vmatprep.subr.mxu0 0.0
    %1939 = vmatpush2.msra.mxu0 0.0
    %1940 = vmatprep.subr.mxu0 0.0
    %1941 = vmatpush2.msra.mxu0 0.0
    %1942 = vmatprep.subr.mxu0 0.0
    %1943 = vmatpush2.msra.mxu0 0.0
    %1944 = vmatprep.subr.mxu0 0.0
    %1945 = vmatpush2.msra.mxu0 0.0
    %1946 = vmatprep.subr.mxu0 0.0
    %1947 = vmatpush2.msra.mxu0 0.0
    %1948 = vmatprep.subr.mxu0 0.0
    %1949 = vmatpush2.msra.mxu0 0.0
    %1950 = vmatprep.subr.mxu0 0.0
    %1951 = vmatpush2.msra.mxu0 0.0
    %1952 = vmatprep.subr.mxu0 0.0
    %1953 = vmatpush2.msra.mxu0 0.0
    %1954 = vmatprep.subr.mxu0 0.0
    %1955 = vmatpush2.msra.mxu0 0.0
    %1956 = vmatprep.subr.mxu0 0.0
    %1957 = vmatpush2.msra.mxu0 0.0
    %1958 = vmatprep.subr.mxu0 0.0
    %1959 = vmatpush2.msra.mxu0 0.0
    %1960 = vmatprep.subr.mxu0 0.0
    %1961 = vmatpush2.msra.mxu0 0.0
    %1962 = vmatprep.subr.mxu0 0.0
    %1963 = vmatpush2.msra.mxu0 0.0
    %1964 = vmatprep.subr.mxu0 0.0
    %1965 = vmatpush2.msra.mxu0 0.0
    %1966 = vmatprep.subr.mxu0 0.0
    %1967 = vmatpush2.msra.mxu0 0.0
    %1968 = vmatprep.mubr.f32.mxu0 0.0
    %1969 = vmatmul.mubr.f32.gmra.mxu0 %v1894
    %v1970 = vpop.f32.mrf.mxu0
    %v1971 = vadd.f32 %v1803, %v1970
    %v1972 = vpop.f32.mrf.mxu0
    %v1973 = vadd.f32 %v1805, %v1972
    %1974 = vdwg.mxu0
    %1975 = vmatprep.subr.mxu0 0.0
    %1976 = vmatpush1.msra.mxu0 0.0
    %1977 = vmatprep.subr.mxu0 0.0
    %1978 = vmatpush1.msra.mxu0 0.0
    %1979 = vmatprep.subr.mxu0 0.0
    %1980 = vmatpush1.msra.mxu0 0.0
    %1981 = vmatprep.subr.mxu0 0.0
    %1982 = vmatpush1.msra.mxu0 0.0
    %1983 = vmatprep.subr.mxu0 0.0
    %1984 = vmatpush1.msra.mxu0 0.0
    %1985 = vmatprep.subr.mxu0 0.0
    %1986 = vmatpush1.msra.mxu0 0.0
    %1987 = vmatprep.subr.mxu0 0.0
    %1988 = vmatpush1.msra.mxu0 0.0
    %1989 = vmatprep.subr.mxu0 0.0
    %1990 = vmatpush1.msra.mxu0 0.0
    %1991 = vmatprep.subr.mxu0 0.0
    %1992 = vmatpush1.msra.mxu0 0.0
    %1993 = vmatprep.subr.mxu0 0.0
    %1994 = vmatpush1.msra.mxu0 0.0
    %1995 = vmatprep.subr.mxu0 0.0
    %1996 = vmatpush1.msra.mxu0 0.0
    %1997 = vmatprep.subr.mxu0 0.0
    %1998 = vmatpush1.msra.mxu0 0.0
    %1999 = vmatprep.subr.mxu0 0.0
    %2000 = vmatpush1.msra.mxu0 0.0
    %2001 = vmatprep.subr.mxu0 0.0
    %2002 = vmatpush1.msra.mxu0 0.0
    %2003 = vmatprep.subr.mxu0 0.0
    %2004 = vmatpush1.msra.mxu0 0.0
    %2005 = vmatprep.subr.mxu0 %v1902
    %2006 = vmatpush1.msra.mxu0 %v1900
    %2007 = vmatprep.subr.mxu0 0.0
    %2008 = vmatpush2.msra.mxu0 0.0
    %2009 = vmatprep.subr.mxu0 0.0
    %2010 = vmatpush2.msra.mxu0 0.0
    %2011 = vmatprep.subr.mxu0 0.0
    %2012 = vmatpush2.msra.mxu0 0.0
    %2013 = vmatprep.subr.mxu0 0.0
    %2014 = vmatpush2.msra.mxu0 0.0
    %2015 = vmatprep.subr.mxu0 0.0
    %2016 = vmatpush2.msra.mxu0 0.0
    %2017 = vmatprep.subr.mxu0 0.0
    %2018 = vmatpush2.msra.mxu0 0.0
    %2019 = vmatprep.subr.mxu0 0.0
    %2020 = vmatpush2.msra.mxu0 0.0
    %2021 = vmatprep.subr.mxu0 0.0
    %2022 = vmatpush2.msra.mxu0 0.0
    %2023 = vmatprep.subr.mxu0 0.0
    %2024 = vmatpush2.msra.mxu0 0.0
    %2025 = vmatprep.subr.mxu0 0.0
    %2026 = vmatpush2.msra.mxu0 0.0
    %2027 = vmatprep.subr.mxu0 0.0
    %2028 = vmatpush2.msra.mxu0 0.0
    %2029 = vmatprep.subr.mxu0 0.0
    %2030 = vmatpush2.msra.mxu0 0.0
    %2031 = vmatprep.subr.mxu0 0.0
    %2032 = vmatpush2.msra.mxu0 0.0
    %2033 = vmatprep.subr.mxu0 0.0
    %2034 = vmatpush2.msra.mxu0 0.0
    %2035 = vmatprep.subr.mxu0 0.0
    %2036 = vmatpush2.msra.mxu0 0.0
    %2037 = vmatprep.subr.mxu0 0.0
    %2038 = vmatpush2.msra.mxu0 0.0
    %2039 = vmatprep.mubr.f32.mxu0 0.0
    %2040 = vmatmul.mubr.f32.gmra.mxu0 %v1894
    %v2041 = vpop.f32.mrf.mxu0
    %v2042 = vadd.f32 %v1874, %v2041
    %v2043 = vpop.f32.mrf.mxu0
    %v2044 = vadd.f32 %v1876, %v2043
    %2045 = vdwg.mxu0
    %v2046 = vld [vmem:[#allocation2] sm:$0xff]
    %v2047 = vld [vmem:[#allocation2 + $0x8] sm:$0xff]
    %v2048 = vld [vmem:[#allocation2 + $0x10] sm:$0xf]
    %s2049 = scalar_lea.vmem %s4, 16
    %v2050 = vld [vmem:[%s2049] sm:$0xff]
    %v2054 = vcombine.high %v2046, %v2046
    %v2055 = vcombine.high %v2047, %v2047
    %2056 = vrot.lane.b32.xlu0 %v2046, 15
    %v2057 = vpop.permute.xlu0 %2056
    %2058 = vrot.lane.b32.xlu0 %v2054, 15
    %v2059 = vpop.permute.xlu0 %2058
    %2060 = vrot.lane.b32.xlu0 %v2047, 15
    %v2061 = vpop.permute.xlu0 %2060
    %2062 = vrot.lane.b32.xlu0 %v2055, 15
    %v2063 = vpop.permute.xlu0 %2062
    %2064 = vrot.lane.b32.xlu0 %v2048, 15
    %v2065 = vpop.permute.xlu0 %2064
    %vm2066 = vcmask 121856
    %v2067 = vsel %vm2066, %v2057, %v2059
    %v2068 = vsel %vm2066, %v2059, %v2061
    %v2069 = vsel %vm2066, %v2061, %v2063
    %v2070 = vsel %vm2066, %v2063, %v2065
    %v2072 = vsel %vm75, %v2050, 0
    %v2074 = vsel %vm79, %v2067, 0
    %v2076 = vsel %vm79, %v2068, 0
    %v2078 = vsel %vm79, %v2069, 0
    %v2080 = vsel %vm79, %v2070, 0
    %2082 = vmatprep.subr.mxu0 0.0
    %2083 = vmatpush1.msra.mxu0 0.0
    %2084 = vmatprep.subr.mxu0 0.0
    %2085 = vmatpush1.msra.mxu0 0.0
    %2086 = vmatprep.subr.mxu0 0.0
    %2087 = vmatpush1.msra.mxu0 0.0
    %2088 = vmatprep.subr.mxu0 0.0
    %2089 = vmatpush1.msra.mxu0 0.0
    %2090 = vmatprep.subr.mxu0 0.0
    %2091 = vmatpush1.msra.mxu0 0.0
    %2092 = vmatprep.subr.mxu0 0.0
    %2093 = vmatpush1.msra.mxu0 0.0
    %2094 = vmatprep.subr.mxu0 0.0
    %2095 = vmatpush1.msra.mxu0 0.0
    %2096 = vmatprep.subr.mxu0 0.0
    %2097 = vmatpush1.msra.mxu0 0.0
    %2098 = vmatprep.subr.mxu0 0.0
    %2099 = vmatpush1.msra.mxu0 0.0
    %2100 = vmatprep.subr.mxu0 0.0
    %2101 = vmatpush1.msra.mxu0 0.0
    %2102 = vmatprep.subr.mxu0 0.0
    %2103 = vmatpush1.msra.mxu0 0.0
    %2104 = vmatprep.subr.mxu0 0.0
    %2105 = vmatpush1.msra.mxu0 0.0
    %2106 = vmatprep.subr.mxu0 0.0
    %2107 = vmatpush1.msra.mxu0 0.0
    %2108 = vmatprep.subr.mxu0 0.0
    %2109 = vmatpush1.msra.mxu0 0.0
    %2110 = vmatprep.subr.mxu0 0.0
    %2111 = vmatpush1.msra.mxu0 0.0
    %2112 = vmatprep.subr.mxu0 %v2076
    %2113 = vmatpush1.msra.mxu0 %v2074
    %2114 = vmatprep.subr.mxu0 0.0
    %2115 = vmatpush2.msra.mxu0 0.0
    %2116 = vmatprep.subr.mxu0 0.0
    %2117 = vmatpush2.msra.mxu0 0.0
    %2118 = vmatprep.subr.mxu0 0.0
    %2119 = vmatpush2.msra.mxu0 0.0
    %2120 = vmatprep.subr.mxu0 0.0
    %2121 = vmatpush2.msra.mxu0 0.0
    %2122 = vmatprep.subr.mxu0 0.0
    %2123 = vmatpush2.msra.mxu0 0.0
    %2124 = vmatprep.subr.mxu0 0.0
    %2125 = vmatpush2.msra.mxu0 0.0
    %2126 = vmatprep.subr.mxu0 0.0
    %2127 = vmatpush2.msra.mxu0 0.0
    %2128 = vmatprep.subr.mxu0 0.0
    %2129 = vmatpush2.msra.mxu0 0.0
    %2130 = vmatprep.subr.mxu0 0.0
    %2131 = vmatpush2.msra.mxu0 0.0
    %2132 = vmatprep.subr.mxu0 0.0
    %2133 = vmatpush2.msra.mxu0 0.0
    %2134 = vmatprep.subr.mxu0 0.0
    %2135 = vmatpush2.msra.mxu0 0.0
    %2136 = vmatprep.subr.mxu0 0.0
    %2137 = vmatpush2.msra.mxu0 0.0
    %2138 = vmatprep.subr.mxu0 0.0
    %2139 = vmatpush2.msra.mxu0 0.0
    %2140 = vmatprep.subr.mxu0 0.0
    %2141 = vmatpush2.msra.mxu0 0.0
    %2142 = vmatprep.subr.mxu0 0.0
    %2143 = vmatpush2.msra.mxu0 0.0
    %2144 = vmatprep.subr.mxu0 0.0
    %2145 = vmatpush2.msra.mxu0 0.0
    %2146 = vmatprep.mubr.f32.mxu0 0.0
    %2147 = vmatmul.mubr.f32.gmra.mxu0 %v2072
    %v2148 = vpop.f32.mrf.mxu0
    %v2149 = vadd.f32 0.0, %v2148
    %v2150 = vpop.f32.mrf.mxu0
    %v2151 = vadd.f32 0.0, %v2150
    %2152 = vdwg.mxu0
    %2153 = vmatprep.subr.mxu0 0.0
    %2154 = vmatpush1.msra.mxu0 0.0
    %2155 = vmatprep.subr.mxu0 0.0
    %2156 = vmatpush1.msra.mxu0 0.0
    %2157 = vmatprep.subr.mxu0 0.0
    %2158 = vmatpush1.msra.mxu0 0.0
    %2159 = vmatprep.subr.mxu0 0.0
    %2160 = vmatpush1.msra.mxu0 0.0
    %2161 = vmatprep.subr.mxu0 0.0
    %2162 = vmatpush1.msra.mxu0 0.0
    %2163 = vmatprep.subr.mxu0 0.0
    %2164 = vmatpush1.msra.mxu0 0.0
    %2165 = vmatprep.subr.mxu0 0.0
    %2166 = vmatpush1.msra.mxu0 0.0
    %2167 = vmatprep.subr.mxu0 0.0
    %2168 = vmatpush1.msra.mxu0 0.0
    %2169 = vmatprep.subr.mxu0 0.0
    %2170 = vmatpush1.msra.mxu0 0.0
    %2171 = vmatprep.subr.mxu0 0.0
    %2172 = vmatpush1.msra.mxu0 0.0
    %2173 = vmatprep.subr.mxu0 0.0
    %2174 = vmatpush1.msra.mxu0 0.0
    %2175 = vmatprep.subr.mxu0 0.0
    %2176 = vmatpush1.msra.mxu0 0.0
    %2177 = vmatprep.subr.mxu0 0.0
    %2178 = vmatpush1.msra.mxu0 0.0
    %2179 = vmatprep.subr.mxu0 0.0
    %2180 = vmatpush1.msra.mxu0 0.0
    %2181 = vmatprep.subr.mxu0 0.0
    %2182 = vmatpush1.msra.mxu0 0.0
    %2183 = vmatprep.subr.mxu0 %v2080
    %2184 = vmatpush1.msra.mxu0 %v2078
    %2185 = vmatprep.subr.mxu0 0.0
    %2186 = vmatpush2.msra.mxu0 0.0
    %2187 = vmatprep.subr.mxu0 0.0
    %2188 = vmatpush2.msra.mxu0 0.0
    %2189 = vmatprep.subr.mxu0 0.0
    %2190 = vmatpush2.msra.mxu0 0.0
    %2191 = vmatprep.subr.mxu0 0.0
    %2192 = vmatpush2.msra.mxu0 0.0
    %2193 = vmatprep.subr.mxu0 0.0
    %2194 = vmatpush2.msra.mxu0 0.0
    %2195 = vmatprep.subr.mxu0 0.0
    %2196 = vmatpush2.msra.mxu0 0.0
    %2197 = vmatprep.subr.mxu0 0.0
    %2198 = vmatpush2.msra.mxu0 0.0
    %2199 = vmatprep.subr.mxu0 0.0
    %2200 = vmatpush2.msra.mxu0 0.0
    %2201 = vmatprep.subr.mxu0 0.0
    %2202 = vmatpush2.msra.mxu0 0.0
    %2203 = vmatprep.subr.mxu0 0.0
    %2204 = vmatpush2.msra.mxu0 0.0
    %2205 = vmatprep.subr.mxu0 0.0
    %2206 = vmatpush2.msra.mxu0 0.0
    %2207 = vmatprep.subr.mxu0 0.0
    %2208 = vmatpush2.msra.mxu0 0.0
    %2209 = vmatprep.subr.mxu0 0.0
    %2210 = vmatpush2.msra.mxu0 0.0
    %2211 = vmatprep.subr.mxu0 0.0
    %2212 = vmatpush2.msra.mxu0 0.0
    %2213 = vmatprep.subr.mxu0 0.0
    %2214 = vmatpush2.msra.mxu0 0.0
    %2215 = vmatprep.subr.mxu0 0.0
    %2216 = vmatpush2.msra.mxu0 0.0
    %2217 = vmatprep.mubr.f32.mxu0 0.0
    %2218 = vmatmul.mubr.f32.gmra.mxu0 %v2072
    %v2219 = vpop.f32.mrf.mxu0
    %v2220 = vadd.f32 0.0, %v2219
    %v2221 = vpop.f32.mrf.mxu0
    %v2222 = vadd.f32 0.0, %v2221
    %2223 = vdwg.mxu0
    %v2224 = vadd.f32 %v1971, %v2149
    %v2225 = vadd.f32 %v1973, %v2151
    %v2226 = vadd.f32 %v2042, %v2220
    %v2227 = vadd.f32 %v2044, %v2222
    %v2228 = vld [vmem:[#allocation2] sm:$0xff]
    %v2229 = vld [vmem:[#allocation2 + $0x8] sm:$0xff]
    %v2230 = vld [vmem:[#allocation2 + $0x10] sm:$0xf]
    %s2231 = scalar_lea.vmem %s4, 24
    %v2232 = vld [vmem:[%s2231] sm:$0xff]
    %v2236 = vcombine.high %v2228, %v2228
    %v2237 = vcombine.high %v2229, %v2229
    %2238 = vrot.lane.b32.xlu0 %v2228, 1
    %v2239 = vpop.permute.xlu0 %2238
    %2240 = vrot.lane.b32.xlu0 %v2236, 1
    %v2241 = vpop.permute.xlu0 %2240
    %2242 = vrot.lane.b32.xlu0 %v2229, 1
    %v2243 = vpop.permute.xlu0 %2242
    %2244 = vrot.lane.b32.xlu0 %v2237, 1
    %v2245 = vpop.permute.xlu0 %2244
    %2246 = vrot.lane.b32.xlu0 %v2230, 1
    %v2247 = vpop.permute.xlu0 %2246
    %vm2248 = vcmask 7168
    %v2249 = vsel %vm2248, %v2239, %v2241
    %v2250 = vsel %vm2248, %v2241, %v2243
    %v2251 = vsel %vm2248, %v2243, %v2245
    %v2252 = vsel %vm2248, %v2245, %v2247
    %v2254 = vsel %vm75, %v2232, 0
    %v2256 = vsel %vm79, %v2249, 0
    %v2258 = vsel %vm79, %v2250, 0
    %v2260 = vsel %vm79, %v2251, 0
    %v2262 = vsel %vm79, %v2252, 0
    %2264 = vmatprep.subr.mxu0 0.0
    %2265 = vmatpush1.msra.mxu0 0.0
    %2266 = vmatprep.subr.mxu0 0.0
    %2267 = vmatpush1.msra.mxu0 0.0
    %2268 = vmatprep.subr.mxu0 0.0
    %2269 = vmatpush1.msra.mxu0 0.0
    %2270 = vmatprep.subr.mxu0 0.0
    %2271 = vmatpush1.msra.mxu0 0.0
    %2272 = vmatprep.subr.mxu0 0.0
    %2273 = vmatpush1.msra.mxu0 0.0
    %2274 = vmatprep.subr.mxu0 0.0
    %2275 = vmatpush1.msra.mxu0 0.0
    %2276 = vmatprep.subr.mxu0 0.0
    %2277 = vmatpush1.msra.mxu0 0.0
    %2278 = vmatprep.subr.mxu0 0.0
    %2279 = vmatpush1.msra.mxu0 0.0
    %2280 = vmatprep.subr.mxu0 0.0
    %2281 = vmatpush1.msra.mxu0 0.0
    %2282 = vmatprep.subr.mxu0 0.0
    %2283 = vmatpush1.msra.mxu0 0.0
    %2284 = vmatprep.subr.mxu0 0.0
    %2285 = vmatpush1.msra.mxu0 0.0
    %2286 = vmatprep.subr.mxu0 0.0
    %2287 = vmatpush1.msra.mxu0 0.0
    %2288 = vmatprep.subr.mxu0 0.0
    %2289 = vmatpush1.msra.mxu0 0.0
    %2290 = vmatprep.subr.mxu0 0.0
    %2291 = vmatpush1.msra.mxu0 0.0
    %2292 = vmatprep.subr.mxu0 0.0
    %2293 = vmatpush1.msra.mxu0 0.0
    %2294 = vmatprep.subr.mxu0 %v2258
    %2295 = vmatpush1.msra.mxu0 %v2256
    %2296 = vmatprep.subr.mxu0 0.0
    %2297 = vmatpush2.msra.mxu0 0.0
    %2298 = vmatprep.subr.mxu0 0.0
    %2299 = vmatpush2.msra.mxu0 0.0
    %2300 = vmatprep.subr.mxu0 0.0
    %2301 = vmatpush2.msra.mxu0 0.0
    %2302 = vmatprep.subr.mxu0 0.0
    %2303 = vmatpush2.msra.mxu0 0.0
    %2304 = vmatprep.subr.mxu0 0.0
    %2305 = vmatpush2.msra.mxu0 0.0
    %2306 = vmatprep.subr.mxu0 0.0
    %2307 = vmatpush2.msra.mxu0 0.0
    %2308 = vmatprep.subr.mxu0 0.0
    %2309 = vmatpush2.msra.mxu0 0.0
    %2310 = vmatprep.subr.mxu0 0.0
    %2311 = vmatpush2.msra.mxu0 0.0
    %2312 = vmatprep.subr.mxu0 0.0
    %2313 = vmatpush2.msra.mxu0 0.0
    %2314 = vmatprep.subr.mxu0 0.0
    %2315 = vmatpush2.msra.mxu0 0.0
    %2316 = vmatprep.subr.mxu0 0.0
    %2317 = vmatpush2.msra.mxu0 0.0
    %2318 = vmatprep.subr.mxu0 0.0
    %2319 = vmatpush2.msra.mxu0 0.0
    %2320 = vmatprep.subr.mxu0 0.0
    %2321 = vmatpush2.msra.mxu0 0.0
    %2322 = vmatprep.subr.mxu0 0.0
    %2323 = vmatpush2.msra.mxu0 0.0
    %2324 = vmatprep.subr.mxu0 0.0
    %2325 = vmatpush2.msra.mxu0 0.0
    %2326 = vmatprep.subr.mxu0 0.0
    %2327 = vmatpush2.msra.mxu0 0.0
    %2328 = vmatprep.mubr.f32.mxu0 0.0
    %2329 = vmatmul.mubr.f32.gmra.mxu0 %v2254
    %v2330 = vpop.f32.mrf.mxu0
    %v2331 = vadd.f32 0.0, %v2330
    %v2332 = vpop.f32.mrf.mxu0
    %v2333 = vadd.f32 0.0, %v2332
    %2334 = vdwg.mxu0
    %2335 = vmatprep.subr.mxu0 0.0
    %2336 = vmatpush1.msra.mxu0 0.0
    %2337 = vmatprep.subr.mxu0 0.0
    %2338 = vmatpush1.msra.mxu0 0.0
    %2339 = vmatprep.subr.mxu0 0.0
    %2340 = vmatpush1.msra.mxu0 0.0
    %2341 = vmatprep.subr.mxu0 0.0
    %2342 = vmatpush1.msra.mxu0 0.0
    %2343 = vmatprep.subr.mxu0 0.0
    %2344 = vmatpush1.msra.mxu0 0.0
    %2345 = vmatprep.subr.mxu0 0.0
    %2346 = vmatpush1.msra.mxu0 0.0
    %2347 = vmatprep.subr.mxu0 0.0
    %2348 = vmatpush1.msra.mxu0 0.0
    %2349 = vmatprep.subr.mxu0 0.0
    %2350 = vmatpush1.msra.mxu0 0.0
    %2351 = vmatprep.subr.mxu0 0.0
    %2352 = vmatpush1.msra.mxu0 0.0
    %2353 = vmatprep.subr.mxu0 0.0
    %2354 = vmatpush1.msra.mxu0 0.0
    %2355 = vmatprep.subr.mxu0 0.0
    %2356 = vmatpush1.msra.mxu0 0.0
    %2357 = vmatprep.subr.mxu0 0.0
    %2358 = vmatpush1.msra.mxu0 0.0
    %2359 = vmatprep.subr.mxu0 0.0
    %2360 = vmatpush1.msra.mxu0 0.0
    %2361 = vmatprep.subr.mxu0 0.0
    %2362 = vmatpush1.msra.mxu0 0.0
    %2363 = vmatprep.subr.mxu0 0.0
    %2364 = vmatpush1.msra.mxu0 0.0
    %2365 = vmatprep.subr.mxu0 %v2262
    %2366 = vmatpush1.msra.mxu0 %v2260
    %2367 = vmatprep.subr.mxu0 0.0
    %2368 = vmatpush2.msra.mxu0 0.0
    %2369 = vmatprep.subr.mxu0 0.0
    %2370 = vmatpush2.msra.mxu0 0.0
    %2371 = vmatprep.subr.mxu0 0.0
    %2372 = vmatpush2.msra.mxu0 0.0
    %2373 = vmatprep.subr.mxu0 0.0
    %2374 = vmatpush2.msra.mxu0 0.0
    %2375 = vmatprep.subr.mxu0 0.0
    %2376 = vmatpush2.msra.mxu0 0.0
    %2377 = vmatprep.subr.mxu0 0.0
    %2378 = vmatpush2.msra.mxu0 0.0
    %2379 = vmatprep.subr.mxu0 0.0
    %2380 = vmatpush2.msra.mxu0 0.0
    %2381 = vmatprep.subr.mxu0 0.0
    %2382 = vmatpush2.msra.mxu0 0.0
    %2383 = vmatprep.subr.mxu0 0.0
    %2384 = vmatpush2.msra.mxu0 0.0
    %2385 = vmatprep.subr.mxu0 0.0
    %2386 = vmatpush2.msra.mxu0 0.0
    %2387 = vmatprep.subr.mxu0 0.0
    %2388 = vmatpush2.msra.mxu0 0.0
    %2389 = vmatprep.subr.mxu0 0.0
    %2390 = vmatpush2.msra.mxu0 0.0
    %2391 = vmatprep.subr.mxu0 0.0
    %2392 = vmatpush2.msra.mxu0 0.0
    %2393 = vmatprep.subr.mxu0 0.0
    %2394 = vmatpush2.msra.mxu0 0.0
    %2395 = vmatprep.subr.mxu0 0.0
    %2396 = vmatpush2.msra.mxu0 0.0
    %2397 = vmatprep.subr.mxu0 0.0
    %2398 = vmatpush2.msra.mxu0 0.0
    %2399 = vmatprep.mubr.f32.mxu0 0.0
    %2400 = vmatmul.mubr.f32.gmra.mxu0 %v2254
    %v2401 = vpop.f32.mrf.mxu0
    %v2402 = vadd.f32 0.0, %v2401
    %v2403 = vpop.f32.mrf.mxu0
    %v2404 = vadd.f32 0.0, %v2403
    %2405 = vdwg.mxu0
    %v2406 = vadd.f32 %v2224, %v2331
    %v2407 = vadd.f32 %v2225, %v2333
    %v2408 = vadd.f32 %v2226, %v2402
    %v2409 = vadd.f32 %v2227, %v2404
    %v2410 = vld [vmem:[#allocation2 + $0x4] sm:$0xff]
    %v2411 = vld [vmem:[#allocation2 + $0xc] sm:$0xff]
    %s2412 = scalar_lea.vmem %s4, 32
    %v2413 = vld [vmem:[%s2412] sm:$0xff]
    %v2416 = vcombine.high %v2410, %v2410
    %v2417 = vcombine.high %v2411, %v2411
    %v2419 = vsel %vm75, %v2413, 0
    %v2421 = vsel %vm79, %v2410, 0
    %v2423 = vsel %vm79, %v2416, 0
    %v2425 = vsel %vm79, %v2411, 0
    %v2427 = vsel %vm79, %v2417, 0
    %2429 = vmatprep.subr.mxu0 0.0
    %2430 = vmatpush1.msra.mxu0 0.0
    %2431 = vmatprep.subr.mxu0 0.0
    %2432 = vmatpush1.msra.mxu0 0.0
    %2433 = vmatprep.subr.mxu0 0.0
    %2434 = vmatpush1.msra.mxu0 0.0
    %2435 = vmatprep.subr.mxu0 0.0
    %2436 = vmatpush1.msra.mxu0 0.0
    %2437 = vmatprep.subr.mxu0 0.0
    %2438 = vmatpush1.msra.mxu0 0.0
    %2439 = vmatprep.subr.mxu0 0.0
    %2440 = vmatpush1.msra.mxu0 0.0
    %2441 = vmatprep.subr.mxu0 0.0
    %2442 = vmatpush1.msra.mxu0 0.0
    %2443 = vmatprep.subr.mxu0 0.0
    %2444 = vmatpush1.msra.mxu0 0.0
    %2445 = vmatprep.subr.mxu0 0.0
    %2446 = vmatpush1.msra.mxu0 0.0
    %2447 = vmatprep.subr.mxu0 0.0
    %2448 = vmatpush1.msra.mxu0 0.0
    %2449 = vmatprep.subr.mxu0 0.0
    %2450 = vmatpush1.msra.mxu0 0.0
    %2451 = vmatprep.subr.mxu0 0.0
    %2452 = vmatpush1.msra.mxu0 0.0
    %2453 = vmatprep.subr.mxu0 0.0
    %2454 = vmatpush1.msra.mxu0 0.0
    %2455 = vmatprep.subr.mxu0 0.0
    %2456 = vmatpush1.msra.mxu0 0.0
    %2457 = vmatprep.subr.mxu0 0.0
    %2458 = vmatpush1.msra.mxu0 0.0
    %2459 = vmatprep.subr.mxu0 %v2423
    %2460 = vmatpush1.msra.mxu0 %v2421
    %2461 = vmatprep.subr.mxu0 0.0
    %2462 = vmatpush2.msra.mxu0 0.0
    %2463 = vmatprep.subr.mxu0 0.0
    %2464 = vmatpush2.msra.mxu0 0.0
    %2465 = vmatprep.subr.mxu0 0.0
    %2466 = vmatpush2.msra.mxu0 0.0
    %2467 = vmatprep.subr.mxu0 0.0
    %2468 = vmatpush2.msra.mxu0 0.0
    %2469 = vmatprep.subr.mxu0 0.0
    %2470 = vmatpush2.msra.mxu0 0.0
    %2471 = vmatprep.subr.mxu0 0.0
    %2472 = vmatpush2.msra.mxu0 0.0
    %2473 = vmatprep.subr.mxu0 0.0
    %2474 = vmatpush2.msra.mxu0 0.0
    %2475 = vmatprep.subr.mxu0 0.0
    %2476 = vmatpush2.msra.mxu0 0.0
    %2477 = vmatprep.subr.mxu0 0.0
    %2478 = vmatpush2.msra.mxu0 0.0
    %2479 = vmatprep.subr.mxu0 0.0
    %2480 = vmatpush2.msra.mxu0 0.0
    %2481 = vmatprep.subr.mxu0 0.0
    %2482 = vmatpush2.msra.mxu0 0.0
    %2483 = vmatprep.subr.mxu0 0.0
    %2484 = vmatpush2.msra.mxu0 0.0
    %2485 = vmatprep.subr.mxu0 0.0
    %2486 = vmatpush2.msra.mxu0 0.0
    %2487 = vmatprep.subr.mxu0 0.0
    %2488 = vmatpush2.msra.mxu0 0.0
    %2489 = vmatprep.subr.mxu0 0.0
    %2490 = vmatpush2.msra.mxu0 0.0
    %2491 = vmatprep.subr.mxu0 0.0
    %2492 = vmatpush2.msra.mxu0 0.0
    %2493 = vmatprep.mubr.f32.mxu0 0.0
    %2494 = vmatmul.mubr.f32.gmra.mxu0 %v2419
    %v2495 = vpop.f32.mrf.mxu0
    %v2496 = vadd.f32 0.0, %v2495
    %v2497 = vpop.f32.mrf.mxu0
    %v2498 = vadd.f32 0.0, %v2497
    %2499 = vdwg.mxu0
    %2500 = vmatprep.subr.mxu0 0.0
    %2501 = vmatpush1.msra.mxu0 0.0
    %2502 = vmatprep.subr.mxu0 0.0
    %2503 = vmatpush1.msra.mxu0 0.0
    %2504 = vmatprep.subr.mxu0 0.0
    %2505 = vmatpush1.msra.mxu0 0.0
    %2506 = vmatprep.subr.mxu0 0.0
    %2507 = vmatpush1.msra.mxu0 0.0
    %2508 = vmatprep.subr.mxu0 0.0
    %2509 = vmatpush1.msra.mxu0 0.0
    %2510 = vmatprep.subr.mxu0 0.0
    %2511 = vmatpush1.msra.mxu0 0.0
    %2512 = vmatprep.subr.mxu0 0.0
    %2513 = vmatpush1.msra.mxu0 0.0
    %2514 = vmatprep.subr.mxu0 0.0
    %2515 = vmatpush1.msra.mxu0 0.0
    %2516 = vmatprep.subr.mxu0 0.0
    %2517 = vmatpush1.msra.mxu0 0.0
    %2518 = vmatprep.subr.mxu0 0.0
    %2519 = vmatpush1.msra.mxu0 0.0
    %2520 = vmatprep.subr.mxu0 0.0
    %2521 = vmatpush1.msra.mxu0 0.0
    %2522 = vmatprep.subr.mxu0 0.0
    %2523 = vmatpush1.msra.mxu0 0.0
    %2524 = vmatprep.subr.mxu0 0.0
    %2525 = vmatpush1.msra.mxu0 0.0
    %2526 = vmatprep.subr.mxu0 0.0
    %2527 = vmatpush1.msra.mxu0 0.0
    %2528 = vmatprep.subr.mxu0 0.0
    %2529 = vmatpush1.msra.mxu0 0.0
    %2530 = vmatprep.subr.mxu0 %v2427
    %2531 = vmatpush1.msra.mxu0 %v2425
    %2532 = vmatprep.subr.mxu0 0.0
    %2533 = vmatpush2.msra.mxu0 0.0
    %2534 = vmatprep.subr.mxu0 0.0
    %2535 = vmatpush2.msra.mxu0 0.0
    %2536 = vmatprep.subr.mxu0 0.0
    %2537 = vmatpush2.msra.mxu0 0.0
    %2538 = vmatprep.subr.mxu0 0.0
    %2539 = vmatpush2.msra.mxu0 0.0
    %2540 = vmatprep.subr.mxu0 0.0
    %2541 = vmatpush2.msra.mxu0 0.0
    %2542 = vmatprep.subr.mxu0 0.0
    %2543 = vmatpush2.msra.mxu0 0.0
    %2544 = vmatprep.subr.mxu0 0.0
    %2545 = vmatpush2.msra.mxu0 0.0
    %2546 = vmatprep.subr.mxu0 0.0
    %2547 = vmatpush2.msra.mxu0 0.0
    %2548 = vmatprep.subr.mxu0 0.0
    %2549 = vmatpush2.msra.mxu0 0.0
    %2550 = vmatprep.subr.mxu0 0.0
    %2551 = vmatpush2.msra.mxu0 0.0
    %2552 = vmatprep.subr.mxu0 0.0
    %2553 = vmatpush2.msra.mxu0 0.0
    %2554 = vmatprep.subr.mxu0 0.0
    %2555 = vmatpush2.msra.mxu0 0.0
    %2556 = vmatprep.subr.mxu0 0.0
    %2557 = vmatpush2.msra.mxu0 0.0
    %2558 = vmatprep.subr.mxu0 0.0
    %2559 = vmatpush2.msra.mxu0 0.0
    %2560 = vmatprep.subr.mxu0 0.0
    %2561 = vmatpush2.msra.mxu0 0.0
    %2562 = vmatprep.subr.mxu0 0.0
    %2563 = vmatpush2.msra.mxu0 0.0
    %2564 = vmatprep.mubr.f32.mxu0 0.0
    %2565 = vmatmul.mubr.f32.gmra.mxu0 %v2419
    %v2566 = vpop.f32.mrf.mxu0
    %v2567 = vadd.f32 0.0, %v2566
    %v2568 = vpop.f32.mrf.mxu0
    %v2569 = vadd.f32 0.0, %v2568
    %2570 = vdwg.mxu0
    %v2571 = vadd.f32 %v2406, %v2496
    %v2572 = vadd.f32 %v2407, %v2498
    %v2573 = vadd.f32 %v2408, %v2567
    %v2574 = vadd.f32 %v2409, %v2569
    %v2575 = vld [vmem:[#allocation2 + $0x4] sm:$0xff]
    %v2576 = vld [vmem:[#allocation2 + $0xc] sm:$0xff]
    %v2577 = vld [vmem:[#allocation2 + $0x14] sm:$0xf]
    %s2578 = scalar_lea.vmem %s4, 40
    %v2579 = vld [vmem:[%s2578] sm:$0xff]
    %v2583 = vcombine.high %v2575, %v2575
    %v2584 = vcombine.high %v2576, %v2576
    %2585 = vrot.lane.b32.xlu0 %v2575, 127
    %v2586 = vpop.permute.xlu0 %2585
    %2587 = vrot.lane.b32.xlu0 %v2583, 127
    %v2588 = vpop.permute.xlu0 %2587
    %2589 = vrot.lane.b32.xlu0 %v2576, 127
    %v2590 = vpop.permute.xlu0 %2589
    %2591 = vrot.lane.b32.xlu0 %v2584, 127
    %v2592 = vpop.permute.xlu0 %2591
    %2593 = vrot.lane.b32.xlu0 %v2577, 127
    %v2594 = vpop.permute.xlu0 %2593
    %v2595 = vsel %vm70, %v2586, %v2588
    %v2596 = vsel %vm70, %v2588, %v2590
    %v2597 = vsel %vm70, %v2590, %v2592
    %v2598 = vsel %vm70, %v2592, %v2594
    %v2600 = vsel %vm75, %v2579, 0
    %v2602 = vsel %vm79, %v2595, 0
    %v2604 = vsel %vm79, %v2596, 0
    %v2606 = vsel %vm79, %v2597, 0
    %v2608 = vsel %vm79, %v2598, 0
    %2610 = vmatprep.subr.mxu0 0.0
    %2611 = vmatpush1.msra.mxu0 0.0
    %2612 = vmatprep.subr.mxu0 0.0
    %2613 = vmatpush1.msra.mxu0 0.0
    %2614 = vmatprep.subr.mxu0 0.0
    %2615 = vmatpush1.msra.mxu0 0.0
    %2616 = vmatprep.subr.mxu0 0.0
    %2617 = vmatpush1.msra.mxu0 0.0
    %2618 = vmatprep.subr.mxu0 0.0
    %2619 = vmatpush1.msra.mxu0 0.0
    %2620 = vmatprep.subr.mxu0 0.0
    %2621 = vmatpush1.msra.mxu0 0.0
    %2622 = vmatprep.subr.mxu0 0.0
    %2623 = vmatpush1.msra.mxu0 0.0
    %2624 = vmatprep.subr.mxu0 0.0
    %2625 = vmatpush1.msra.mxu0 0.0
    %2626 = vmatprep.subr.mxu0 0.0
    %2627 = vmatpush1.msra.mxu0 0.0
    %2628 = vmatprep.subr.mxu0 0.0
    %2629 = vmatpush1.msra.mxu0 0.0
    %2630 = vmatprep.subr.mxu0 0.0
    %2631 = vmatpush1.msra.mxu0 0.0
    %2632 = vmatprep.subr.mxu0 0.0
    %2633 = vmatpush1.msra.mxu0 0.0
    %2634 = vmatprep.subr.mxu0 0.0
    %2635 = vmatpush1.msra.mxu0 0.0
    %2636 = vmatprep.subr.mxu0 0.0
    %2637 = vmatpush1.msra.mxu0 0.0
    %2638 = vmatprep.subr.mxu0 0.0
    %2639 = vmatpush1.msra.mxu0 0.0
    %2640 = vmatprep.subr.mxu0 %v2604
    %2641 = vmatpush1.msra.mxu0 %v2602
    %2642 = vmatprep.subr.mxu0 0.0
    %2643 = vmatpush2.msra.mxu0 0.0
    %2644 = vmatprep.subr.mxu0 0.0
    %2645 = vmatpush2.msra.mxu0 0.0
    %2646 = vmatprep.subr.mxu0 0.0
    %2647 = vmatpush2.msra.mxu0 0.0
    %2648 = vmatprep.subr.mxu0 0.0
    %2649 = vmatpush2.msra.mxu0 0.0
    %2650 = vmatprep.subr.mxu0 0.0
    %2651 = vmatpush2.msra.mxu0 0.0
    %2652 = vmatprep.subr.mxu0 0.0
    %2653 = vmatpush2.msra.mxu0 0.0
    %2654 = vmatprep.subr.mxu0 0.0
    %2655 = vmatpush2.msra.mxu0 0.0
    %2656 = vmatprep.subr.mxu0 0.0
    %2657 = vmatpush2.msra.mxu0 0.0
    %2658 = vmatprep.subr.mxu0 0.0
    %2659 = vmatpush2.msra.mxu0 0.0
    %2660 = vmatprep.subr.mxu0 0.0
    %2661 = vmatpush2.msra.mxu0 0.0
    %2662 = vmatprep.subr.mxu0 0.0
    %2663 = vmatpush2.msra.mxu0 0.0
    %2664 = vmatprep.subr.mxu0 0.0
    %2665 = vmatpush2.msra.mxu0 0.0
    %2666 = vmatprep.subr.mxu0 0.0
    %2667 = vmatpush2.msra.mxu0 0.0
    %2668 = vmatprep.subr.mxu0 0.0
    %2669 = vmatpush2.msra.mxu0 0.0
    %2670 = vmatprep.subr.mxu0 0.0
    %2671 = vmatpush2.msra.mxu0 0.0
    %2672 = vmatprep.subr.mxu0 0.0
    %2673 = vmatpush2.msra.mxu0 0.0
    %2674 = vmatprep.mubr.f32.mxu0 0.0
    %2675 = vmatmul.mubr.f32.gmra.mxu0 %v2600
    %v2676 = vpop.f32.mrf.mxu0
    %v2677 = vadd.f32 0.0, %v2676
    %v2678 = vpop.f32.mrf.mxu0
    %v2679 = vadd.f32 0.0, %v2678
    %2680 = vdwg.mxu0
    %2681 = vmatprep.subr.mxu0 0.0
    %2682 = vmatpush1.msra.mxu0 0.0
    %2683 = vmatprep.subr.mxu0 0.0
    %2684 = vmatpush1.msra.mxu0 0.0
    %2685 = vmatprep.subr.mxu0 0.0
    %2686 = vmatpush1.msra.mxu0 0.0
    %2687 = vmatprep.subr.mxu0 0.0
    %2688 = vmatpush1.msra.mxu0 0.0
    %2689 = vmatprep.subr.mxu0 0.0
    %2690 = vmatpush1.msra.mxu0 0.0
    %2691 = vmatprep.subr.mxu0 0.0
    %2692 = vmatpush1.msra.mxu0 0.0
    %2693 = vmatprep.subr.mxu0 0.0
    %2694 = vmatpush1.msra.mxu0 0.0
    %2695 = vmatprep.subr.mxu0 0.0
    %2696 = vmatpush1.msra.mxu0 0.0
    %2697 = vmatprep.subr.mxu0 0.0
    %2698 = vmatpush1.msra.mxu0 0.0
    %2699 = vmatprep.subr.mxu0 0.0
    %2700 = vmatpush1.msra.mxu0 0.0
    %2701 = vmatprep.subr.mxu0 0.0
    %2702 = vmatpush1.msra.mxu0 0.0
    %2703 = vmatprep.subr.mxu0 0.0
    %2704 = vmatpush1.msra.mxu0 0.0
    %2705 = vmatprep.subr.mxu0 0.0
    %2706 = vmatpush1.msra.mxu0 0.0
    %2707 = vmatprep.subr.mxu0 0.0
    %2708 = vmatpush1.msra.mxu0 0.0
    %2709 = vmatprep.subr.mxu0 0.0
    %2710 = vmatpush1.msra.mxu0 0.0
    %2711 = vmatprep.subr.mxu0 %v2608
    %2712 = vmatpush1.msra.mxu0 %v2606
    %2713 = vmatprep.subr.mxu0 0.0
    %2714 = vmatpush2.msra.mxu0 0.0
    %2715 = vmatprep.subr.mxu0 0.0
    %2716 = vmatpush2.msra.mxu0 0.0
    %2717 = vmatprep.subr.mxu0 0.0
    %2718 = vmatpush2.msra.mxu0 0.0
    %2719 = vmatprep.subr.mxu0 0.0
    %2720 = vmatpush2.msra.mxu0 0.0
    %2721 = vmatprep.subr.mxu0 0.0
    %2722 = vmatpush2.msra.mxu0 0.0
    %2723 = vmatprep.subr.mxu0 0.0
    %2724 = vmatpush2.msra.mxu0 0.0
    %2725 = vmatprep.subr.mxu0 0.0
    %2726 = vmatpush2.msra.mxu0 0.0
    %2727 = vmatprep.subr.mxu0 0.0
    %2728 = vmatpush2.msra.mxu0 0.0
    %2729 = vmatprep.subr.mxu0 0.0
    %2730 = vmatpush2.msra.mxu0 0.0
    %2731 = vmatprep.subr.mxu0 0.0
    %2732 = vmatpush2.msra.mxu0 0.0
    %2733 = vmatprep.subr.mxu0 0.0
    %2734 = vmatpush2.msra.mxu0 0.0
    %2735 = vmatprep.subr.mxu0 0.0
    %2736 = vmatpush2.msra.mxu0 0.0
    %2737 = vmatprep.subr.mxu0 0.0
    %2738 = vmatpush2.msra.mxu0 0.0
    %2739 = vmatprep.subr.mxu0 0.0
    %2740 = vmatpush2.msra.mxu0 0.0
    %2741 = vmatprep.subr.mxu0 0.0
    %2742 = vmatpush2.msra.mxu0 0.0
    %2743 = vmatprep.subr.mxu0 0.0
    %2744 = vmatpush2.msra.mxu0 0.0
    %2745 = vmatprep.mubr.f32.mxu0 0.0
    %2746 = vmatmul.mubr.f32.gmra.mxu0 %v2600
    %v2747 = vpop.f32.mrf.mxu0
    %v2748 = vadd.f32 0.0, %v2747
    %v2749 = vpop.f32.mrf.mxu0
    %v2750 = vadd.f32 0.0, %v2749
    %2751 = vdwg.mxu0
    %v2752 = vadd.f32 %v2571, %v2677
    %v2753 = vadd.f32 %v2572, %v2679
    %v2754 = vadd.f32 %v2573, %v2748
    %v2755 = vadd.f32 %v2574, %v2750
    %v2756 = vld [vmem:[#allocation2 + $0x4] sm:$0xff]
    %v2757 = vld [vmem:[#allocation2 + $0xc] sm:$0xff]
    %v2758 = vld [vmem:[#allocation2 + $0x14] sm:$0xf]
    %s2759 = scalar_lea.vmem %s4, 48
    %v2760 = vld [vmem:[%s2759] sm:$0xff]
    %v2764 = vcombine.high %v2756, %v2756
    %v2765 = vcombine.high %v2757, %v2757
    %2766 = vrot.lane.b32.xlu0 %v2756, 113
    %v2767 = vpop.permute.xlu0 %2766
    %2768 = vrot.lane.b32.xlu0 %v2764, 113
    %v2769 = vpop.permute.xlu0 %2768
    %2770 = vrot.lane.b32.xlu0 %v2757, 113
    %v2771 = vpop.permute.xlu0 %2770
    %2772 = vrot.lane.b32.xlu0 %v2765, 113
    %v2773 = vpop.permute.xlu0 %2772
    %2774 = vrot.lane.b32.xlu0 %v2758, 113
    %v2775 = vpop.permute.xlu0 %2774
    %vm2776 = vcmask 924672
    %v2777 = vsel %vm2776, %v2767, %v2769
    %v2778 = vsel %vm2776, %v2769, %v2771
    %v2779 = vsel %vm2776, %v2771, %v2773
    %v2780 = vsel %vm2776, %v2773, %v2775
    %v2782 = vsel %vm75, %v2760, 0
    %v2784 = vsel %vm79, %v2777, 0
    %v2786 = vsel %vm79, %v2778, 0
    %v2788 = vsel %vm79, %v2779, 0
    %v2790 = vsel %vm79, %v2780, 0
    %2792 = vmatprep.subr.mxu0 0.0
    %2793 = vmatpush1.msra.mxu0 0.0
    %2794 = vmatprep.subr.mxu0 0.0
    %2795 = vmatpush1.msra.mxu0 0.0
    %2796 = vmatprep.subr.mxu0 0.0
    %2797 = vmatpush1.msra.mxu0 0.0
    %2798 = vmatprep.subr.mxu0 0.0
    %2799 = vmatpush1.msra.mxu0 0.0
    %2800 = vmatprep.subr.mxu0 0.0
    %2801 = vmatpush1.msra.mxu0 0.0
    %2802 = vmatprep.subr.mxu0 0.0
    %2803 = vmatpush1.msra.mxu0 0.0
    %2804 = vmatprep.subr.mxu0 0.0
    %2805 = vmatpush1.msra.mxu0 0.0
    %2806 = vmatprep.subr.mxu0 0.0
    %2807 = vmatpush1.msra.mxu0 0.0
    %2808 = vmatprep.subr.mxu0 0.0
    %2809 = vmatpush1.msra.mxu0 0.0
    %2810 = vmatprep.subr.mxu0 0.0
    %2811 = vmatpush1.msra.mxu0 0.0
    %2812 = vmatprep.subr.mxu0 0.0
    %2813 = vmatpush1.msra.mxu0 0.0
    %2814 = vmatprep.subr.mxu0 0.0
    %2815 = vmatpush1.msra.mxu0 0.0
    %2816 = vmatprep.subr.mxu0 0.0
    %2817 = vmatpush1.msra.mxu0 0.0
    %2818 = vmatprep.subr.mxu0 0.0
    %2819 = vmatpush1.msra.mxu0 0.0
    %2820 = vmatprep.subr.mxu0 0.0
    %2821 = vmatpush1.msra.mxu0 0.0
    %2822 = vmatprep.subr.mxu0 %v2786
    %2823 = vmatpush1.msra.mxu0 %v2784
    %2824 = vmatprep.subr.mxu0 0.0
    %2825 = vmatpush2.msra.mxu0 0.0
    %2826 = vmatprep.subr.mxu0 0.0
    %2827 = vmatpush2.msra.mxu0 0.0
    %2828 = vmatprep.subr.mxu0 0.0
    %2829 = vmatpush2.msra.mxu0 0.0
    %2830 = vmatprep.subr.mxu0 0.0
    %2831 = vmatpush2.msra.mxu0 0.0
    %2832 = vmatprep.subr.mxu0 0.0
    %2833 = vmatpush2.msra.mxu0 0.0
    %2834 = vmatprep.subr.mxu0 0.0
    %2835 = vmatpush2.msra.mxu0 0.0
    %2836 = vmatprep.subr.mxu0 0.0
    %2837 = vmatpush2.msra.mxu0 0.0
    %2838 = vmatprep.subr.mxu0 0.0
    %2839 = vmatpush2.msra.mxu0 0.0
    %2840 = vmatprep.subr.mxu0 0.0
    %2841 = vmatpush2.msra.mxu0 0.0
    %2842 = vmatprep.subr.mxu0 0.0
    %2843 = vmatpush2.msra.mxu0 0.0
    %2844 = vmatprep.subr.mxu0 0.0
    %2845 = vmatpush2.msra.mxu0 0.0
    %2846 = vmatprep.subr.mxu0 0.0
    %2847 = vmatpush2.msra.mxu0 0.0
    %2848 = vmatprep.subr.mxu0 0.0
    %2849 = vmatpush2.msra.mxu0 0.0
    %2850 = vmatprep.subr.mxu0 0.0
    %2851 = vmatpush2.msra.mxu0 0.0
    %2852 = vmatprep.subr.mxu0 0.0
    %2853 = vmatpush2.msra.mxu0 0.0
    %2854 = vmatprep.subr.mxu0 0.0
    %2855 = vmatpush2.msra.mxu0 0.0
    %2856 = vmatprep.mubr.f32.mxu0 0.0
    %2857 = vmatmul.mubr.f32.gmra.mxu0 %v2782
    %v2858 = vpop.f32.mrf.mxu0
    %v2859 = vadd.f32 0.0, %v2858
    %v2860 = vpop.f32.mrf.mxu0
    %v2861 = vadd.f32 0.0, %v2860
    %2862 = vdwg.mxu0
    %2863 = vmatprep.subr.mxu0 0.0
    %2864 = vmatpush1.msra.mxu0 0.0
    %2865 = vmatprep.subr.mxu0 0.0
    %2866 = vmatpush1.msra.mxu0 0.0
    %2867 = vmatprep.subr.mxu0 0.0
    %2868 = vmatpush1.msra.mxu0 0.0
    %2869 = vmatprep.subr.mxu0 0.0
    %2870 = vmatpush1.msra.mxu0 0.0
    %2871 = vmatprep.subr.mxu0 0.0
    %2872 = vmatpush1.msra.mxu0 0.0
    %2873 = vmatprep.subr.mxu0 0.0
    %2874 = vmatpush1.msra.mxu0 0.0
    %2875 = vmatprep.subr.mxu0 0.0
    %2876 = vmatpush1.msra.mxu0 0.0
    %2877 = vmatprep.subr.mxu0 0.0
    %2878 = vmatpush1.msra.mxu0 0.0
    %2879 = vmatprep.subr.mxu0 0.0
    %2880 = vmatpush1.msra.mxu0 0.0
    %2881 = vmatprep.subr.mxu0 0.0
    %2882 = vmatpush1.msra.mxu0 0.0
    %2883 = vmatprep.subr.mxu0 0.0
    %2884 = vmatpush1.msra.mxu0 0.0
    %2885 = vmatprep.subr.mxu0 0.0
    %2886 = vmatpush1.msra.mxu0 0.0
    %2887 = vmatprep.subr.mxu0 0.0
    %2888 = vmatpush1.msra.mxu0 0.0
    %2889 = vmatprep.subr.mxu0 0.0
    %2890 = vmatpush1.msra.mxu0 0.0
    %2891 = vmatprep.subr.mxu0 0.0
    %2892 = vmatpush1.msra.mxu0 0.0
    %2893 = vmatprep.subr.mxu0 %v2790
    %2894 = vmatpush1.msra.mxu0 %v2788
    %2895 = vmatprep.subr.mxu0 0.0
    %2896 = vmatpush2.msra.mxu0 0.0
    %2897 = vmatprep.subr.mxu0 0.0
    %2898 = vmatpush2.msra.mxu0 0.0
    %2899 = vmatprep.subr.mxu0 0.0
    %2900 = vmatpush2.msra.mxu0 0.0
    %2901 = vmatprep.subr.mxu0 0.0
    %2902 = vmatpush2.msra.mxu0 0.0
    %2903 = vmatprep.subr.mxu0 0.0
    %2904 = vmatpush2.msra.mxu0 0.0
    %2905 = vmatprep.subr.mxu0 0.0
    %2906 = vmatpush2.msra.mxu0 0.0
    %2907 = vmatprep.subr.mxu0 0.0
    %2908 = vmatpush2.msra.mxu0 0.0
    %2909 = vmatprep.subr.mxu0 0.0
    %2910 = vmatpush2.msra.mxu0 0.0
    %2911 = vmatprep.subr.mxu0 0.0
    %2912 = vmatpush2.msra.mxu0 0.0
    %2913 = vmatprep.subr.mxu0 0.0
    %2914 = vmatpush2.msra.mxu0 0.0
    %2915 = vmatprep.subr.mxu0 0.0
    %2916 = vmatpush2.msra.mxu0 0.0
    %2917 = vmatprep.subr.mxu0 0.0
    %2918 = vmatpush2.msra.mxu0 0.0
    %2919 = vmatprep.subr.mxu0 0.0
    %2920 = vmatpush2.msra.mxu0 0.0
    %2921 = vmatprep.subr.mxu0 0.0
    %2922 = vmatpush2.msra.mxu0 0.0
    %2923 = vmatprep.subr.mxu0 0.0
    %2924 = vmatpush2.msra.mxu0 0.0
    %2925 = vmatprep.subr.mxu0 0.0
    %2926 = vmatpush2.msra.mxu0 0.0
    %2927 = vmatprep.mubr.f32.mxu0 0.0
    %2928 = vmatmul.mubr.f32.gmra.mxu0 %v2782
    %v2929 = vpop.f32.mrf.mxu0
    %v2930 = vadd.f32 0.0, %v2929
    %v2931 = vpop.f32.mrf.mxu0
    %v2932 = vadd.f32 0.0, %v2931
    %2933 = vdwg.mxu0
    %v2934 = vadd.f32 %v2752, %v2859
    %v2935 = vadd.f32 %v2753, %v2861
    %v2936 = vadd.f32 %v2754, %v2930
    %v2937 = vadd.f32 %v2755, %v2932
    %v2938 = vld [vmem:[#allocation2 + $0x4] sm:$0xff]
    %v2939 = vld [vmem:[#allocation2 + $0xc] sm:$0xff]
    %v2940 = vld [vmem:[#allocation2 + $0x14] sm:$0xf]
    %s2941 = scalar_lea.vmem %s4, 56
    %v2942 = vld [vmem:[%s2941] sm:$0xff]
    %v2946 = vcombine.high %v2938, %v2938
    %v2947 = vcombine.high %v2939, %v2939
    %2948 = vrot.lane.b32.xlu0 %v2938, 112
    %v2949 = vpop.permute.xlu0 %2948
    %2950 = vrot.lane.b32.xlu0 %v2946, 112
    %v2951 = vpop.permute.xlu0 %2950
    %2952 = vrot.lane.b32.xlu0 %v2939, 112
    %v2953 = vpop.permute.xlu0 %2952
    %2954 = vrot.lane.b32.xlu0 %v2947, 112
    %v2955 = vpop.permute.xlu0 %2954
    %2956 = vrot.lane.b32.xlu0 %v2940, 112
    %v2957 = vpop.permute.xlu0 %2956
    %v2958 = vsel %vm585, %v2949, %v2951
    %v2959 = vsel %vm585, %v2951, %v2953
    %v2960 = vsel %vm585, %v2953, %v2955
    %v2961 = vsel %vm585, %v2955, %v2957
    %v2963 = vsel %vm75, %v2942, 0
    %v2965 = vsel %vm79, %v2958, 0
    %v2967 = vsel %vm79, %v2959, 0
    %v2969 = vsel %vm79, %v2960, 0
    %v2971 = vsel %vm79, %v2961, 0
    %2973 = vmatprep.subr.mxu0 0.0
    %2974 = vmatpush1.msra.mxu0 0.0
    %2975 = vmatprep.subr.mxu0 0.0
    %2976 = vmatpush1.msra.mxu0 0.0
    %2977 = vmatprep.subr.mxu0 0.0
    %2978 = vmatpush1.msra.mxu0 0.0
    %2979 = vmatprep.subr.mxu0 0.0
    %2980 = vmatpush1.msra.mxu0 0.0
    %2981 = vmatprep.subr.mxu0 0.0
    %2982 = vmatpush1.msra.mxu0 0.0
    %2983 = vmatprep.subr.mxu0 0.0
    %2984 = vmatpush1.msra.mxu0 0.0
    %2985 = vmatprep.subr.mxu0 0.0
    %2986 = vmatpush1.msra.mxu0 0.0
    %2987 = vmatprep.subr.mxu0 0.0
    %2988 = vmatpush1.msra.mxu0 0.0
    %2989 = vmatprep.subr.mxu0 0.0
    %2990 = vmatpush1.msra.mxu0 0.0
    %2991 = vmatprep.subr.mxu0 0.0
    %2992 = vmatpush1.msra.mxu0 0.0
    %2993 = vmatprep.subr.mxu0 0.0
    %2994 = vmatpush1.msra.mxu0 0.0
    %2995 = vmatprep.subr.mxu0 0.0
    %2996 = vmatpush1.msra.mxu0 0.0
    %2997 = vmatprep.subr.mxu0 0.0
    %2998 = vmatpush1.msra.mxu0 0.0
    %2999 = vmatprep.subr.mxu0 0.0
    %3000 = vmatpush1.msra.mxu0 0.0
    %3001 = vmatprep.subr.mxu0 0.0
    %3002 = vmatpush1.msra.mxu0 0.0
    %3003 = vmatprep.subr.mxu0 %v2967
    %3004 = vmatpush1.msra.mxu0 %v2965
    %3005 = vmatprep.subr.mxu0 0.0
    %3006 = vmatpush2.msra.mxu0 0.0
    %3007 = vmatprep.subr.mxu0 0.0
    %3008 = vmatpush2.msra.mxu0 0.0
    %3009 = vmatprep.subr.mxu0 0.0
    %3010 = vmatpush2.msra.mxu0 0.0
    %3011 = vmatprep.subr.mxu0 0.0
    %3012 = vmatpush2.msra.mxu0 0.0
    %3013 = vmatprep.subr.mxu0 0.0
    %3014 = vmatpush2.msra.mxu0 0.0
    %3015 = vmatprep.subr.mxu0 0.0
    %3016 = vmatpush2.msra.mxu0 0.0
    %3017 = vmatprep.subr.mxu0 0.0
    %3018 = vmatpush2.msra.mxu0 0.0
    %3019 = vmatprep.subr.mxu0 0.0
    %3020 = vmatpush2.msra.mxu0 0.0
    %3021 = vmatprep.subr.mxu0 0.0
    %3022 = vmatpush2.msra.mxu0 0.0
    %3023 = vmatprep.subr.mxu0 0.0
    %3024 = vmatpush2.msra.mxu0 0.0
    %3025 = vmatprep.subr.mxu0 0.0
    %3026 = vmatpush2.msra.mxu0 0.0
    %3027 = vmatprep.subr.mxu0 0.0
    %3028 = vmatpush2.msra.mxu0 0.0
    %3029 = vmatprep.subr.mxu0 0.0
    %3030 = vmatpush2.msra.mxu0 0.0
    %3031 = vmatprep.subr.mxu0 0.0
    %3032 = vmatpush2.msra.mxu0 0.0
    %3033 = vmatprep.subr.mxu0 0.0
    %3034 = vmatpush2.msra.mxu0 0.0
    %3035 = vmatprep.subr.mxu0 0.0
    %3036 = vmatpush2.msra.mxu0 0.0
    %3037 = vmatprep.mubr.f32.mxu0 0.0
    %3038 = vmatmul.mubr.f32.gmra.mxu0 %v2963
    %v3039 = vpop.f32.mrf.mxu0
    %v3040 = vadd.f32 0.0, %v3039
    %v3041 = vpop.f32.mrf.mxu0
    %v3042 = vadd.f32 0.0, %v3041
    %3043 = vdwg.mxu0
    %3044 = vmatprep.subr.mxu0 0.0
    %3045 = vmatpush1.msra.mxu0 0.0
    %3046 = vmatprep.subr.mxu0 0.0
    %3047 = vmatpush1.msra.mxu0 0.0
    %3048 = vmatprep.subr.mxu0 0.0
    %3049 = vmatpush1.msra.mxu0 0.0
    %3050 = vmatprep.subr.mxu0 0.0
    %3051 = vmatpush1.msra.mxu0 0.0
    %3052 = vmatprep.subr.mxu0 0.0
    %3053 = vmatpush1.msra.mxu0 0.0
    %3054 = vmatprep.subr.mxu0 0.0
    %3055 = vmatpush1.msra.mxu0 0.0
    %3056 = vmatprep.subr.mxu0 0.0
    %3057 = vmatpush1.msra.mxu0 0.0
    %3058 = vmatprep.subr.mxu0 0.0
    %3059 = vmatpush1.msra.mxu0 0.0
    %3060 = vmatprep.subr.mxu0 0.0
    %3061 = vmatpush1.msra.mxu0 0.0
    %3062 = vmatprep.subr.mxu0 0.0
    %3063 = vmatpush1.msra.mxu0 0.0
    %3064 = vmatprep.subr.mxu0 0.0
    %3065 = vmatpush1.msra.mxu0 0.0
    %3066 = vmatprep.subr.mxu0 0.0
    %3067 = vmatpush1.msra.mxu0 0.0
    %3068 = vmatprep.subr.mxu0 0.0
    %3069 = vmatpush1.msra.mxu0 0.0
    %3070 = vmatprep.subr.mxu0 0.0
    %3071 = vmatpush1.msra.mxu0 0.0
    %3072 = vmatprep.subr.mxu0 0.0
    %3073 = vmatpush1.msra.mxu0 0.0
    %3074 = vmatprep.subr.mxu0 %v2971
    %3075 = vmatpush1.msra.mxu0 %v2969
    %3076 = vmatprep.subr.mxu0 0.0
    %3077 = vmatpush2.msra.mxu0 0.0
    %3078 = vmatprep.subr.mxu0 0.0
    %3079 = vmatpush2.msra.mxu0 0.0
    %3080 = vmatprep.subr.mxu0 0.0
    %3081 = vmatpush2.msra.mxu0 0.0
    %3082 = vmatprep.subr.mxu0 0.0
    %3083 = vmatpush2.msra.mxu0 0.0
    %3084 = vmatprep.subr.mxu0 0.0
    %3085 = vmatpush2.msra.mxu0 0.0
    %3086 = vmatprep.subr.mxu0 0.0
    %3087 = vmatpush2.msra.mxu0 0.0
    %3088 = vmatprep.subr.mxu0 0.0
    %3089 = vmatpush2.msra.mxu0 0.0
    %3090 = vmatprep.subr.mxu0 0.0
    %3091 = vmatpush2.msra.mxu0 0.0
    %3092 = vmatprep.subr.mxu0 0.0
    %3093 = vmatpush2.msra.mxu0 0.0
    %3094 = vmatprep.subr.mxu0 0.0
    %3095 = vmatpush2.msra.mxu0 0.0
    %3096 = vmatprep.subr.mxu0 0.0
    %3097 = vmatpush2.msra.mxu0 0.0
    %3098 = vmatprep.subr.mxu0 0.0
    %3099 = vmatpush2.msra.mxu0 0.0
    %3100 = vmatprep.subr.mxu0 0.0
    %3101 = vmatpush2.msra.mxu0 0.0
    %3102 = vmatprep.subr.mxu0 0.0
    %3103 = vmatpush2.msra.mxu0 0.0
    %3104 = vmatprep.subr.mxu0 0.0
    %3105 = vmatpush2.msra.mxu0 0.0
    %3106 = vmatprep.subr.mxu0 0.0
    %3107 = vmatpush2.msra.mxu0 0.0
    %3108 = vmatprep.mubr.f32.mxu0 0.0
    %3109 = vmatmul.mubr.f32.gmra.mxu0 %v2963
    %v3110 = vpop.f32.mrf.mxu0
    %v3111 = vadd.f32 0.0, %v3110
    %v3112 = vpop.f32.mrf.mxu0
    %v3113 = vadd.f32 0.0, %v3112
    %3114 = vdwg.mxu0
    %v3115 = vadd.f32 %v2934, %v3040
    %v3116 = vadd.f32 %v2935, %v3042
    %v3117 = vadd.f32 %v2936, %v3111
    %v3118 = vadd.f32 %v2937, %v3113
    %v3119 = vld [vmem:[#allocation2 + $0x4] sm:$0xff]
    %v3120 = vld [vmem:[#allocation2 + $0xc] sm:$0xff]
    %v3121 = vld [vmem:[#allocation2 + $0x14] sm:$0xf]
    %s3122 = scalar_lea.vmem %s4, 64
    %v3123 = vld [vmem:[%s3122] sm:$0xff]
    %v3127 = vcombine.high %v3119, %v3119
    %v3128 = vcombine.high %v3120, %v3120
    %3129 = vrot.lane.b32.xlu0 %v3119, 111
    %v3130 = vpop.permute.xlu0 %3129
    %3131 = vrot.lane.b32.xlu0 %v3127, 111
    %v3132 = vpop.permute.xlu0 %3131
    %3133 = vrot.lane.b32.xlu0 %v3120, 111
    %v3134 = vpop.permute.xlu0 %3133
    %3135 = vrot.lane.b32.xlu0 %v3128, 111
    %v3136 = vpop.permute.xlu0 %3135
    %3137 = vrot.lane.b32.xlu0 %v3121, 111
    %v3138 = vpop.permute.xlu0 %3137
    %v3139 = vsel %vm767, %v3130, %v3132
    %v3140 = vsel %vm767, %v3132, %v3134
    %v3141 = vsel %vm767, %v3134, %v3136
    %v3142 = vsel %vm767, %v3136, %v3138
    %v3144 = vsel %vm75, %v3123, 0
    %v3146 = vsel %vm79, %v3139, 0
    %v3148 = vsel %vm79, %v3140, 0
    %v3150 = vsel %vm79, %v3141, 0
    %v3152 = vsel %vm79, %v3142, 0
    %3154 = vmatprep.subr.mxu0 0.0
    %3155 = vmatpush1.msra.mxu0 0.0
    %3156 = vmatprep.subr.mxu0 0.0
    %3157 = vmatpush1.msra.mxu0 0.0
    %3158 = vmatprep.subr.mxu0 0.0
    %3159 = vmatpush1.msra.mxu0 0.0
    %3160 = vmatprep.subr.mxu0 0.0
    %3161 = vmatpush1.msra.mxu0 0.0
    %3162 = vmatprep.subr.mxu0 0.0
    %3163 = vmatpush1.msra.mxu0 0.0
    %3164 = vmatprep.subr.mxu0 0.0
    %3165 = vmatpush1.msra.mxu0 0.0
    %3166 = vmatprep.subr.mxu0 0.0
    %3167 = vmatpush1.msra.mxu0 0.0
    %3168 = vmatprep.subr.mxu0 0.0
    %3169 = vmatpush1.msra.mxu0 0.0
    %3170 = vmatprep.subr.mxu0 0.0
    %3171 = vmatpush1.msra.mxu0 0.0
    %3172 = vmatprep.subr.mxu0 0.0
    %3173 = vmatpush1.msra.mxu0 0.0
    %3174 = vmatprep.subr.mxu0 0.0
    %3175 = vmatpush1.msra.mxu0 0.0
    %3176 = vmatprep.subr.mxu0 0.0
    %3177 = vmatpush1.msra.mxu0 0.0
    %3178 = vmatprep.subr.mxu0 0.0
    %3179 = vmatpush1.msra.mxu0 0.0
    %3180 = vmatprep.subr.mxu0 0.0
    %3181 = vmatpush1.msra.mxu0 0.0
    %3182 = vmatprep.subr.mxu0 0.0
    %3183 = vmatpush1.msra.mxu0 0.0
    %3184 = vmatprep.subr.mxu0 %v3148
    %3185 = vmatpush1.msra.mxu0 %v3146
    %3186 = vmatprep.subr.mxu0 0.0
    %3187 = vmatpush2.msra.mxu0 0.0
    %3188 = vmatprep.subr.mxu0 0.0
    %3189 = vmatpush2.msra.mxu0 0.0
    %3190 = vmatprep.subr.mxu0 0.0
    %3191 = vmatpush2.msra.mxu0 0.0
    %3192 = vmatprep.subr.mxu0 0.0
    %3193 = vmatpush2.msra.mxu0 0.0
    %3194 = vmatprep.subr.mxu0 0.0
    %3195 = vmatpush2.msra.mxu0 0.0
    %3196 = vmatprep.subr.mxu0 0.0
    %3197 = vmatpush2.msra.mxu0 0.0
    %3198 = vmatprep.subr.mxu0 0.0
    %3199 = vmatpush2.msra.mxu0 0.0
    %3200 = vmatprep.subr.mxu0 0.0
    %3201 = vmatpush2.msra.mxu0 0.0
    %3202 = vmatprep.subr.mxu0 0.0
    %3203 = vmatpush2.msra.mxu0 0.0
    %3204 = vmatprep.subr.mxu0 0.0
    %3205 = vmatpush2.msra.mxu0 0.0
    %3206 = vmatprep.subr.mxu0 0.0
    %3207 = vmatpush2.msra.mxu0 0.0
    %3208 = vmatprep.subr.mxu0 0.0
    %3209 = vmatpush2.msra.mxu0 0.0
    %3210 = vmatprep.subr.mxu0 0.0
    %3211 = vmatpush2.msra.mxu0 0.0
    %3212 = vmatprep.subr.mxu0 0.0
    %3213 = vmatpush2.msra.mxu0 0.0
    %3214 = vmatprep.subr.mxu0 0.0
    %3215 = vmatpush2.msra.mxu0 0.0
    %3216 = vmatprep.subr.mxu0 0.0
    %3217 = vmatpush2.msra.mxu0 0.0
    %3218 = vmatprep.mubr.f32.mxu0 0.0
    %3219 = vmatmul.mubr.f32.gmra.mxu0 %v3144
    %v3220 = vpop.f32.mrf.mxu0
    %v3221 = vadd.f32 0.0, %v3220
    %v3222 = vpop.f32.mrf.mxu0
    %v3223 = vadd.f32 0.0, %v3222
    %3224 = vdwg.mxu0
    %3225 = vmatprep.subr.mxu0 0.0
    %3226 = vmatpush1.msra.mxu0 0.0
    %3227 = vmatprep.subr.mxu0 0.0
    %3228 = vmatpush1.msra.mxu0 0.0
    %3229 = vmatprep.subr.mxu0 0.0
    %3230 = vmatpush1.msra.mxu0 0.0
    %3231 = vmatprep.subr.mxu0 0.0
    %3232 = vmatpush1.msra.mxu0 0.0
    %3233 = vmatprep.subr.mxu0 0.0
    %3234 = vmatpush1.msra.mxu0 0.0
    %3235 = vmatprep.subr.mxu0 0.0
    %3236 = vmatpush1.msra.mxu0 0.0
    %3237 = vmatprep.subr.mxu0 0.0
    %3238 = vmatpush1.msra.mxu0 0.0
    %3239 = vmatprep.subr.mxu0 0.0
    %3240 = vmatpush1.msra.mxu0 0.0
    %3241 = vmatprep.subr.mxu0 0.0
    %3242 = vmatpush1.msra.mxu0 0.0
    %3243 = vmatprep.subr.mxu0 0.0
    %3244 = vmatpush1.msra.mxu0 0.0
    %3245 = vmatprep.subr.mxu0 0.0
    %3246 = vmatpush1.msra.mxu0 0.0
    %3247 = vmatprep.subr.mxu0 0.0
    %3248 = vmatpush1.msra.mxu0 0.0
    %3249 = vmatprep.subr.mxu0 0.0
    %3250 = vmatpush1.msra.mxu0 0.0
    %3251 = vmatprep.subr.mxu0 0.0
    %3252 = vmatpush1.msra.mxu0 0.0
    %3253 = vmatprep.subr.mxu0 0.0
    %3254 = vmatpush1.msra.mxu0 0.0
    %3255 = vmatprep.subr.mxu0 %v3152
    %3256 = vmatpush1.msra.mxu0 %v3150
    %3257 = vmatprep.subr.mxu0 0.0
    %3258 = vmatpush2.msra.mxu0 0.0
    %3259 = vmatprep.subr.mxu0 0.0
    %3260 = vmatpush2.msra.mxu0 0.0
    %3261 = vmatprep.subr.mxu0 0.0
    %3262 = vmatpush2.msra.mxu0 0.0
    %3263 = vmatprep.subr.mxu0 0.0
    %3264 = vmatpush2.msra.mxu0 0.0
    %3265 = vmatprep.subr.mxu0 0.0
    %3266 = vmatpush2.msra.mxu0 0.0
    %3267 = vmatprep.subr.mxu0 0.0
    %3268 = vmatpush2.msra.mxu0 0.0
    %3269 = vmatprep.subr.mxu0 0.0
    %3270 = vmatpush2.msra.mxu0 0.0
    %3271 = vmatprep.subr.mxu0 0.0
    %3272 = vmatpush2.msra.mxu0 0.0
    %3273 = vmatprep.subr.mxu0 0.0
    %3274 = vmatpush2.msra.mxu0 0.0
    %3275 = vmatprep.subr.mxu0 0.0
    %3276 = vmatpush2.msra.mxu0 0.0
    %3277 = vmatprep.subr.mxu0 0.0
    %3278 = vmatpush2.msra.mxu0 0.0
    %3279 = vmatprep.subr.mxu0 0.0
    %3280 = vmatpush2.msra.mxu0 0.0
    %3281 = vmatprep.subr.mxu0 0.0
    %3282 = vmatpush2.msra.mxu0 0.0
    %3283 = vmatprep.subr.mxu0 0.0
    %3284 = vmatpush2.msra.mxu0 0.0
    %3285 = vmatprep.subr.mxu0 0.0
    %3286 = vmatpush2.msra.mxu0 0.0
    %3287 = vmatprep.subr.mxu0 0.0
    %3288 = vmatpush2.msra.mxu0 0.0
    %3289 = vmatprep.mubr.f32.mxu0 0.0
    %3290 = vmatmul.mubr.f32.gmra.mxu0 %v3144
    %v3291 = vpop.f32.mrf.mxu0
    %v3292 = vadd.f32 0.0, %v3291
    %v3293 = vpop.f32.mrf.mxu0
    %v3294 = vadd.f32 0.0, %v3293
    %3295 = vdwg.mxu0
    %v3296 = vadd.f32 %v3115, %v3221
    %v3297 = vadd.f32 %v3116, %v3223
    %v3298 = vadd.f32 %v3117, %v3292
    %v3299 = vadd.f32 %v3118, %v3294
    %v3300 = vld [vmem:[%s5] sm:$0xff]
    %3302 = vset.pattern.permute.xlu0 0
    %3303 = vperm.xlu0 %3302, %v3300
    %v3304 = vpop.permute.xlu0 %3303
    %v3306 = vadd.f32 %v3296, %v3304
    %v3307 = vadd.f32 %v3297, %v3304
    %v3308 = vadd.f32 %v3298, %v3304
    %v3309 = vadd.f32 %v3299, %v3304
    %v3310 = vmax.f32 %v3306, 0.0
    %v3311 = vmax.f32 %v3307, 0.0
    %v3312 = vmax.f32 %v3308, 0.0
    %v3313 = vmax.f32 %v3309, 0.0
    %v3314 = vld [vmem:[%s7] sm:$0x1]
    %v3315 = vld [vmem:[%s6] sm:$0xf]
    %v3316 = vld [vmem:[%s6 + $0x4] sm:$0xf]
    %v3317 = vld [vmem:[%s6 + $0x8] sm:$0xf]
    %v3318 = vld [vmem:[%s6 + $0xc] sm:$0xf]
    %v3319 = vld [vmem:[%s6 + $0x10] sm:$0xf]
    %v3320 = vld [vmem:[%s6 + $0x14] sm:$0xf]
    %v3321 = vld [vmem:[%s6 + $0x18] sm:$0xf]
    %v3322 = vld [vmem:[%s6 + $0x1c] sm:$0xf]
    %v3323 = vld [vmem:[%s6 + $0x20] sm:$0xf]
    %v3324 = vld [vmem:[%s6 + $0x24] sm:$0xf]
    %v3325 = vld [vmem:[%s6 + $0x28] sm:$0xf]
    %v3326 = vld [vmem:[%s6 + $0x2c] sm:$0xf]
    %v3327 = vld [vmem:[%s6 + $0x30] sm:$0xf]
    %v3328 = vld [vmem:[%s6 + $0x34] sm:$0xf]
    %v3329 = vld [vmem:[%s6 + $0x38] sm:$0xf]
    %v3330 = vld [vmem:[%s6 + $0x3c] sm:$0xf]
    %v3331 = vld [vmem:[%s6 + $0x40] sm:$0xf]
    %v3332 = vld [vmem:[%s6 + $0x44] sm:$0xf]
    %v3333 = vld [vmem:[%s6 + $0x48] sm:$0xf]
    %v3334 = vld [vmem:[%s6 + $0x4c] sm:$0xf]
    %v3335 = vld [vmem:[%s6 + $0x50] sm:$0xf]
    %v3336 = vld [vmem:[%s6 + $0x54] sm:$0xf]
    %v3337 = vld [vmem:[%s6 + $0x58] sm:$0xf]
    %v3338 = vld [vmem:[%s6 + $0x5c] sm:$0xf]
    %v3339 = vld [vmem:[%s6 + $0x60] sm:$0xf]
    %v3340 = vld [vmem:[%s6 + $0x64] sm:$0xf]
    %v3341 = vld [vmem:[%s6 + $0x68] sm:$0xf]
    %v3342 = vld [vmem:[%s6 + $0x6c] sm:$0xf]
    %v3343 = vld [vmem:[%s6 + $0x70] sm:$0xf]
    %v3344 = vld [vmem:[%s6 + $0x74] sm:$0xf]
    %v3345 = vld [vmem:[%s6 + $0x78] sm:$0xf]
    %v3346 = vld [vmem:[%s6 + $0x7c] sm:$0xf]
    %v3347 = vpack.c.bf16 %v3310, %v3310
    %v3348 = vpack.c.bf16 %v3311, %v3311
    %v3381 = vunpack.c.l.b16 %v3315
    %v3382 = vunpack.c.l.b16 %v3316
    %v3383 = vunpack.c.l.b16 %v3317
    %v3384 = vunpack.c.l.b16 %v3318
    %v3385 = vunpack.c.l.b16 %v3319
    %v3386 = vunpack.c.l.b16 %v3320
    %v3387 = vunpack.c.l.b16 %v3321
    %v3388 = vunpack.c.l.b16 %v3322
    %v3389 = vunpack.c.l.b16 %v3323
    %v3390 = vunpack.c.l.b16 %v3324
    %v3391 = vunpack.c.l.b16 %v3325
    %v3392 = vunpack.c.l.b16 %v3326
    %v3393 = vunpack.c.l.b16 %v3327
    %v3394 = vunpack.c.l.b16 %v3328
    %v3395 = vunpack.c.l.b16 %v3329
    %v3396 = vunpack.c.l.b16 %v3330
    %v3397 = vunpack.c.l.b16 %v3331
    %v3398 = vunpack.c.l.b16 %v3332
    %v3399 = vunpack.c.l.b16 %v3333
    %v3400 = vunpack.c.l.b16 %v3334
    %v3401 = vunpack.c.l.b16 %v3335
    %v3402 = vunpack.c.l.b16 %v3336
    %v3403 = vunpack.c.l.b16 %v3337
    %v3404 = vunpack.c.l.b16 %v3338
    %v3405 = vunpack.c.l.b16 %v3339
    %v3406 = vunpack.c.l.b16 %v3340
    %v3407 = vunpack.c.l.b16 %v3341
    %v3408 = vunpack.c.l.b16 %v3342
    %v3409 = vunpack.c.l.b16 %v3343
    %v3410 = vunpack.c.l.b16 %v3344
    %v3411 = vunpack.c.l.b16 %v3345
    %v3412 = vunpack.c.l.b16 %v3346
    %v3413 = vpack.c.b16 %v3382, %v3381
    %v3414 = vpack.c.b16 %v3384, %v3383
    %v3415 = vpack.c.b16 %v3386, %v3385
    %v3416 = vpack.c.b16 %v3388, %v3387
    %v3417 = vpack.c.b16 %v3390, %v3389
    %v3418 = vpack.c.b16 %v3392, %v3391
    %v3419 = vpack.c.b16 %v3394, %v3393
    %v3420 = vpack.c.b16 %v3396, %v3395
    %v3421 = vpack.c.b16 %v3398, %v3397
    %v3422 = vpack.c.b16 %v3400, %v3399
    %v3423 = vpack.c.b16 %v3402, %v3401
    %v3424 = vpack.c.b16 %v3404, %v3403
    %v3425 = vpack.c.b16 %v3406, %v3405
    %v3426 = vpack.c.b16 %v3408, %v3407
    %v3427 = vpack.c.b16 %v3410, %v3409
    %v3428 = vpack.c.b16 %v3412, %v3411
    %3445 = vmatprep.subr.bf16.mxu0 0
    %3446 = vmatpush1.bf16.msra.mxu0 %v3420
    %3447 = vmatprep.subr.bf16.mxu0 0
    %3448 = vmatpush1.bf16.msra.mxu0 %v3419
    %3449 = vmatprep.subr.bf16.mxu0 0
    %3450 = vmatpush1.bf16.msra.mxu0 %v3418
    %3451 = vmatprep.subr.bf16.mxu0 0
    %3452 = vmatpush1.bf16.msra.mxu0 %v3417
    %3453 = vmatprep.subr.bf16.mxu0 0
    %3454 = vmatpush1.bf16.msra.mxu0 %v3416
    %3455 = vmatprep.subr.bf16.mxu0 0
    %3456 = vmatpush1.bf16.msra.mxu0 %v3415
    %3457 = vmatprep.subr.bf16.mxu0 0
    %3458 = vmatpush1.bf16.msra.mxu0 %v3414
    %3459 = vmatprep.subr.bf16.mxu0 0
    %3460 = vmatpush1.bf16.msra.mxu0 %v3413
    %3461 = vmatprep.subr.bf16.mxu0 0
    %3462 = vmatpush2.bf16.msra.mxu0 %v3428
    %3463 = vmatprep.subr.bf16.mxu0 0
    %3464 = vmatpush2.bf16.msra.mxu0 %v3427
    %3465 = vmatprep.subr.bf16.mxu0 0
    %3466 = vmatpush2.bf16.msra.mxu0 %v3426
    %3467 = vmatprep.subr.bf16.mxu0 0
    %3468 = vmatpush2.bf16.msra.mxu0 %v3425
    %3469 = vmatprep.subr.bf16.mxu0 0
    %3470 = vmatpush2.bf16.msra.mxu0 %v3424
    %3471 = vmatprep.subr.bf16.mxu0 0
    %3472 = vmatpush2.bf16.msra.mxu0 %v3423
    %3473 = vmatprep.subr.bf16.mxu0 0
    %3474 = vmatpush2.bf16.msra.mxu0 %v3422
    %3475 = vmatprep.subr.bf16.mxu0 0
    %3476 = vmatpush2.bf16.msra.mxu0 %v3421
    %3477 = vmatprep.mubr.bf16.mxu0 %v3348
    %3478 = vmatmul.mubr.bf16.gmra.mxu0 %v3347
    %v3479 = vpop.f32.mrf.mxu0
    %v3480 = vadd.f32 0.0, %v3479
    %v3481 = vpop.f32.mrf.mxu0
    %v3482 = vpop.f32.mrf.mxu0
    %v3483 = vpop.f32.mrf.mxu0
    %3484 = vdwg.mxu0
    %v3485 = vadd.f32 %v3314, %v3480
    %v3486 = vpack.c.bf16 %v3312, %v3312
    %v3487 = vpack.c.bf16 %v3313, %v3313
    %3488 = vmatprep.subr.bf16.mxu0 0
    %3489 = vmatpush1.bf16.msra.mxu0 %v3420
    %3490 = vmatprep.subr.bf16.mxu0 0
    %3491 = vmatpush1.bf16.msra.mxu0 %v3419
    %3492 = vmatprep.subr.bf16.mxu0 0
    %3493 = vmatpush1.bf16.msra.mxu0 %v3418
    %3494 = vmatprep.subr.bf16.mxu0 0
    %3495 = vmatpush1.bf16.msra.mxu0 %v3417
    %3496 = vmatprep.subr.bf16.mxu0 0
    %3497 = vmatpush1.bf16.msra.mxu0 %v3416
    %3498 = vmatprep.subr.bf16.mxu0 0
    %3499 = vmatpush1.bf16.msra.mxu0 %v3415
    %3500 = vmatprep.subr.bf16.mxu0 0
    %3501 = vmatpush1.bf16.msra.mxu0 %v3414
    %3502 = vmatprep.subr.bf16.mxu0 0
    %3503 = vmatpush1.bf16.msra.mxu0 %v3413
    %3504 = vmatprep.subr.bf16.mxu0 0
    %3505 = vmatpush2.bf16.msra.mxu0 %v3428
    %3506 = vmatprep.subr.bf16.mxu0 0
    %3507 = vmatpush2.bf16.msra.mxu0 %v3427
    %3508 = vmatprep.subr.bf16.mxu0 0
    %3509 = vmatpush2.bf16.msra.mxu0 %v3426
    %3510 = vmatprep.subr.bf16.mxu0 0
    %3511 = vmatpush2.bf16.msra.mxu0 %v3425
    %3512 = vmatprep.subr.bf16.mxu0 0
    %3513 = vmatpush2.bf16.msra.mxu0 %v3424
    %3514 = vmatprep.subr.bf16.mxu0 0
    %3515 = vmatpush2.bf16.msra.mxu0 %v3423
    %3516 = vmatprep.subr.bf16.mxu0 0
    %3517 = vmatpush2.bf16.msra.mxu0 %v3422
    %3518 = vmatprep.subr.bf16.mxu0 0
    %3519 = vmatpush2.bf16.msra.mxu0 %v3421
    %3520 = vmatprep.mubr.bf16.mxu0 %v3487
    %3521 = vmatmul.mubr.bf16.gmra.mxu0 %v3486
    %v3522 = vpop.f32.mrf.mxu0
    %v3523 = vadd.f32 0.0, %v3522
    %v3524 = vpop.f32.mrf.mxu0
    %v3525 = vpop.f32.mrf.mxu0
    %v3526 = vpop.f32.mrf.mxu0
    %3527 = vdwg.mxu0
    %v3528 = vadd.f32 %v3314, %v3523
    %s3529 = scalar_lea.vmem %s6, 128
    %v3530 = vld [vmem:[%s3529] sm:$0xf]
    %v3531 = vld [vmem:[%s3529 + $0x4] sm:$0xf]
    %v3532 = vld [vmem:[%s3529 + $0x8] sm:$0xf]
    %v3533 = vld [vmem:[%s3529 + $0xc] sm:$0xf]
    %v3534 = vld [vmem:[%s3529 + $0x10] sm:$0xf]
    %v3535 = vld [vmem:[%s3529 + $0x14] sm:$0xf]
    %v3536 = vld [vmem:[%s3529 + $0x18] sm:$0xf]
    %v3537 = vld [vmem:[%s3529 + $0x1c] sm:$0xf]
    %v3538 = vld [vmem:[%s3529 + $0x20] sm:$0xf]
    %v3539 = vld [vmem:[%s3529 + $0x24] sm:$0xf]
    %v3540 = vld [vmem:[%s3529 + $0x28] sm:$0xf]
    %v3541 = vld [vmem:[%s3529 + $0x2c] sm:$0xf]
    %v3542 = vld [vmem:[%s3529 + $0x30] sm:$0xf]
    %v3543 = vld [vmem:[%s3529 + $0x34] sm:$0xf]
    %v3544 = vld [vmem:[%s3529 + $0x38] sm:$0xf]
    %v3545 = vld [vmem:[%s3529 + $0x3c] sm:$0xf]
    %v3546 = vld [vmem:[%s3529 + $0x40] sm:$0xf]
    %v3547 = vld [vmem:[%s3529 + $0x44] sm:$0xf]
    %v3548 = vld [vmem:[%s3529 + $0x48] sm:$0xf]
    %v3549 = vld [vmem:[%s3529 + $0x4c] sm:$0xf]
    %v3550 = vld [vmem:[%s3529 + $0x50] sm:$0xf]
    %v3551 = vld [vmem:[%s3529 + $0x54] sm:$0xf]
    %v3552 = vld [vmem:[%s3529 + $0x58] sm:$0xf]
    %v3553 = vld [vmem:[%s3529 + $0x5c] sm:$0xf]
    %v3554 = vld [vmem:[%s3529 + $0x60] sm:$0xf]
    %v3555 = vld [vmem:[%s3529 + $0x64] sm:$0xf]
    %v3556 = vld [vmem:[%s3529 + $0x68] sm:$0xf]
    %v3557 = vld [vmem:[%s3529 + $0x6c] sm:$0xf]
    %v3558 = vld [vmem:[%s3529 + $0x70] sm:$0xf]
    %v3559 = vld [vmem:[%s3529 + $0x74] sm:$0xf]
    %v3560 = vld [vmem:[%s3529 + $0x78] sm:$0xf]
    %v3561 = vld [vmem:[%s3529 + $0x7c] sm:$0xf]
    %v3563 = vshrl.u32 %v3347, 16
    %v3566 = vshrl.u32 %v3348, 16
    %v3602 = vunpack.c.l.b16 %v3530
    %v3603 = vunpack.c.l.b16 %v3531
    %v3604 = vunpack.c.l.b16 %v3532
    %v3605 = vunpack.c.l.b16 %v3533
    %v3606 = vunpack.c.l.b16 %v3534
    %v3607 = vunpack.c.l.b16 %v3535
    %v3608 = vunpack.c.l.b16 %v3536
    %v3609 = vunpack.c.l.b16 %v3537
    %v3610 = vunpack.c.l.b16 %v3538
    %v3611 = vunpack.c.l.b16 %v3539
    %v3612 = vunpack.c.l.b16 %v3540
    %v3613 = vunpack.c.l.b16 %v3541
    %v3614 = vunpack.c.l.b16 %v3542
    %v3615 = vunpack.c.l.b16 %v3543
    %v3616 = vunpack.c.l.b16 %v3544
    %v3617 = vunpack.c.l.b16 %v3545
    %v3618 = vunpack.c.l.b16 %v3546
    %v3619 = vunpack.c.l.b16 %v3547
    %v3620 = vunpack.c.l.b16 %v3548
    %v3621 = vunpack.c.l.b16 %v3549
    %v3622 = vunpack.c.l.b16 %v3550
    %v3623 = vunpack.c.l.b16 %v3551
    %v3624 = vunpack.c.l.b16 %v3552
    %v3625 = vunpack.c.l.b16 %v3553
    %v3626 = vunpack.c.l.b16 %v3554
    %v3627 = vunpack.c.l.b16 %v3555
    %v3628 = vunpack.c.l.b16 %v3556
    %v3629 = vunpack.c.l.b16 %v3557
    %v3630 = vunpack.c.l.b16 %v3558
    %v3631 = vunpack.c.l.b16 %v3559
    %v3632 = vunpack.c.l.b16 %v3560
    %v3633 = vunpack.c.l.b16 %v3561
    %v3634 = vpack.c.b16 %v3603, %v3602
    %v3635 = vpack.c.b16 %v3605, %v3604
    %v3636 = vpack.c.b16 %v3607, %v3606
    %v3637 = vpack.c.b16 %v3609, %v3608
    %v3638 = vpack.c.b16 %v3611, %v3610
    %v3639 = vpack.c.b16 %v3613, %v3612
    %v3640 = vpack.c.b16 %v3615, %v3614
    %v3641 = vpack.c.b16 %v3617, %v3616
    %v3642 = vpack.c.b16 %v3619, %v3618
    %v3643 = vpack.c.b16 %v3621, %v3620
    %v3644 = vpack.c.b16 %v3623, %v3622
    %v3645 = vpack.c.b16 %v3625, %v3624
    %v3646 = vpack.c.b16 %v3627, %v3626
    %v3647 = vpack.c.b16 %v3629, %v3628
    %v3648 = vpack.c.b16 %v3631, %v3630
    %v3649 = vpack.c.b16 %v3633, %v3632
    %3666 = vmatprep.subr.bf16.mxu0 0
    %3667 = vmatpush1.bf16.msra.mxu0 %v3641
    %3668 = vmatprep.subr.bf16.mxu0 0
    %3669 = vmatpush1.bf16.msra.mxu0 %v3640
    %3670 = vmatprep.subr.bf16.mxu0 0
    %3671 = vmatpush1.bf16.msra.mxu0 %v3639
    %3672 = vmatprep.subr.bf16.mxu0 0
    %3673 = vmatpush1.bf16.msra.mxu0 %v3638
    %3674 = vmatprep.subr.bf16.mxu0 0
    %3675 = vmatpush1.bf16.msra.mxu0 %v3637
    %3676 = vmatprep.subr.bf16.mxu0 0
    %3677 = vmatpush1.bf16.msra.mxu0 %v3636
    %3678 = vmatprep.subr.bf16.mxu0 0
    %3679 = vmatpush1.bf16.msra.mxu0 %v3635
    %3680 = vmatprep.subr.bf16.mxu0 0
    %3681 = vmatpush1.bf16.msra.mxu0 %v3634
    %3682 = vmatprep.subr.bf16.mxu0 0
    %3683 = vmatpush2.bf16.msra.mxu0 %v3649
    %3684 = vmatprep.subr.bf16.mxu0 0
    %3685 = vmatpush2.bf16.msra.mxu0 %v3648
    %3686 = vmatprep.subr.bf16.mxu0 0
    %3687 = vmatpush2.bf16.msra.mxu0 %v3647
    %3688 = vmatprep.subr.bf16.mxu0 0
    %3689 = vmatpush2.bf16.msra.mxu0 %v3646
    %3690 = vmatprep.subr.bf16.mxu0 0
    %3691 = vmatpush2.bf16.msra.mxu0 %v3645
    %3692 = vmatprep.subr.bf16.mxu0 0
    %3693 = vmatpush2.bf16.msra.mxu0 %v3644
    %3694 = vmatprep.subr.bf16.mxu0 0
    %3695 = vmatpush2.bf16.msra.mxu0 %v3643
    %3696 = vmatprep.subr.bf16.mxu0 0
    %3697 = vmatpush2.bf16.msra.mxu0 %v3642
    %3698 = vmatprep.mubr.bf16.mxu0 %v3566
    %3699 = vmatmul.mubr.bf16.gmra.mxu0 %v3563
    %v3700 = vpop.f32.mrf.mxu0
    %v3701 = vadd.f32 0.0, %v3700
    %v3702 = vpop.f32.mrf.mxu0
    %v3703 = vpop.f32.mrf.mxu0
    %v3704 = vpop.f32.mrf.mxu0
    %3705 = vdwg.mxu0
    %v3706 = vadd.f32 %v3485, %v3701
    %v3708 = vshrl.u32 %v3486, 16
    %v3711 = vshrl.u32 %v3487, 16
    %3715 = vmatprep.subr.bf16.mxu0 0
    %3716 = vmatpush1.bf16.msra.mxu0 %v3641
    %3717 = vmatprep.subr.bf16.mxu0 0
    %3718 = vmatpush1.bf16.msra.mxu0 %v3640
    %3719 = vmatprep.subr.bf16.mxu0 0
    %3720 = vmatpush1.bf16.msra.mxu0 %v3639
    %3721 = vmatprep.subr.bf16.mxu0 0
    %3722 = vmatpush1.bf16.msra.mxu0 %v3638
    %3723 = vmatprep.subr.bf16.mxu0 0
    %3724 = vmatpush1.bf16.msra.mxu0 %v3637
    %3725 = vmatprep.subr.bf16.mxu0 0
    %3726 = vmatpush1.bf16.msra.mxu0 %v3636
    %3727 = vmatprep.subr.bf16.mxu0 0
    %3728 = vmatpush1.bf16.msra.mxu0 %v3635
    %3729 = vmatprep.subr.bf16.mxu0 0
    %3730 = vmatpush1.bf16.msra.mxu0 %v3634
    %3731 = vmatprep.subr.bf16.mxu0 0
    %3732 = vmatpush2.bf16.msra.mxu0 %v3649
    %3733 = vmatprep.subr.bf16.mxu0 0
    %3734 = vmatpush2.bf16.msra.mxu0 %v3648
    %3735 = vmatprep.subr.bf16.mxu0 0
    %3736 = vmatpush2.bf16.msra.mxu0 %v3647
    %3737 = vmatprep.subr.bf16.mxu0 0
    %3738 = vmatpush2.bf16.msra.mxu0 %v3646
    %3739 = vmatprep.subr.bf16.mxu0 0
    %3740 = vmatpush2.bf16.msra.mxu0 %v3645
    %3741 = vmatprep.subr.bf16.mxu0 0
    %3742 = vmatpush2.bf16.msra.mxu0 %v3644
    %3743 = vmatprep.subr.bf16.mxu0 0
    %3744 = vmatpush2.bf16.msra.mxu0 %v3643
    %3745 = vmatprep.subr.bf16.mxu0 0
    %3746 = vmatpush2.bf16.msra.mxu0 %v3642
    %3747 = vmatprep.mubr.bf16.mxu0 %v3711
    %3748 = vmatmul.mubr.bf16.gmra.mxu0 %v3708
    %v3749 = vpop.f32.mrf.mxu0
    %v3750 = vadd.f32 0.0, %v3749
    %v3751 = vpop.f32.mrf.mxu0
    %v3752 = vpop.f32.mrf.mxu0
    %v3753 = vpop.f32.mrf.mxu0
    %3754 = vdwg.mxu0
    %v3755 = vadd.f32 %v3528, %v3750
    %s3756 = scalar_lea.vmem %s6, 256
    %v3757 = vld [vmem:[%s3756] sm:$0xf]
    %v3758 = vld [vmem:[%s3756 + $0x4] sm:$0xf]
    %v3759 = vld [vmem:[%s3756 + $0x8] sm:$0xf]
    %v3760 = vld [vmem:[%s3756 + $0xc] sm:$0xf]
    %v3761 = vld [vmem:[%s3756 + $0x10] sm:$0xf]
    %v3762 = vld [vmem:[%s3756 + $0x14] sm:$0xf]
    %v3763 = vld [vmem:[%s3756 + $0x18] sm:$0xf]
    %v3764 = vld [vmem:[%s3756 + $0x1c] sm:$0xf]
    %v3765 = vld [vmem:[%s3756 + $0x20] sm:$0xf]
    %v3766 = vld [vmem:[%s3756 + $0x24] sm:$0xf]
    %v3767 = vld [vmem:[%s3756 + $0x28] sm:$0xf]
    %v3768 = vld [vmem:[%s3756 + $0x2c] sm:$0xf]
    %v3769 = vld [vmem:[%s3756 + $0x30] sm:$0xf]
    %v3770 = vld [vmem:[%s3756 + $0x34] sm:$0xf]
    %v3771 = vld [vmem:[%s3756 + $0x38] sm:$0xf]
    %v3772 = vld [vmem:[%s3756 + $0x3c] sm:$0xf]
    %v3773 = vld [vmem:[%s3756 + $0x40] sm:$0xf]
    %v3774 = vld [vmem:[%s3756 + $0x44] sm:$0xf]
    %v3775 = vld [vmem:[%s3756 + $0x48] sm:$0xf]
    %v3776 = vld [vmem:[%s3756 + $0x4c] sm:$0xf]
    %v3777 = vld [vmem:[%s3756 + $0x50] sm:$0xf]
    %v3778 = vld [vmem:[%s3756 + $0x54] sm:$0xf]
    %v3779 = vld [vmem:[%s3756 + $0x58] sm:$0xf]
    %v3780 = vld [vmem:[%s3756 + $0x5c] sm:$0xf]
    %v3781 = vld [vmem:[%s3756 + $0x60] sm:$0xf]
    %v3782 = vld [vmem:[%s3756 + $0x64] sm:$0xf]
    %v3783 = vld [vmem:[%s3756 + $0x68] sm:$0xf]
    %v3784 = vld [vmem:[%s3756 + $0x6c] sm:$0xf]
    %v3785 = vld [vmem:[%s3756 + $0x70] sm:$0xf]
    %v3786 = vld [vmem:[%s3756 + $0x74] sm:$0xf]
    %v3787 = vld [vmem:[%s3756 + $0x78] sm:$0xf]
    %v3788 = vld [vmem:[%s3756 + $0x7c] sm:$0xf]
    %v3791 = vrot.slane %v3347, 1
    %v3792 = vrot.slane %v3348, 1
    %v3827 = vunpack.c.l.b16 %v3757
    %v3828 = vunpack.c.l.b16 %v3758
    %v3829 = vunpack.c.l.b16 %v3759
    %v3830 = vunpack.c.l.b16 %v3760
    %v3831 = vunpack.c.l.b16 %v3761
    %v3832 = vunpack.c.l.b16 %v3762
    %v3833 = vunpack.c.l.b16 %v3763
    %v3834 = vunpack.c.l.b16 %v3764
    %v3835 = vunpack.c.l.b16 %v3765
    %v3836 = vunpack.c.l.b16 %v3766
    %v3837 = vunpack.c.l.b16 %v3767
    %v3838 = vunpack.c.l.b16 %v3768
    %v3839 = vunpack.c.l.b16 %v3769
    %v3840 = vunpack.c.l.b16 %v3770
    %v3841 = vunpack.c.l.b16 %v3771
    %v3842 = vunpack.c.l.b16 %v3772
    %v3843 = vunpack.c.l.b16 %v3773
    %v3844 = vunpack.c.l.b16 %v3774
    %v3845 = vunpack.c.l.b16 %v3775
    %v3846 = vunpack.c.l.b16 %v3776
    %v3847 = vunpack.c.l.b16 %v3777
    %v3848 = vunpack.c.l.b16 %v3778
    %v3849 = vunpack.c.l.b16 %v3779
    %v3850 = vunpack.c.l.b16 %v3780
    %v3851 = vunpack.c.l.b16 %v3781
    %v3852 = vunpack.c.l.b16 %v3782
    %v3853 = vunpack.c.l.b16 %v3783
    %v3854 = vunpack.c.l.b16 %v3784
    %v3855 = vunpack.c.l.b16 %v3785
    %v3856 = vunpack.c.l.b16 %v3786
    %v3857 = vunpack.c.l.b16 %v3787
    %v3858 = vunpack.c.l.b16 %v3788
    %v3859 = vpack.c.b16 %v3828, %v3827
    %v3860 = vpack.c.b16 %v3830, %v3829
    %v3861 = vpack.c.b16 %v3832, %v3831
    %v3862 = vpack.c.b16 %v3834, %v3833
    %v3863 = vpack.c.b16 %v3836, %v3835
    %v3864 = vpack.c.b16 %v3838, %v3837
    %v3865 = vpack.c.b16 %v3840, %v3839
    %v3866 = vpack.c.b16 %v3842, %v3841
    %v3867 = vpack.c.b16 %v3844, %v3843
    %v3868 = vpack.c.b16 %v3846, %v3845
    %v3869 = vpack.c.b16 %v3848, %v3847
    %v3870 = vpack.c.b16 %v3850, %v3849
    %v3871 = vpack.c.b16 %v3852, %v3851
    %v3872 = vpack.c.b16 %v3854, %v3853
    %v3873 = vpack.c.b16 %v3856, %v3855
    %v3874 = vpack.c.b16 %v3858, %v3857
    %3891 = vmatprep.subr.bf16.mxu0 0
    %3892 = vmatpush1.bf16.msra.mxu0 %v3866
    %3893 = vmatprep.subr.bf16.mxu0 0
    %3894 = vmatpush1.bf16.msra.mxu0 %v3865
    %3895 = vmatprep.subr.bf16.mxu0 0
    %3896 = vmatpush1.bf16.msra.mxu0 %v3864
    %3897 = vmatprep.subr.bf16.mxu0 0
    %3898 = vmatpush1.bf16.msra.mxu0 %v3863
    %3899 = vmatprep.subr.bf16.mxu0 0
    %3900 = vmatpush1.bf16.msra.mxu0 %v3862
    %3901 = vmatprep.subr.bf16.mxu0 0
    %3902 = vmatpush1.bf16.msra.mxu0 %v3861
    %3903 = vmatprep.subr.bf16.mxu0 0
    %3904 = vmatpush1.bf16.msra.mxu0 %v3860
    %3905 = vmatprep.subr.bf16.mxu0 0
    %3906 = vmatpush1.bf16.msra.mxu0 %v3859
    %3907 = vmatprep.subr.bf16.mxu0 0
    %3908 = vmatpush2.bf16.msra.mxu0 %v3874
    %3909 = vmatprep.subr.bf16.mxu0 0
    %3910 = vmatpush2.bf16.msra.mxu0 %v3873
    %3911 = vmatprep.subr.bf16.mxu0 0
    %3912 = vmatpush2.bf16.msra.mxu0 %v3872
    %3913 = vmatprep.subr.bf16.mxu0 0
    %3914 = vmatpush2.bf16.msra.mxu0 %v3871
    %3915 = vmatprep.subr.bf16.mxu0 0
    %3916 = vmatpush2.bf16.msra.mxu0 %v3870
    %3917 = vmatprep.subr.bf16.mxu0 0
    %3918 = vmatpush2.bf16.msra.mxu0 %v3869
    %3919 = vmatprep.subr.bf16.mxu0 0
    %3920 = vmatpush2.bf16.msra.mxu0 %v3868
    %3921 = vmatprep.subr.bf16.mxu0 0
    %3922 = vmatpush2.bf16.msra.mxu0 %v3867
    %3923 = vmatprep.mubr.bf16.mxu0 %v3792
    %3924 = vmatmul.mubr.bf16.gmra.mxu0 %v3791
    %v3925 = vpop.f32.mrf.mxu0
    %v3926 = vadd.f32 0.0, %v3925
    %v3927 = vpop.f32.mrf.mxu0
    %v3928 = vpop.f32.mrf.mxu0
    %v3929 = vpop.f32.mrf.mxu0
    %3930 = vdwg.mxu0
    %v3931 = vadd.f32 %v3706, %v3926
    %v3934 = vrot.slane %v3486, 1
    %v3935 = vrot.slane %v3487, 1
    %3938 = vmatprep.subr.bf16.mxu0 0
    %3939 = vmatpush1.bf16.msra.mxu0 %v3866
    %3940 = vmatprep.subr.bf16.mxu0 0
    %3941 = vmatpush1.bf16.msra.mxu0 %v3865
    %3942 = vmatprep.subr.bf16.mxu0 0
    %3943 = vmatpush1.bf16.msra.mxu0 %v3864
    %3944 = vmatprep.subr.bf16.mxu0 0
    %3945 = vmatpush1.bf16.msra.mxu0 %v3863
    %3946 = vmatprep.subr.bf16.mxu0 0
    %3947 = vmatpush1.bf16.msra.mxu0 %v3862
    %3948 = vmatprep.subr.bf16.mxu0 0
    %3949 = vmatpush1.bf16.msra.mxu0 %v3861
    %3950 = vmatprep.subr.bf16.mxu0 0
    %3951 = vmatpush1.bf16.msra.mxu0 %v3860
    %3952 = vmatprep.subr.bf16.mxu0 0
    %3953 = vmatpush1.bf16.msra.mxu0 %v3859
    %3954 = vmatprep.subr.bf16.mxu0 0
    %3955 = vmatpush2.bf16.msra.mxu0 %v3874
    %3956 = vmatprep.subr.bf16.mxu0 0
    %3957 = vmatpush2.bf16.msra.mxu0 %v3873
    %3958 = vmatprep.subr.bf16.mxu0 0
    %3959 = vmatpush2.bf16.msra.mxu0 %v3872
    %3960 = vmatprep.subr.bf16.mxu0 0
    %3961 = vmatpush2.bf16.msra.mxu0 %v3871
    %3962 = vmatprep.subr.bf16.mxu0 0
    %3963 = vmatpush2.bf16.msra.mxu0 %v3870
    %3964 = vmatprep.subr.bf16.mxu0 0
    %3965 = vmatpush2.bf16.msra.mxu0 %v3869
    %3966 = vmatprep.subr.bf16.mxu0 0
    %3967 = vmatpush2.bf16.msra.mxu0 %v3868
    %3968 = vmatprep.subr.bf16.mxu0 0
    %3969 = vmatpush2.bf16.msra.mxu0 %v3867
    %3970 = vmatprep.mubr.bf16.mxu0 %v3935
    %3971 = vmatmul.mubr.bf16.gmra.mxu0 %v3934
    %v3972 = vpop.f32.mrf.mxu0
    %v3973 = vadd.f32 0.0, %v3972
    %v3974 = vpop.f32.mrf.mxu0
    %v3975 = vpop.f32.mrf.mxu0
    %v3976 = vpop.f32.mrf.mxu0
    %3977 = vdwg.mxu0
    %v3978 = vadd.f32 %v3755, %v3973
    %s3979 = scalar_lea.vmem %s6, 384
    %v3980 = vld [vmem:[%s3979] sm:$0xf]
    %v3981 = vld [vmem:[%s3979 + $0x4] sm:$0xf]
    %v3982 = vld [vmem:[%s3979 + $0x8] sm:$0xf]
    %v3983 = vld [vmem:[%s3979 + $0xc] sm:$0xf]
    %v3984 = vld [vmem:[%s3979 + $0x10] sm:$0xf]
    %v3985 = vld [vmem:[%s3979 + $0x14] sm:$0xf]
    %v3986 = vld [vmem:[%s3979 + $0x18] sm:$0xf]
    %v3987 = vld [vmem:[%s3979 + $0x1c] sm:$0xf]
    %v3988 = vld [vmem:[%s3979 + $0x20] sm:$0xf]
    %v3989 = vld [vmem:[%s3979 + $0x24] sm:$0xf]
    %v3990 = vld [vmem:[%s3979 + $0x28] sm:$0xf]
    %v3991 = vld [vmem:[%s3979 + $0x2c] sm:$0xf]
    %v3992 = vld [vmem:[%s3979 + $0x30] sm:$0xf]
    %v3993 = vld [vmem:[%s3979 + $0x34] sm:$0xf]
    %v3994 = vld [vmem:[%s3979 + $0x38] sm:$0xf]
    %v3995 = vld [vmem:[%s3979 + $0x3c] sm:$0xf]
    %v3996 = vld [vmem:[%s3979 + $0x40] sm:$0xf]
    %v3997 = vld [vmem:[%s3979 + $0x44] sm:$0xf]
    %v3998 = vld [vmem:[%s3979 + $0x48] sm:$0xf]
    %v3999 = vld [vmem:[%s3979 + $0x4c] sm:$0xf]
    %v4000 = vld [vmem:[%s3979 + $0x50] sm:$0xf]
    %v4001 = vld [vmem:[%s3979 + $0x54] sm:$0xf]
    %v4002 = vld [vmem:[%s3979 + $0x58] sm:$0xf]
    %v4003 = vld [vmem:[%s3979 + $0x5c] sm:$0xf]
    %v4004 = vld [vmem:[%s3979 + $0x60] sm:$0xf]
    %v4005 = vld [vmem:[%s3979 + $0x64] sm:$0xf]
    %v4006 = vld [vmem:[%s3979 + $0x68] sm:$0xf]
    %v4007 = vld [vmem:[%s3979 + $0x6c] sm:$0xf]
    %v4008 = vld [vmem:[%s3979 + $0x70] sm:$0xf]
    %v4009 = vld [vmem:[%s3979 + $0x74] sm:$0xf]
    %v4010 = vld [vmem:[%s3979 + $0x78] sm:$0xf]
    %v4011 = vld [vmem:[%s3979 + $0x7c] sm:$0xf]
    %v4012 = vrot.slane %v3563, 1
    %v4013 = vrot.slane %v3566, 1
    %v4048 = vunpack.c.l.b16 %v3980
    %v4049 = vunpack.c.l.b16 %v3981
    %v4050 = vunpack.c.l.b16 %v3982
    %v4051 = vunpack.c.l.b16 %v3983
    %v4052 = vunpack.c.l.b16 %v3984
    %v4053 = vunpack.c.l.b16 %v3985
    %v4054 = vunpack.c.l.b16 %v3986
    %v4055 = vunpack.c.l.b16 %v3987
    %v4056 = vunpack.c.l.b16 %v3988
    %v4057 = vunpack.c.l.b16 %v3989
    %v4058 = vunpack.c.l.b16 %v3990
    %v4059 = vunpack.c.l.b16 %v3991
    %v4060 = vunpack.c.l.b16 %v3992
    %v4061 = vunpack.c.l.b16 %v3993
    %v4062 = vunpack.c.l.b16 %v3994
    %v4063 = vunpack.c.l.b16 %v3995
    %v4064 = vunpack.c.l.b16 %v3996
    %v4065 = vunpack.c.l.b16 %v3997
    %v4066 = vunpack.c.l.b16 %v3998
    %v4067 = vunpack.c.l.b16 %v3999
    %v4068 = vunpack.c.l.b16 %v4000
    %v4069 = vunpack.c.l.b16 %v4001
    %v4070 = vunpack.c.l.b16 %v4002
    %v4071 = vunpack.c.l.b16 %v4003
    %v4072 = vunpack.c.l.b16 %v4004
    %v4073 = vunpack.c.l.b16 %v4005
    %v4074 = vunpack.c.l.b16 %v4006
    %v4075 = vunpack.c.l.b16 %v4007
    %v4076 = vunpack.c.l.b16 %v4008
    %v4077 = vunpack.c.l.b16 %v4009
    %v4078 = vunpack.c.l.b16 %v4010
    %v4079 = vunpack.c.l.b16 %v4011
    %v4080 = vpack.c.b16 %v4049, %v4048
    %v4081 = vpack.c.b16 %v4051, %v4050
    %v4082 = vpack.c.b16 %v4053, %v4052
    %v4083 = vpack.c.b16 %v4055, %v4054
    %v4084 = vpack.c.b16 %v4057, %v4056
    %v4085 = vpack.c.b16 %v4059, %v4058
    %v4086 = vpack.c.b16 %v4061, %v4060
    %v4087 = vpack.c.b16 %v4063, %v4062
    %v4088 = vpack.c.b16 %v4065, %v4064
    %v4089 = vpack.c.b16 %v4067, %v4066
    %v4090 = vpack.c.b16 %v4069, %v4068
    %v4091 = vpack.c.b16 %v4071, %v4070
    %v4092 = vpack.c.b16 %v4073, %v4072
    %v4093 = vpack.c.b16 %v4075, %v4074
    %v4094 = vpack.c.b16 %v4077, %v4076
    %v4095 = vpack.c.b16 %v4079, %v4078
    %4112 = vmatprep.subr.bf16.mxu0 0
    %4113 = vmatpush1.bf16.msra.mxu0 %v4087
    %4114 = vmatprep.subr.bf16.mxu0 0
    %4115 = vmatpush1.bf16.msra.mxu0 %v4086
    %4116 = vmatprep.subr.bf16.mxu0 0
    %4117 = vmatpush1.bf16.msra.mxu0 %v4085
    %4118 = vmatprep.subr.bf16.mxu0 0
    %4119 = vmatpush1.bf16.msra.mxu0 %v4084
    %4120 = vmatprep.subr.bf16.mxu0 0
    %4121 = vmatpush1.bf16.msra.mxu0 %v4083
    %4122 = vmatprep.subr.bf16.mxu0 0
    %4123 = vmatpush1.bf16.msra.mxu0 %v4082
    %4124 = vmatprep.subr.bf16.mxu0 0
    %4125 = vmatpush1.bf16.msra.mxu0 %v4081
    %4126 = vmatprep.subr.bf16.mxu0 0
    %4127 = vmatpush1.bf16.msra.mxu0 %v4080
    %4128 = vmatprep.subr.bf16.mxu0 0
    %4129 = vmatpush2.bf16.msra.mxu0 %v4095
    %4130 = vmatprep.subr.bf16.mxu0 0
    %4131 = vmatpush2.bf16.msra.mxu0 %v4094
    %4132 = vmatprep.subr.bf16.mxu0 0
    %4133 = vmatpush2.bf16.msra.mxu0 %v4093
    %4134 = vmatprep.subr.bf16.mxu0 0
    %4135 = vmatpush2.bf16.msra.mxu0 %v4092
    %4136 = vmatprep.subr.bf16.mxu0 0
    %4137 = vmatpush2.bf16.msra.mxu0 %v4091
    %4138 = vmatprep.subr.bf16.mxu0 0
    %4139 = vmatpush2.bf16.msra.mxu0 %v4090
    %4140 = vmatprep.subr.bf16.mxu0 0
    %4141 = vmatpush2.bf16.msra.mxu0 %v4089
    %4142 = vmatprep.subr.bf16.mxu0 0
    %4143 = vmatpush2.bf16.msra.mxu0 %v4088
    %4144 = vmatprep.mubr.bf16.mxu0 %v4013
    %4145 = vmatmul.mubr.bf16.gmra.mxu0 %v4012
    %v4146 = vpop.f32.mrf.mxu0
    %v4147 = vadd.f32 0.0, %v4146
    %v4148 = vpop.f32.mrf.mxu0
    %v4149 = vpop.f32.mrf.mxu0
    %v4150 = vpop.f32.mrf.mxu0
    %4151 = vdwg.mxu0
    %v4152 = vadd.f32 %v3931, %v4147
    %v4153 = vrot.slane %v3708, 1
    %v4154 = vrot.slane %v3711, 1
    %4157 = vmatprep.subr.bf16.mxu0 0
    %4158 = vmatpush1.bf16.msra.mxu0 %v4087
    %4159 = vmatprep.subr.bf16.mxu0 0
    %4160 = vmatpush1.bf16.msra.mxu0 %v4086
    %4161 = vmatprep.subr.bf16.mxu0 0
    %4162 = vmatpush1.bf16.msra.mxu0 %v4085
    %4163 = vmatprep.subr.bf16.mxu0 0
    %4164 = vmatpush1.bf16.msra.mxu0 %v4084
    %4165 = vmatprep.subr.bf16.mxu0 0
    %4166 = vmatpush1.bf16.msra.mxu0 %v4083
    %4167 = vmatprep.subr.bf16.mxu0 0
    %4168 = vmatpush1.bf16.msra.mxu0 %v4082
    %4169 = vmatprep.subr.bf16.mxu0 0
    %4170 = vmatpush1.bf16.msra.mxu0 %v4081
    %4171 = vmatprep.subr.bf16.mxu0 0
    %4172 = vmatpush1.bf16.msra.mxu0 %v4080
    %4173 = vmatprep.subr.bf16.mxu0 0
    %4174 = vmatpush2.bf16.msra.mxu0 %v4095
    %4175 = vmatprep.subr.bf16.mxu0 0
    %4176 = vmatpush2.bf16.msra.mxu0 %v4094
    %4177 = vmatprep.subr.bf16.mxu0 0
    %4178 = vmatpush2.bf16.msra.mxu0 %v4093
    %4179 = vmatprep.subr.bf16.mxu0 0
    %4180 = vmatpush2.bf16.msra.mxu0 %v4092
    %4181 = vmatprep.subr.bf16.mxu0 0
    %4182 = vmatpush2.bf16.msra.mxu0 %v4091
    %4183 = vmatprep.subr.bf16.mxu0 0
    %4184 = vmatpush2.bf16.msra.mxu0 %v4090
    %4185 = vmatprep.subr.bf16.mxu0 0
    %4186 = vmatpush2.bf16.msra.mxu0 %v4089
    %4187 = vmatprep.subr.bf16.mxu0 0
    %4188 = vmatpush2.bf16.msra.mxu0 %v4088
    %4189 = vmatprep.mubr.bf16.mxu0 %v4154
    %4190 = vmatmul.mubr.bf16.gmra.mxu0 %v4153
    %v4191 = vpop.f32.mrf.mxu0
    %v4192 = vadd.f32 0.0, %v4191
    %v4193 = vpop.f32.mrf.mxu0
    %v4194 = vpop.f32.mrf.mxu0
    %v4195 = vpop.f32.mrf.mxu0
    %4196 = vdwg.mxu0
    %v4197 = vadd.f32 %v3978, %v4192
    %s4198 = scalar_lea.vmem %s6, 512
    %v4199 = vld [vmem:[%s4198] sm:$0xf]
    %v4200 = vld [vmem:[%s4198 + $0x4] sm:$0xf]
    %v4201 = vld [vmem:[%s4198 + $0x8] sm:$0xf]
    %v4202 = vld [vmem:[%s4198 + $0xc] sm:$0xf]
    %v4203 = vld [vmem:[%s4198 + $0x10] sm:$0xf]
    %v4204 = vld [vmem:[%s4198 + $0x14] sm:$0xf]
    %v4205 = vld [vmem:[%s4198 + $0x18] sm:$0xf]
    %v4206 = vld [vmem:[%s4198 + $0x1c] sm:$0xf]
    %v4207 = vld [vmem:[%s4198 + $0x20] sm:$0xf]
    %v4208 = vld [vmem:[%s4198 + $0x24] sm:$0xf]
    %v4209 = vld [vmem:[%s4198 + $0x28] sm:$0xf]
    %v4210 = vld [vmem:[%s4198 + $0x2c] sm:$0xf]
    %v4211 = vld [vmem:[%s4198 + $0x30] sm:$0xf]
    %v4212 = vld [vmem:[%s4198 + $0x34] sm:$0xf]
    %v4213 = vld [vmem:[%s4198 + $0x38] sm:$0xf]
    %v4214 = vld [vmem:[%s4198 + $0x3c] sm:$0xf]
    %v4215 = vld [vmem:[%s4198 + $0x40] sm:$0xf]
    %v4216 = vld [vmem:[%s4198 + $0x44] sm:$0xf]
    %v4217 = vld [vmem:[%s4198 + $0x48] sm:$0xf]
    %v4218 = vld [vmem:[%s4198 + $0x4c] sm:$0xf]
    %v4219 = vld [vmem:[%s4198 + $0x50] sm:$0xf]
    %v4220 = vld [vmem:[%s4198 + $0x54] sm:$0xf]
    %v4221 = vld [vmem:[%s4198 + $0x58] sm:$0xf]
    %v4222 = vld [vmem:[%s4198 + $0x5c] sm:$0xf]
    %v4223 = vld [vmem:[%s4198 + $0x60] sm:$0xf]
    %v4224 = vld [vmem:[%s4198 + $0x64] sm:$0xf]
    %v4225 = vld [vmem:[%s4198 + $0x68] sm:$0xf]
    %v4226 = vld [vmem:[%s4198 + $0x6c] sm:$0xf]
    %v4227 = vld [vmem:[%s4198 + $0x70] sm:$0xf]
    %v4228 = vld [vmem:[%s4198 + $0x74] sm:$0xf]
    %v4229 = vld [vmem:[%s4198 + $0x78] sm:$0xf]
    %v4230 = vld [vmem:[%s4198 + $0x7c] sm:$0xf]
    %v4231 = vrot.slane %v3347, 2
    %v4232 = vrot.slane %v3348, 2
    %v4267 = vunpack.c.l.b16 %v4199
    %v4268 = vunpack.c.l.b16 %v4200
    %v4269 = vunpack.c.l.b16 %v4201
    %v4270 = vunpack.c.l.b16 %v4202
    %v4271 = vunpack.c.l.b16 %v4203
    %v4272 = vunpack.c.l.b16 %v4204
    %v4273 = vunpack.c.l.b16 %v4205
    %v4274 = vunpack.c.l.b16 %v4206
    %v4275 = vunpack.c.l.b16 %v4207
    %v4276 = vunpack.c.l.b16 %v4208
    %v4277 = vunpack.c.l.b16 %v4209
    %v4278 = vunpack.c.l.b16 %v4210
    %v4279 = vunpack.c.l.b16 %v4211
    %v4280 = vunpack.c.l.b16 %v4212
    %v4281 = vunpack.c.l.b16 %v4213
    %v4282 = vunpack.c.l.b16 %v4214
    %v4283 = vunpack.c.l.b16 %v4215
    %v4284 = vunpack.c.l.b16 %v4216
    %v4285 = vunpack.c.l.b16 %v4217
    %v4286 = vunpack.c.l.b16 %v4218
    %v4287 = vunpack.c.l.b16 %v4219
    %v4288 = vunpack.c.l.b16 %v4220
    %v4289 = vunpack.c.l.b16 %v4221
    %v4290 = vunpack.c.l.b16 %v4222
    %v4291 = vunpack.c.l.b16 %v4223
    %v4292 = vunpack.c.l.b16 %v4224
    %v4293 = vunpack.c.l.b16 %v4225
    %v4294 = vunpack.c.l.b16 %v4226
    %v4295 = vunpack.c.l.b16 %v4227
    %v4296 = vunpack.c.l.b16 %v4228
    %v4297 = vunpack.c.l.b16 %v4229
    %v4298 = vunpack.c.l.b16 %v4230
    %v4299 = vpack.c.b16 %v4268, %v4267
    %v4300 = vpack.c.b16 %v4270, %v4269
    %v4301 = vpack.c.b16 %v4272, %v4271
    %v4302 = vpack.c.b16 %v4274, %v4273
    %v4303 = vpack.c.b16 %v4276, %v4275
    %v4304 = vpack.c.b16 %v4278, %v4277
    %v4305 = vpack.c.b16 %v4280, %v4279
    %v4306 = vpack.c.b16 %v4282, %v4281
    %v4307 = vpack.c.b16 %v4284, %v4283
    %v4308 = vpack.c.b16 %v4286, %v4285
    %v4309 = vpack.c.b16 %v4288, %v4287
    %v4310 = vpack.c.b16 %v4290, %v4289
    %v4311 = vpack.c.b16 %v4292, %v4291
    %v4312 = vpack.c.b16 %v4294, %v4293
    %v4313 = vpack.c.b16 %v4296, %v4295
    %v4314 = vpack.c.b16 %v4298, %v4297
    %4331 = vmatprep.subr.bf16.mxu0 0
    %4332 = vmatpush1.bf16.msra.mxu0 %v4306
    %4333 = vmatprep.subr.bf16.mxu0 0
    %4334 = vmatpush1.bf16.msra.mxu0 %v4305
    %4335 = vmatprep.subr.bf16.mxu0 0
    %4336 = vmatpush1.bf16.msra.mxu0 %v4304
    %4337 = vmatprep.subr.bf16.mxu0 0
    %4338 = vmatpush1.bf16.msra.mxu0 %v4303
    %4339 = vmatprep.subr.bf16.mxu0 0
    %4340 = vmatpush1.bf16.msra.mxu0 %v4302
    %4341 = vmatprep.subr.bf16.mxu0 0
    %4342 = vmatpush1.bf16.msra.mxu0 %v4301
    %4343 = vmatprep.subr.bf16.mxu0 0
    %4344 = vmatpush1.bf16.msra.mxu0 %v4300
    %4345 = vmatprep.subr.bf16.mxu0 0
    %4346 = vmatpush1.bf16.msra.mxu0 %v4299
    %4347 = vmatprep.subr.bf16.mxu0 0
    %4348 = vmatpush2.bf16.msra.mxu0 %v4314
    %4349 = vmatprep.subr.bf16.mxu0 0
    %4350 = vmatpush2.bf16.msra.mxu0 %v4313
    %4351 = vmatprep.subr.bf16.mxu0 0
    %4352 = vmatpush2.bf16.msra.mxu0 %v4312
    %4353 = vmatprep.subr.bf16.mxu0 0
    %4354 = vmatpush2.bf16.msra.mxu0 %v4311
    %4355 = vmatprep.subr.bf16.mxu0 0
    %4356 = vmatpush2.bf16.msra.mxu0 %v4310
    %4357 = vmatprep.subr.bf16.mxu0 0
    %4358 = vmatpush2.bf16.msra.mxu0 %v4309
    %4359 = vmatprep.subr.bf16.mxu0 0
    %4360 = vmatpush2.bf16.msra.mxu0 %v4308
    %4361 = vmatprep.subr.bf16.mxu0 0
    %4362 = vmatpush2.bf16.msra.mxu0 %v4307
    %4363 = vmatprep.mubr.bf16.mxu0 %v4232
    %4364 = vmatmul.mubr.bf16.gmra.mxu0 %v4231
    %v4365 = vpop.f32.mrf.mxu0
    %v4366 = vadd.f32 0.0, %v4365
    %v4367 = vpop.f32.mrf.mxu0
    %v4368 = vpop.f32.mrf.mxu0
    %v4369 = vpop.f32.mrf.mxu0
    %4370 = vdwg.mxu0
    %v4371 = vadd.f32 %v4152, %v4366
    %v4372 = vrot.slane %v3486, 2
    %v4373 = vrot.slane %v3487, 2
    %4376 = vmatprep.subr.bf16.mxu0 0
    %4377 = vmatpush1.bf16.msra.mxu0 %v4306
    %4378 = vmatprep.subr.bf16.mxu0 0
    %4379 = vmatpush1.bf16.msra.mxu0 %v4305
    %4380 = vmatprep.subr.bf16.mxu0 0
    %4381 = vmatpush1.bf16.msra.mxu0 %v4304
    %4382 = vmatprep.subr.bf16.mxu0 0
    %4383 = vmatpush1.bf16.msra.mxu0 %v4303
    %4384 = vmatprep.subr.bf16.mxu0 0
    %4385 = vmatpush1.bf16.msra.mxu0 %v4302
    %4386 = vmatprep.subr.bf16.mxu0 0
    %4387 = vmatpush1.bf16.msra.mxu0 %v4301
    %4388 = vmatprep.subr.bf16.mxu0 0
    %4389 = vmatpush1.bf16.msra.mxu0 %v4300
    %4390 = vmatprep.subr.bf16.mxu0 0
    %4391 = vmatpush1.bf16.msra.mxu0 %v4299
    %4392 = vmatprep.subr.bf16.mxu0 0
    %4393 = vmatpush2.bf16.msra.mxu0 %v4314
    %4394 = vmatprep.subr.bf16.mxu0 0
    %4395 = vmatpush2.bf16.msra.mxu0 %v4313
    %4396 = vmatprep.subr.bf16.mxu0 0
    %4397 = vmatpush2.bf16.msra.mxu0 %v4312
    %4398 = vmatprep.subr.bf16.mxu0 0
    %4399 = vmatpush2.bf16.msra.mxu0 %v4311
    %4400 = vmatprep.subr.bf16.mxu0 0
    %4401 = vmatpush2.bf16.msra.mxu0 %v4310
    %4402 = vmatprep.subr.bf16.mxu0 0
    %4403 = vmatpush2.bf16.msra.mxu0 %v4309
    %4404 = vmatprep.subr.bf16.mxu0 0
    %4405 = vmatpush2.bf16.msra.mxu0 %v4308
    %4406 = vmatprep.subr.bf16.mxu0 0
    %4407 = vmatpush2.bf16.msra.mxu0 %v4307
    %4408 = vmatprep.mubr.bf16.mxu0 %v4373
    %4409 = vmatmul.mubr.bf16.gmra.mxu0 %v4372
    %v4410 = vpop.f32.mrf.mxu0
    %v4411 = vadd.f32 0.0, %v4410
    %v4412 = vpop.f32.mrf.mxu0
    %v4413 = vpop.f32.mrf.mxu0
    %v4414 = vpop.f32.mrf.mxu0
    %4415 = vdwg.mxu0
    %v4416 = vadd.f32 %v4197, %v4411
    %s4417 = scalar_lea.vmem %s6, 640
    %v4418 = vld [vmem:[%s4417] sm:$0xf]
    %v4419 = vld [vmem:[%s4417 + $0x4] sm:$0xf]
    %v4420 = vld [vmem:[%s4417 + $0x8] sm:$0xf]
    %v4421 = vld [vmem:[%s4417 + $0xc] sm:$0xf]
    %v4422 = vld [vmem:[%s4417 + $0x10] sm:$0xf]
    %v4423 = vld [vmem:[%s4417 + $0x14] sm:$0xf]
    %v4424 = vld [vmem:[%s4417 + $0x18] sm:$0xf]
    %v4425 = vld [vmem:[%s4417 + $0x1c] sm:$0xf]
    %v4426 = vld [vmem:[%s4417 + $0x20] sm:$0xf]
    %v4427 = vld [vmem:[%s4417 + $0x24] sm:$0xf]
    %v4428 = vld [vmem:[%s4417 + $0x28] sm:$0xf]
    %v4429 = vld [vmem:[%s4417 + $0x2c] sm:$0xf]
    %v4430 = vld [vmem:[%s4417 + $0x30] sm:$0xf]
    %v4431 = vld [vmem:[%s4417 + $0x34] sm:$0xf]
    %v4432 = vld [vmem:[%s4417 + $0x38] sm:$0xf]
    %v4433 = vld [vmem:[%s4417 + $0x3c] sm:$0xf]
    %v4434 = vld [vmem:[%s4417 + $0x40] sm:$0xf]
    %v4435 = vld [vmem:[%s4417 + $0x44] sm:$0xf]
    %v4436 = vld [vmem:[%s4417 + $0x48] sm:$0xf]
    %v4437 = vld [vmem:[%s4417 + $0x4c] sm:$0xf]
    %v4438 = vld [vmem:[%s4417 + $0x50] sm:$0xf]
    %v4439 = vld [vmem:[%s4417 + $0x54] sm:$0xf]
    %v4440 = vld [vmem:[%s4417 + $0x58] sm:$0xf]
    %v4441 = vld [vmem:[%s4417 + $0x5c] sm:$0xf]
    %v4442 = vld [vmem:[%s4417 + $0x60] sm:$0xf]
    %v4443 = vld [vmem:[%s4417 + $0x64] sm:$0xf]
    %v4444 = vld [vmem:[%s4417 + $0x68] sm:$0xf]
    %v4445 = vld [vmem:[%s4417 + $0x6c] sm:$0xf]
    %v4446 = vld [vmem:[%s4417 + $0x70] sm:$0xf]
    %v4447 = vld [vmem:[%s4417 + $0x74] sm:$0xf]
    %v4448 = vld [vmem:[%s4417 + $0x78] sm:$0xf]
    %v4449 = vld [vmem:[%s4417 + $0x7c] sm:$0xf]
    %v4450 = vrot.slane %v3563, 2
    %v4451 = vrot.slane %v3566, 2
    %v4486 = vunpack.c.l.b16 %v4418
    %v4487 = vunpack.c.l.b16 %v4419
    %v4488 = vunpack.c.l.b16 %v4420
    %v4489 = vunpack.c.l.b16 %v4421
    %v4490 = vunpack.c.l.b16 %v4422
    %v4491 = vunpack.c.l.b16 %v4423
    %v4492 = vunpack.c.l.b16 %v4424
    %v4493 = vunpack.c.l.b16 %v4425
    %v4494 = vunpack.c.l.b16 %v4426
    %v4495 = vunpack.c.l.b16 %v4427
    %v4496 = vunpack.c.l.b16 %v4428
    %v4497 = vunpack.c.l.b16 %v4429
    %v4498 = vunpack.c.l.b16 %v4430
    %v4499 = vunpack.c.l.b16 %v4431
    %v4500 = vunpack.c.l.b16 %v4432
    %v4501 = vunpack.c.l.b16 %v4433
    %v4502 = vunpack.c.l.b16 %v4434
    %v4503 = vunpack.c.l.b16 %v4435
    %v4504 = vunpack.c.l.b16 %v4436
    %v4505 = vunpack.c.l.b16 %v4437
    %v4506 = vunpack.c.l.b16 %v4438
    %v4507 = vunpack.c.l.b16 %v4439
    %v4508 = vunpack.c.l.b16 %v4440
    %v4509 = vunpack.c.l.b16 %v4441
    %v4510 = vunpack.c.l.b16 %v4442
    %v4511 = vunpack.c.l.b16 %v4443
    %v4512 = vunpack.c.l.b16 %v4444
    %v4513 = vunpack.c.l.b16 %v4445
    %v4514 = vunpack.c.l.b16 %v4446
    %v4515 = vunpack.c.l.b16 %v4447
    %v4516 = vunpack.c.l.b16 %v4448
    %v4517 = vunpack.c.l.b16 %v4449
    %v4518 = vpack.c.b16 %v4487, %v4486
    %v4519 = vpack.c.b16 %v4489, %v4488
    %v4520 = vpack.c.b16 %v4491, %v4490
    %v4521 = vpack.c.b16 %v4493, %v4492
    %v4522 = vpack.c.b16 %v4495, %v4494
    %v4523 = vpack.c.b16 %v4497, %v4496
    %v4524 = vpack.c.b16 %v4499, %v4498
    %v4525 = vpack.c.b16 %v4501, %v4500
    %v4526 = vpack.c.b16 %v4503, %v4502
    %v4527 = vpack.c.b16 %v4505, %v4504
    %v4528 = vpack.c.b16 %v4507, %v4506
    %v4529 = vpack.c.b16 %v4509, %v4508
    %v4530 = vpack.c.b16 %v4511, %v4510
    %v4531 = vpack.c.b16 %v4513, %v4512
    %v4532 = vpack.c.b16 %v4515, %v4514
    %v4533 = vpack.c.b16 %v4517, %v4516
    %4550 = vmatprep.subr.bf16.mxu0 0
    %4551 = vmatpush1.bf16.msra.mxu0 %v4525
    %4552 = vmatprep.subr.bf16.mxu0 0
    %4553 = vmatpush1.bf16.msra.mxu0 %v4524
    %4554 = vmatprep.subr.bf16.mxu0 0
    %4555 = vmatpush1.bf16.msra.mxu0 %v4523
    %4556 = vmatprep.subr.bf16.mxu0 0
    %4557 = vmatpush1.bf16.msra.mxu0 %v4522
    %4558 = vmatprep.subr.bf16.mxu0 0
    %4559 = vmatpush1.bf16.msra.mxu0 %v4521
    %4560 = vmatprep.subr.bf16.mxu0 0
    %4561 = vmatpush1.bf16.msra.mxu0 %v4520
    %4562 = vmatprep.subr.bf16.mxu0 0
    %4563 = vmatpush1.bf16.msra.mxu0 %v4519
    %4564 = vmatprep.subr.bf16.mxu0 0
    %4565 = vmatpush1.bf16.msra.mxu0 %v4518
    %4566 = vmatprep.subr.bf16.mxu0 0
    %4567 = vmatpush2.bf16.msra.mxu0 %v4533
    %4568 = vmatprep.subr.bf16.mxu0 0
    %4569 = vmatpush2.bf16.msra.mxu0 %v4532
    %4570 = vmatprep.subr.bf16.mxu0 0
    %4571 = vmatpush2.bf16.msra.mxu0 %v4531
    %4572 = vmatprep.subr.bf16.mxu0 0
    %4573 = vmatpush2.bf16.msra.mxu0 %v4530
    %4574 = vmatprep.subr.bf16.mxu0 0
    %4575 = vmatpush2.bf16.msra.mxu0 %v4529
    %4576 = vmatprep.subr.bf16.mxu0 0
    %4577 = vmatpush2.bf16.msra.mxu0 %v4528
    %4578 = vmatprep.subr.bf16.mxu0 0
    %4579 = vmatpush2.bf16.msra.mxu0 %v4527
    %4580 = vmatprep.subr.bf16.mxu0 0
    %4581 = vmatpush2.bf16.msra.mxu0 %v4526
    %4582 = vmatprep.mubr.bf16.mxu0 %v4451
    %4583 = vmatmul.mubr.bf16.gmra.mxu0 %v4450
    %v4584 = vpop.f32.mrf.mxu0
    %v4585 = vadd.f32 0.0, %v4584
    %v4586 = vpop.f32.mrf.mxu0
    %v4587 = vpop.f32.mrf.mxu0
    %v4588 = vpop.f32.mrf.mxu0
    %4589 = vdwg.mxu0
    %v4590 = vadd.f32 %v4371, %v4585
    %v4591 = vrot.slane %v3708, 2
    %v4592 = vrot.slane %v3711, 2
    %4595 = vmatprep.subr.bf16.mxu0 0
    %4596 = vmatpush1.bf16.msra.mxu0 %v4525
    %4597 = vmatprep.subr.bf16.mxu0 0
    %4598 = vmatpush1.bf16.msra.mxu0 %v4524
    %4599 = vmatprep.subr.bf16.mxu0 0
    %4600 = vmatpush1.bf16.msra.mxu0 %v4523
    %4601 = vmatprep.subr.bf16.mxu0 0
    %4602 = vmatpush1.bf16.msra.mxu0 %v4522
    %4603 = vmatprep.subr.bf16.mxu0 0
    %4604 = vmatpush1.bf16.msra.mxu0 %v4521
    %4605 = vmatprep.subr.bf16.mxu0 0
    %4606 = vmatpush1.bf16.msra.mxu0 %v4520
    %4607 = vmatprep.subr.bf16.mxu0 0
    %4608 = vmatpush1.bf16.msra.mxu0 %v4519
    %4609 = vmatprep.subr.bf16.mxu0 0
    %4610 = vmatpush1.bf16.msra.mxu0 %v4518
    %4611 = vmatprep.subr.bf16.mxu0 0
    %4612 = vmatpush2.bf16.msra.mxu0 %v4533
    %4613 = vmatprep.subr.bf16.mxu0 0
    %4614 = vmatpush2.bf16.msra.mxu0 %v4532
    %4615 = vmatprep.subr.bf16.mxu0 0
    %4616 = vmatpush2.bf16.msra.mxu0 %v4531
    %4617 = vmatprep.subr.bf16.mxu0 0
    %4618 = vmatpush2.bf16.msra.mxu0 %v4530
    %4619 = vmatprep.subr.bf16.mxu0 0
    %4620 = vmatpush2.bf16.msra.mxu0 %v4529
    %4621 = vmatprep.subr.bf16.mxu0 0
    %4622 = vmatpush2.bf16.msra.mxu0 %v4528
    %4623 = vmatprep.subr.bf16.mxu0 0
    %4624 = vmatpush2.bf16.msra.mxu0 %v4527
    %4625 = vmatprep.subr.bf16.mxu0 0
    %4626 = vmatpush2.bf16.msra.mxu0 %v4526
    %4627 = vmatprep.mubr.bf16.mxu0 %v4592
    %4628 = vmatmul.mubr.bf16.gmra.mxu0 %v4591
    %v4629 = vpop.f32.mrf.mxu0
    %v4630 = vadd.f32 0.0, %v4629
    %v4631 = vpop.f32.mrf.mxu0
    %v4632 = vpop.f32.mrf.mxu0
    %v4633 = vpop.f32.mrf.mxu0
    %4634 = vdwg.mxu0
    %v4635 = vadd.f32 %v4416, %v4630
    %s4636 = scalar_lea.vmem %s6, 768
    %v4637 = vld [vmem:[%s4636] sm:$0xf]
    %v4638 = vld [vmem:[%s4636 + $0x4] sm:$0xf]
    %v4639 = vld [vmem:[%s4636 + $0x8] sm:$0xf]
    %v4640 = vld [vmem:[%s4636 + $0xc] sm:$0xf]
    %v4641 = vld [vmem:[%s4636 + $0x10] sm:$0xf]
    %v4642 = vld [vmem:[%s4636 + $0x14] sm:$0xf]
    %v4643 = vld [vmem:[%s4636 + $0x18] sm:$0xf]
    %v4644 = vld [vmem:[%s4636 + $0x1c] sm:$0xf]
    %v4645 = vld [vmem:[%s4636 + $0x20] sm:$0xf]
    %v4646 = vld [vmem:[%s4636 + $0x24] sm:$0xf]
    %v4647 = vld [vmem:[%s4636 + $0x28] sm:$0xf]
    %v4648 = vld [vmem:[%s4636 + $0x2c] sm:$0xf]
    %v4649 = vld [vmem:[%s4636 + $0x30] sm:$0xf]
    %v4650 = vld [vmem:[%s4636 + $0x34] sm:$0xf]
    %v4651 = vld [vmem:[%s4636 + $0x38] sm:$0xf]
    %v4652 = vld [vmem:[%s4636 + $0x3c] sm:$0xf]
    %v4653 = vld [vmem:[%s4636 + $0x40] sm:$0xf]
    %v4654 = vld [vmem:[%s4636 + $0x44] sm:$0xf]
    %v4655 = vld [vmem:[%s4636 + $0x48] sm:$0xf]
    %v4656 = vld [vmem:[%s4636 + $0x4c] sm:$0xf]
    %v4657 = vld [vmem:[%s4636 + $0x50] sm:$0xf]
    %v4658 = vld [vmem:[%s4636 + $0x54] sm:$0xf]
    %v4659 = vld [vmem:[%s4636 + $0x58] sm:$0xf]
    %v4660 = vld [vmem:[%s4636 + $0x5c] sm:$0xf]
    %v4661 = vld [vmem:[%s4636 + $0x60] sm:$0xf]
    %v4662 = vld [vmem:[%s4636 + $0x64] sm:$0xf]
    %v4663 = vld [vmem:[%s4636 + $0x68] sm:$0xf]
    %v4664 = vld [vmem:[%s4636 + $0x6c] sm:$0xf]
    %v4665 = vld [vmem:[%s4636 + $0x70] sm:$0xf]
    %v4666 = vld [vmem:[%s4636 + $0x74] sm:$0xf]
    %v4667 = vld [vmem:[%s4636 + $0x78] sm:$0xf]
    %v4668 = vld [vmem:[%s4636 + $0x7c] sm:$0xf]
    %v4669 = vrot.slane %v3347, 3
    %v4670 = vrot.slane %v3348, 3
    %v4705 = vunpack.c.l.b16 %v4637
    %v4706 = vunpack.c.l.b16 %v4638
    %v4707 = vunpack.c.l.b16 %v4639
    %v4708 = vunpack.c.l.b16 %v4640
    %v4709 = vunpack.c.l.b16 %v4641
    %v4710 = vunpack.c.l.b16 %v4642
    %v4711 = vunpack.c.l.b16 %v4643
    %v4712 = vunpack.c.l.b16 %v4644
    %v4713 = vunpack.c.l.b16 %v4645
    %v4714 = vunpack.c.l.b16 %v4646
    %v4715 = vunpack.c.l.b16 %v4647
    %v4716 = vunpack.c.l.b16 %v4648
    %v4717 = vunpack.c.l.b16 %v4649
    %v4718 = vunpack.c.l.b16 %v4650
    %v4719 = vunpack.c.l.b16 %v4651
    %v4720 = vunpack.c.l.b16 %v4652
    %v4721 = vunpack.c.l.b16 %v4653
    %v4722 = vunpack.c.l.b16 %v4654
    %v4723 = vunpack.c.l.b16 %v4655
    %v4724 = vunpack.c.l.b16 %v4656
    %v4725 = vunpack.c.l.b16 %v4657
    %v4726 = vunpack.c.l.b16 %v4658
    %v4727 = vunpack.c.l.b16 %v4659
    %v4728 = vunpack.c.l.b16 %v4660
    %v4729 = vunpack.c.l.b16 %v4661
    %v4730 = vunpack.c.l.b16 %v4662
    %v4731 = vunpack.c.l.b16 %v4663
    %v4732 = vunpack.c.l.b16 %v4664
    %v4733 = vunpack.c.l.b16 %v4665
    %v4734 = vunpack.c.l.b16 %v4666
    %v4735 = vunpack.c.l.b16 %v4667
    %v4736 = vunpack.c.l.b16 %v4668
    %v4737 = vpack.c.b16 %v4706, %v4705
    %v4738 = vpack.c.b16 %v4708, %v4707
    %v4739 = vpack.c.b16 %v4710, %v4709
    %v4740 = vpack.c.b16 %v4712, %v4711
    %v4741 = vpack.c.b16 %v4714, %v4713
    %v4742 = vpack.c.b16 %v4716, %v4715
    %v4743 = vpack.c.b16 %v4718, %v4717
    %v4744 = vpack.c.b16 %v4720, %v4719
    %v4745 = vpack.c.b16 %v4722, %v4721
    %v4746 = vpack.c.b16 %v4724, %v4723
    %v4747 = vpack.c.b16 %v4726, %v4725
    %v4748 = vpack.c.b16 %v4728, %v4727
    %v4749 = vpack.c.b16 %v4730, %v4729
    %v4750 = vpack.c.b16 %v4732, %v4731
    %v4751 = vpack.c.b16 %v4734, %v4733
    %v4752 = vpack.c.b16 %v4736, %v4735
    %4769 = vmatprep.subr.bf16.mxu0 0
    %4770 = vmatpush1.bf16.msra.mxu0 %v4744
    %4771 = vmatprep.subr.bf16.mxu0 0
    %4772 = vmatpush1.bf16.msra.mxu0 %v4743
    %4773 = vmatprep.subr.bf16.mxu0 0
    %4774 = vmatpush1.bf16.msra.mxu0 %v4742
    %4775 = vmatprep.subr.bf16.mxu0 0
    %4776 = vmatpush1.bf16.msra.mxu0 %v4741
    %4777 = vmatprep.subr.bf16.mxu0 0
    %4778 = vmatpush1.bf16.msra.mxu0 %v4740
    %4779 = vmatprep.subr.bf16.mxu0 0
    %4780 = vmatpush1.bf16.msra.mxu0 %v4739
    %4781 = vmatprep.subr.bf16.mxu0 0
    %4782 = vmatpush1.bf16.msra.mxu0 %v4738
    %4783 = vmatprep.subr.bf16.mxu0 0
    %4784 = vmatpush1.bf16.msra.mxu0 %v4737
    %4785 = vmatprep.subr.bf16.mxu0 0
    %4786 = vmatpush2.bf16.msra.mxu0 %v4752
    %4787 = vmatprep.subr.bf16.mxu0 0
    %4788 = vmatpush2.bf16.msra.mxu0 %v4751
    %4789 = vmatprep.subr.bf16.mxu0 0
    %4790 = vmatpush2.bf16.msra.mxu0 %v4750
    %4791 = vmatprep.subr.bf16.mxu0 0
    %4792 = vmatpush2.bf16.msra.mxu0 %v4749
    %4793 = vmatprep.subr.bf16.mxu0 0
    %4794 = vmatpush2.bf16.msra.mxu0 %v4748
    %4795 = vmatprep.subr.bf16.mxu0 0
    %4796 = vmatpush2.bf16.msra.mxu0 %v4747
    %4797 = vmatprep.subr.bf16.mxu0 0
    %4798 = vmatpush2.bf16.msra.mxu0 %v4746
    %4799 = vmatprep.subr.bf16.mxu0 0
    %4800 = vmatpush2.bf16.msra.mxu0 %v4745
    %4801 = vmatprep.mubr.bf16.mxu0 %v4670
    %4802 = vmatmul.mubr.bf16.gmra.mxu0 %v4669
    %v4803 = vpop.f32.mrf.mxu0
    %v4804 = vadd.f32 0.0, %v4803
    %v4805 = vpop.f32.mrf.mxu0
    %v4806 = vpop.f32.mrf.mxu0
    %v4807 = vpop.f32.mrf.mxu0
    %4808 = vdwg.mxu0
    %v4809 = vadd.f32 %v4590, %v4804
    %v4810 = vrot.slane %v3486, 3
    %v4811 = vrot.slane %v3487, 3
    %4814 = vmatprep.subr.bf16.mxu0 0
    %4815 = vmatpush1.bf16.msra.mxu0 %v4744
    %4816 = vmatprep.subr.bf16.mxu0 0
    %4817 = vmatpush1.bf16.msra.mxu0 %v4743
    %4818 = vmatprep.subr.bf16.mxu0 0
    %4819 = vmatpush1.bf16.msra.mxu0 %v4742
    %4820 = vmatprep.subr.bf16.mxu0 0
    %4821 = vmatpush1.bf16.msra.mxu0 %v4741
    %4822 = vmatprep.subr.bf16.mxu0 0
    %4823 = vmatpush1.bf16.msra.mxu0 %v4740
    %4824 = vmatprep.subr.bf16.mxu0 0
    %4825 = vmatpush1.bf16.msra.mxu0 %v4739
    %4826 = vmatprep.subr.bf16.mxu0 0
    %4827 = vmatpush1.bf16.msra.mxu0 %v4738
    %4828 = vmatprep.subr.bf16.mxu0 0
    %4829 = vmatpush1.bf16.msra.mxu0 %v4737
    %4830 = vmatprep.subr.bf16.mxu0 0
    %4831 = vmatpush2.bf16.msra.mxu0 %v4752
    %4832 = vmatprep.subr.bf16.mxu0 0
    %4833 = vmatpush2.bf16.msra.mxu0 %v4751
    %4834 = vmatprep.subr.bf16.mxu0 0
    %4835 = vmatpush2.bf16.msra.mxu0 %v4750
    %4836 = vmatprep.subr.bf16.mxu0 0
    %4837 = vmatpush2.bf16.msra.mxu0 %v4749
    %4838 = vmatprep.subr.bf16.mxu0 0
    %4839 = vmatpush2.bf16.msra.mxu0 %v4748
    %4840 = vmatprep.subr.bf16.mxu0 0
    %4841 = vmatpush2.bf16.msra.mxu0 %v4747
    %4842 = vmatprep.subr.bf16.mxu0 0
    %4843 = vmatpush2.bf16.msra.mxu0 %v4746
    %4844 = vmatprep.subr.bf16.mxu0 0
    %4845 = vmatpush2.bf16.msra.mxu0 %v4745
    %4846 = vmatprep.mubr.bf16.mxu0 %v4811
    %4847 = vmatmul.mubr.bf16.gmra.mxu0 %v4810
    %v4848 = vpop.f32.mrf.mxu0
    %v4849 = vadd.f32 0.0, %v4848
    %v4850 = vpop.f32.mrf.mxu0
    %v4851 = vpop.f32.mrf.mxu0
    %v4852 = vpop.f32.mrf.mxu0
    %4853 = vdwg.mxu0
    %v4854 = vadd.f32 %v4635, %v4849
    %s4855 = scalar_lea.vmem %s6, 896
    %v4856 = vld [vmem:[%s4855] sm:$0xf]
    %v4857 = vld [vmem:[%s4855 + $0x4] sm:$0xf]
    %v4858 = vld [vmem:[%s4855 + $0x8] sm:$0xf]
    %v4859 = vld [vmem:[%s4855 + $0xc] sm:$0xf]
    %v4860 = vld [vmem:[%s4855 + $0x10] sm:$0xf]
    %v4861 = vld [vmem:[%s4855 + $0x14] sm:$0xf]
    %v4862 = vld [vmem:[%s4855 + $0x18] sm:$0xf]
    %v4863 = vld [vmem:[%s4855 + $0x1c] sm:$0xf]
    %v4864 = vld [vmem:[%s4855 + $0x20] sm:$0xf]
    %v4865 = vld [vmem:[%s4855 + $0x24] sm:$0xf]
    %v4866 = vld [vmem:[%s4855 + $0x28] sm:$0xf]
    %v4867 = vld [vmem:[%s4855 + $0x2c] sm:$0xf]
    %v4868 = vld [vmem:[%s4855 + $0x30] sm:$0xf]
    %v4869 = vld [vmem:[%s4855 + $0x34] sm:$0xf]
    %v4870 = vld [vmem:[%s4855 + $0x38] sm:$0xf]
    %v4871 = vld [vmem:[%s4855 + $0x3c] sm:$0xf]
    %v4872 = vld [vmem:[%s4855 + $0x40] sm:$0xf]
    %v4873 = vld [vmem:[%s4855 + $0x44] sm:$0xf]
    %v4874 = vld [vmem:[%s4855 + $0x48] sm:$0xf]
    %v4875 = vld [vmem:[%s4855 + $0x4c] sm:$0xf]
    %v4876 = vld [vmem:[%s4855 + $0x50] sm:$0xf]
    %v4877 = vld [vmem:[%s4855 + $0x54] sm:$0xf]
    %v4878 = vld [vmem:[%s4855 + $0x58] sm:$0xf]
    %v4879 = vld [vmem:[%s4855 + $0x5c] sm:$0xf]
    %v4880 = vld [vmem:[%s4855 + $0x60] sm:$0xf]
    %v4881 = vld [vmem:[%s4855 + $0x64] sm:$0xf]
    %v4882 = vld [vmem:[%s4855 + $0x68] sm:$0xf]
    %v4883 = vld [vmem:[%s4855 + $0x6c] sm:$0xf]
    %v4884 = vld [vmem:[%s4855 + $0x70] sm:$0xf]
    %v4885 = vld [vmem:[%s4855 + $0x74] sm:$0xf]
    %v4886 = vld [vmem:[%s4855 + $0x78] sm:$0xf]
    %v4887 = vld [vmem:[%s4855 + $0x7c] sm:$0xf]
    %v4888 = vrot.slane %v3563, 3
    %v4889 = vrot.slane %v3566, 3
    %v4924 = vunpack.c.l.b16 %v4856
    %v4925 = vunpack.c.l.b16 %v4857
    %v4926 = vunpack.c.l.b16 %v4858
    %v4927 = vunpack.c.l.b16 %v4859
    %v4928 = vunpack.c.l.b16 %v4860
    %v4929 = vunpack.c.l.b16 %v4861
    %v4930 = vunpack.c.l.b16 %v4862
    %v4931 = vunpack.c.l.b16 %v4863
    %v4932 = vunpack.c.l.b16 %v4864
    %v4933 = vunpack.c.l.b16 %v4865
    %v4934 = vunpack.c.l.b16 %v4866
    %v4935 = vunpack.c.l.b16 %v4867
    %v4936 = vunpack.c.l.b16 %v4868
    %v4937 = vunpack.c.l.b16 %v4869
    %v4938 = vunpack.c.l.b16 %v4870
    %v4939 = vunpack.c.l.b16 %v4871
    %v4940 = vunpack.c.l.b16 %v4872
    %v4941 = vunpack.c.l.b16 %v4873
    %v4942 = vunpack.c.l.b16 %v4874
    %v4943 = vunpack.c.l.b16 %v4875
    %v4944 = vunpack.c.l.b16 %v4876
    %v4945 = vunpack.c.l.b16 %v4877
    %v4946 = vunpack.c.l.b16 %v4878
    %v4947 = vunpack.c.l.b16 %v4879
    %v4948 = vunpack.c.l.b16 %v4880
    %v4949 = vunpack.c.l.b16 %v4881
    %v4950 = vunpack.c.l.b16 %v4882
    %v4951 = vunpack.c.l.b16 %v4883
    %v4952 = vunpack.c.l.b16 %v4884
    %v4953 = vunpack.c.l.b16 %v4885
    %v4954 = vunpack.c.l.b16 %v4886
    %v4955 = vunpack.c.l.b16 %v4887
    %v4956 = vpack.c.b16 %v4925, %v4924
    %v4957 = vpack.c.b16 %v4927, %v4926
    %v4958 = vpack.c.b16 %v4929, %v4928
    %v4959 = vpack.c.b16 %v4931, %v4930
    %v4960 = vpack.c.b16 %v4933, %v4932
    %v4961 = vpack.c.b16 %v4935, %v4934
    %v4962 = vpack.c.b16 %v4937, %v4936
    %v4963 = vpack.c.b16 %v4939, %v4938
    %v4964 = vpack.c.b16 %v4941, %v4940
    %v4965 = vpack.c.b16 %v4943, %v4942
    %v4966 = vpack.c.b16 %v4945, %v4944
    %v4967 = vpack.c.b16 %v4947, %v4946
    %v4968 = vpack.c.b16 %v4949, %v4948
    %v4969 = vpack.c.b16 %v4951, %v4950
    %v4970 = vpack.c.b16 %v4953, %v4952
    %v4971 = vpack.c.b16 %v4955, %v4954
    %4988 = vmatprep.subr.bf16.mxu0 0
    %4989 = vmatpush1.bf16.msra.mxu0 %v4963
    %4990 = vmatprep.subr.bf16.mxu0 0
    %4991 = vmatpush1.bf16.msra.mxu0 %v4962
    %4992 = vmatprep.subr.bf16.mxu0 0
    %4993 = vmatpush1.bf16.msra.mxu0 %v4961
    %4994 = vmatprep.subr.bf16.mxu0 0
    %4995 = vmatpush1.bf16.msra.mxu0 %v4960
    %4996 = vmatprep.subr.bf16.mxu0 0
    %4997 = vmatpush1.bf16.msra.mxu0 %v4959
    %4998 = vmatprep.subr.bf16.mxu0 0
    %4999 = vmatpush1.bf16.msra.mxu0 %v4958
    %5000 = vmatprep.subr.bf16.mxu0 0
    %5001 = vmatpush1.bf16.msra.mxu0 %v4957
    %5002 = vmatprep.subr.bf16.mxu0 0
    %5003 = vmatpush1.bf16.msra.mxu0 %v4956
    %5004 = vmatprep.subr.bf16.mxu0 0
    %5005 = vmatpush2.bf16.msra.mxu0 %v4971
    %5006 = vmatprep.subr.bf16.mxu0 0
    %5007 = vmatpush2.bf16.msra.mxu0 %v4970
    %5008 = vmatprep.subr.bf16.mxu0 0
    %5009 = vmatpush2.bf16.msra.mxu0 %v4969
    %5010 = vmatprep.subr.bf16.mxu0 0
    %5011 = vmatpush2.bf16.msra.mxu0 %v4968
    %5012 = vmatprep.subr.bf16.mxu0 0
    %5013 = vmatpush2.bf16.msra.mxu0 %v4967
    %5014 = vmatprep.subr.bf16.mxu0 0
    %5015 = vmatpush2.bf16.msra.mxu0 %v4966
    %5016 = vmatprep.subr.bf16.mxu0 0
    %5017 = vmatpush2.bf16.msra.mxu0 %v4965
    %5018 = vmatprep.subr.bf16.mxu0 0
    %5019 = vmatpush2.bf16.msra.mxu0 %v4964
    %5020 = vmatprep.mubr.bf16.mxu0 %v4889
    %5021 = vmatmul.mubr.bf16.gmra.mxu0 %v4888
    %v5022 = vpop.f32.mrf.mxu0
    %v5023 = vadd.f32 0.0, %v5022
    %v5024 = vpop.f32.mrf.mxu0
    %v5025 = vpop.f32.mrf.mxu0
    %v5026 = vpop.f32.mrf.mxu0
    %5027 = vdwg.mxu0
    %v5028 = vadd.f32 %v4809, %v5023
    %v5029 = vrot.slane %v3708, 3
    %v5030 = vrot.slane %v3711, 3
    %5033 = vmatprep.subr.bf16.mxu0 0
    %5034 = vmatpush1.bf16.msra.mxu0 %v4963
    %5035 = vmatprep.subr.bf16.mxu0 0
    %5036 = vmatpush1.bf16.msra.mxu0 %v4962
    %5037 = vmatprep.subr.bf16.mxu0 0
    %5038 = vmatpush1.bf16.msra.mxu0 %v4961
    %5039 = vmatprep.subr.bf16.mxu0 0
    %5040 = vmatpush1.bf16.msra.mxu0 %v4960
    %5041 = vmatprep.subr.bf16.mxu0 0
    %5042 = vmatpush1.bf16.msra.mxu0 %v4959
    %5043 = vmatprep.subr.bf16.mxu0 0
    %5044 = vmatpush1.bf16.msra.mxu0 %v4958
    %5045 = vmatprep.subr.bf16.mxu0 0
    %5046 = vmatpush1.bf16.msra.mxu0 %v4957
    %5047 = vmatprep.subr.bf16.mxu0 0
    %5048 = vmatpush1.bf16.msra.mxu0 %v4956
    %5049 = vmatprep.subr.bf16.mxu0 0
    %5050 = vmatpush2.bf16.msra.mxu0 %v4971
    %5051 = vmatprep.subr.bf16.mxu0 0
    %5052 = vmatpush2.bf16.msra.mxu0 %v4970
    %5053 = vmatprep.subr.bf16.mxu0 0
    %5054 = vmatpush2.bf16.msra.mxu0 %v4969
    %5055 = vmatprep.subr.bf16.mxu0 0
    %5056 = vmatpush2.bf16.msra.mxu0 %v4968
    %5057 = vmatprep.subr.bf16.mxu0 0
    %5058 = vmatpush2.bf16.msra.mxu0 %v4967
    %5059 = vmatprep.subr.bf16.mxu0 0
    %5060 = vmatpush2.bf16.msra.mxu0 %v4966
    %5061 = vmatprep.subr.bf16.mxu0 0
    %5062 = vmatpush2.bf16.msra.mxu0 %v4965
    %5063 = vmatprep.subr.bf16.mxu0 0
    %5064 = vmatpush2.bf16.msra.mxu0 %v4964
    %5065 = vmatprep.mubr.bf16.mxu0 %v5030
    %5066 = vmatmul.mubr.bf16.gmra.mxu0 %v5029
    %v5067 = vpop.f32.mrf.mxu0
    %v5068 = vadd.f32 0.0, %v5067
    %v5069 = vpop.f32.mrf.mxu0
    %v5070 = vpop.f32.mrf.mxu0
    %v5071 = vpop.f32.mrf.mxu0
    %5072 = vdwg.mxu0
    %v5073 = vadd.f32 %v4854, %v5068
    %v5074 = vld [vmem:[%s8] sm:$0xf]
    %v5075 = vld [vmem:[%s8 + $0x4] sm:$0xf]
    %v5076 = vld [vmem:[%s8 + $0x8] sm:$0xf]
    %v5077 = vld [vmem:[%s8 + $0xc] sm:$0xf]
    %v5078 = vld [vmem:[%s9] sm:$0x1]
    %v5079 = vld [vmem:[%s10] sm:$0xf]
    %v5080 = vld [vmem:[%s10 + $0x4] sm:$0xf]
    %v5081 = vld [vmem:[%s10 + $0x8] sm:$0xf]
    %v5082 = vld [vmem:[%s10 + $0xc] sm:$0xf]
    %v5083 = vld [vmem:[%s11] sm:$0x1]
    %v5084 = vmax.f32 %v5028, 0.0
    %v5085 = vpack.c.bf16 %v5084, %v5084
    %v5090 = vunpack.c.l.b16 %v5074
    %v5091 = vunpack.c.l.b16 %v5075
    %v5092 = vunpack.c.l.b16 %v5076
    %v5093 = vunpack.c.l.b16 %v5077
    %v5094 = vpack.c.b16 %v5091, %v5090
    %v5095 = vpack.c.b16 %v5093, %v5092
    %vm5098 = vcmask 261120
    %v5100 = vsel %vm5098, %v5085, 0
    %5102 = vmatprep.subr.bf16.mxu0 0
    %5103 = vmatpush1.bf16.msra.mxu0 0
    %5104 = vmatprep.subr.bf16.mxu0 0
    %5105 = vmatpush1.bf16.msra.mxu0 0
    %5106 = vmatprep.subr.bf16.mxu0 0
    %5107 = vmatpush1.bf16.msra.mxu0 0
    %5108 = vmatprep.subr.bf16.mxu0 0
    %5109 = vmatpush1.bf16.msra.mxu0 0
    %5110 = vmatprep.subr.bf16.mxu0 0
    %5111 = vmatpush1.bf16.msra.mxu0 0
    %5112 = vmatprep.subr.bf16.mxu0 0
    %5113 = vmatpush1.bf16.msra.mxu0 0
    %5114 = vmatprep.subr.bf16.mxu0 0
    %5115 = vmatpush1.bf16.msra.mxu0 %v5095
    %5116 = vmatprep.subr.bf16.mxu0 0
    %5117 = vmatpush1.bf16.msra.mxu0 %v5094
    %5118 = vmatprep.subr.bf16.mxu0 0
    %5119 = vmatpush2.bf16.msra.mxu0 0
    %5120 = vmatprep.subr.bf16.mxu0 0
    %5121 = vmatpush2.bf16.msra.mxu0 0
    %5122 = vmatprep.subr.bf16.mxu0 0
    %5123 = vmatpush2.bf16.msra.mxu0 0
    %5124 = vmatprep.subr.bf16.mxu0 0
    %5125 = vmatpush2.bf16.msra.mxu0 0
    %5126 = vmatprep.subr.bf16.mxu0 0
    %5127 = vmatpush2.bf16.msra.mxu0 0
    %5128 = vmatprep.subr.bf16.mxu0 0
    %5129 = vmatpush2.bf16.msra.mxu0 0
    %5130 = vmatprep.subr.bf16.mxu0 0
    %5131 = vmatpush2.bf16.msra.mxu0 0
    %5132 = vmatprep.subr.bf16.mxu0 0
    %5133 = vmatpush2.bf16.msra.mxu0 0
    %5134 = vmatprep.mubr.bf16.mxu0 0
    %5135 = vmatmul.mubr.bf16.gmra.mxu0 %v5100
    %v5136 = vpop.f32.mrf.mxu0
    %v5137 = vadd.f32 %v5078, %v5136
    %v5138 = vpop.f32.mrf.mxu0
    %v5139 = vpop.f32.mrf.mxu0
    %v5140 = vpop.f32.mrf.mxu0
    %5141 = vdwg.mxu0
    %v5142 = vmax.f32 %v5137, 0.0
    %v5143 = vpack.c.bf16 %v5142, %v5142
    %v5148 = vunpack.c.l.b16 %v5079
    %v5149 = vunpack.c.l.b16 %v5080
    %v5150 = vunpack.c.l.b16 %v5081
    %v5151 = vunpack.c.l.b16 %v5082
    %v5152 = vpack.c.b16 %v5149, %v5148
    %v5153 = vpack.c.b16 %v5151, %v5150
    %v5157 = vsel %vm5098, %v5143, 0
    %5159 = vmatprep.subr.bf16.mxu0 0
    %5160 = vmatpush1.bf16.msra.mxu0 0
    %5161 = vmatprep.subr.bf16.mxu0 0
    %5162 = vmatpush1.bf16.msra.mxu0 0
    %5163 = vmatprep.subr.bf16.mxu0 0
    %5164 = vmatpush1.bf16.msra.mxu0 0
    %5165 = vmatprep.subr.bf16.mxu0 0
    %5166 = vmatpush1.bf16.msra.mxu0 0
    %5167 = vmatprep.subr.bf16.mxu0 0
    %5168 = vmatpush1.bf16.msra.mxu0 0
    %5169 = vmatprep.subr.bf16.mxu0 0
    %5170 = vmatpush1.bf16.msra.mxu0 0
    %5171 = vmatprep.subr.bf16.mxu0 0
    %5172 = vmatpush1.bf16.msra.mxu0 %v5153
    %5173 = vmatprep.subr.bf16.mxu0 0
    %5174 = vmatpush1.bf16.msra.mxu0 %v5152
    %5175 = vmatprep.subr.bf16.mxu0 0
    %5176 = vmatpush2.bf16.msra.mxu0 0
    %5177 = vmatprep.subr.bf16.mxu0 0
    %5178 = vmatpush2.bf16.msra.mxu0 0
    %5179 = vmatprep.subr.bf16.mxu0 0
    %5180 = vmatpush2.bf16.msra.mxu0 0
    %5181 = vmatprep.subr.bf16.mxu0 0
    %5182 = vmatpush2.bf16.msra.mxu0 0
    %5183 = vmatprep.subr.bf16.mxu0 0
    %5184 = vmatpush2.bf16.msra.mxu0 0
    %5185 = vmatprep.subr.bf16.mxu0 0
    %5186 = vmatpush2.bf16.msra.mxu0 0
    %5187 = vmatprep.subr.bf16.mxu0 0
    %5188 = vmatpush2.bf16.msra.mxu0 0
    %5189 = vmatprep.subr.bf16.mxu0 0
    %5190 = vmatpush2.bf16.msra.mxu0 0
    %5191 = vmatprep.mubr.bf16.mxu0 0
    %5192 = vmatmul.mubr.bf16.gmra.mxu0 %v5157
    %v5193 = vpop.f32.mrf.mxu0
    %v5194 = vadd.f32 %v5083, %v5193
    %v5195 = vpop.f32.mrf.mxu0
    %v5196 = vpop.f32.mrf.mxu0
    %v5197 = vpop.f32.mrf.mxu0
    %5198 = vdwg.mxu0
    %vm5199 = vcmask 57344
    %5200 = vst.msk [vmem:[#allocation3] sm:$0x1] %vm5199, %v5194
    %v5201 = vmax.f32 %v5073, 0.0
    %v5202 = vpack.c.bf16 %v5201, %v5201
    %v5204 = vsel %vm5098, %v5202, 0
    %5206 = vmatprep.subr.bf16.mxu0 0
    %5207 = vmatpush1.bf16.msra.mxu0 0
    %5208 = vmatprep.subr.bf16.mxu0 0
    %5209 = vmatpush1.bf16.msra.mxu0 0
    %5210 = vmatprep.subr.bf16.mxu0 0
    %5211 = vmatpush1.bf16.msra.mxu0 0
    %5212 = vmatprep.subr.bf16.mxu0 0
    %5213 = vmatpush1.bf16.msra.mxu0 0
    %5214 = vmatprep.subr.bf16.mxu0 0
    %5215 = vmatpush1.bf16.msra.mxu0 0
    %5216 = vmatprep.subr.bf16.mxu0 0
    %5217 = vmatpush1.bf16.msra.mxu0 0
    %5218 = vmatprep.subr.bf16.mxu0 0
    %5219 = vmatpush1.bf16.msra.mxu0 %v5095
    %5220 = vmatprep.subr.bf16.mxu0 0
    %5221 = vmatpush1.bf16.msra.mxu0 %v5094
    %5222 = vmatprep.subr.bf16.mxu0 0
    %5223 = vmatpush2.bf16.msra.mxu0 0
    %5224 = vmatprep.subr.bf16.mxu0 0
    %5225 = vmatpush2.bf16.msra.mxu0 0
    %5226 = vmatprep.subr.bf16.mxu0 0
    %5227 = vmatpush2.bf16.msra.mxu0 0
    %5228 = vmatprep.subr.bf16.mxu0 0
    %5229 = vmatpush2.bf16.msra.mxu0 0
    %5230 = vmatprep.subr.bf16.mxu0 0
    %5231 = vmatpush2.bf16.msra.mxu0 0
    %5232 = vmatprep.subr.bf16.mxu0 0
    %5233 = vmatpush2.bf16.msra.mxu0 0
    %5234 = vmatprep.subr.bf16.mxu0 0
    %5235 = vmatpush2.bf16.msra.mxu0 0
    %5236 = vmatprep.subr.bf16.mxu0 0
    %5237 = vmatpush2.bf16.msra.mxu0 0
    %5238 = vmatprep.mubr.bf16.mxu0 0
    %5239 = vmatmul.mubr.bf16.gmra.mxu0 %v5204
    %v5240 = vpop.f32.mrf.mxu0
    %v5241 = vadd.f32 %v5078, %v5240
    %v5242 = vpop.f32.mrf.mxu0
    %v5243 = vpop.f32.mrf.mxu0
    %v5244 = vpop.f32.mrf.mxu0
    %5245 = vdwg.mxu0
    %v5246 = vmax.f32 %v5241, 0.0
    %v5247 = vpack.c.bf16 %v5246, %v5246
    %v5249 = vsel %vm5098, %v5247, 0
    %5251 = vmatprep.subr.bf16.mxu0 0
    %5252 = vmatpush1.bf16.msra.mxu0 0
    %5253 = vmatprep.subr.bf16.mxu0 0
    %5254 = vmatpush1.bf16.msra.mxu0 0
    %5255 = vmatprep.subr.bf16.mxu0 0
    %5256 = vmatpush1.bf16.msra.mxu0 0
    %5257 = vmatprep.subr.bf16.mxu0 0
    %5258 = vmatpush1.bf16.msra.mxu0 0
    %5259 = vmatprep.subr.bf16.mxu0 0
    %5260 = vmatpush1.bf16.msra.mxu0 0
    %5261 = vmatprep.subr.bf16.mxu0 0
    %5262 = vmatpush1.bf16.msra.mxu0 0
    %5263 = vmatprep.subr.bf16.mxu0 0
    %5264 = vmatpush1.bf16.msra.mxu0 %v5153
    %5265 = vmatprep.subr.bf16.mxu0 0
    %5266 = vmatpush1.bf16.msra.mxu0 %v5152
    %5267 = vmatprep.subr.bf16.mxu0 0
    %5268 = vmatpush2.bf16.msra.mxu0 0
    %5269 = vmatprep.subr.bf16.mxu0 0
    %5270 = vmatpush2.bf16.msra.mxu0 0
    %5271 = vmatprep.subr.bf16.mxu0 0
    %5272 = vmatpush2.bf16.msra.mxu0 0
    %5273 = vmatprep.subr.bf16.mxu0 0
    %5274 = vmatpush2.bf16.msra.mxu0 0
    %5275 = vmatprep.subr.bf16.mxu0 0
    %5276 = vmatpush2.bf16.msra.mxu0 0
    %5277 = vmatprep.subr.bf16.mxu0 0
    %5278 = vmatpush2.bf16.msra.mxu0 0
    %5279 = vmatprep.subr.bf16.mxu0 0
    %5280 = vmatpush2.bf16.msra.mxu0 0
    %5281 = vmatprep.subr.bf16.mxu0 0
    %5282 = vmatpush2.bf16.msra.mxu0 0
    %5283 = vmatprep.mubr.bf16.mxu0 0
    %5284 = vmatmul.mubr.bf16.gmra.mxu0 %v5249
    %v5285 = vpop.f32.mrf.mxu0
    %v5286 = vadd.f32 %v5083, %v5285
    %v5287 = vpop.f32.mrf.mxu0
    %v5288 = vpop.f32.mrf.mxu0
    %v5289 = vpop.f32.mrf.mxu0
    %5290 = vdwg.mxu0
    %5291 = vst.msk [vmem:[#allocation3 + $0x1] sm:$0x1] %vm5199, %v5286
    // Predicated region
    $region50: #{feed_forward_nn.1} parent=1 // pred_check
      _
    $region51: #{feed_forward_nn.1} parent=1 // pred_check_branch
      %5293 = sbr.rel (0) target = $region53
    $region52: #{feed_forward_nn.1} parent=1 // pred_region
      %s5295 = ssub.s32 32, 32
      %5296 = vsyncadd [#allocation4], %s5295
      %s5298 = sshll.u32 [#allocation3], 4
      %s5299 = int_to_ptr.vmem [resolvable:$true] %s5298
      %5301 = dma.vmem_to_hbm [thread:$0]  %s5299, 32, %s12, [#allocation4]
    $region53: #{feed_forward_nn.1} parent=1 // pred_fallthru
      _
    // Predicated region
    $region54: #{feed_forward_nn.1} parent=1 // pred_check
      _
    $region55: #{feed_forward_nn.1} parent=1 // pred_check_branch
      %5303 = sbr.rel (0) target = $region57
    $region56: #{feed_forward_nn.1} parent=1 // pred_region
      %5304 = dma.done [#allocation4], 32
    $region57: #{feed_forward_nn.1} parent=1 // pred_fallthru
      _
    %5305 = vsyncpa [#allocation4], 1

</llo_original>
